<compile_context>
chip_gen: v6e
topology: v6e:2x2x1
jax: 0.10.0
libtpu: 0.0.40
codegen_flags: <defaults>
</compile_context>

<pallas_src>
import functools

import jax
import jax.numpy as jnp
from jax.experimental import pallas as pl
from jax.experimental.pallas import tpu as pltpu


# -----------------------------------------------------------------------------
# Numerically stable complex SiLU: z * sigmoid(z), sigmoid(z) = 1/(1+exp(-z)).
# exp(-|Re z|) is factored out so nothing overflows; reciprocal goes to the EUP
# slot (approx=True; use exact reciprocal for bit-level parity checks).
# -----------------------------------------------------------------------------
def _complex_silu(hr, hi):
    c = jnp.cos(hi)
    s = jnp.sin(hi)
    t = jnp.exp(-jnp.abs(hr))            # always <= 1, never overflows
    pos = hr >= 0.0
    # Re(z) >= 0: sigmoid = 1 / (1 + t*(cos - i sin))
    # Re(z) <  0: sigmoid = t*(cos + i sin) / (1 + t*(cos + i sin))
    dr = 1.0 + t * c
    di = jnp.where(pos, -t * s, t * s)
    nr = jnp.where(pos, 1.0, t * c)
    ni = jnp.where(pos, 0.0, t * s)
    inv = pl.reciprocal(dr * dr + di * di, approx=True)   # EUP slot, frees VALU
    sr = (nr * dr + ni * di) * inv
    si = (ni * dr - nr * di) * inv
    ar = hr * sr - hi * si
    ai = hr * si + hi * sr
    return ar, ai


# -----------------------------------------------------------------------------
# Fused ICM forward kernel (one grid step = one batch block of TB rows).
#   x_ref  : (TB, 4S+E+1) f32   columns [hp_r | hp_i | ht_r | ht_i | y_prev | 1]
#   w1_ref : (4S+E+1, 4S)       merged layer-1 weight (bias row folded in)
#   w2_ref : (4S, 4S)           merged block-diagonal layer-2 weight
#   b2_ref : (1, 4S) f32        merged layer-2 bias [b2f_r | c2_r | b2f_i | c2_i]
#   out_ref: (1, 8, 128) f32    lane 0 = sum|h_next-h_t|^2, lane 1 = sum(dd^2)
# -----------------------------------------------------------------------------
def _icm_kernel(x_ref, w1_ref, w2_ref, b2_ref, out_ref, *, S, E, compression_fn):
    f32 = jnp.float32
    mm_dtype = w1_ref.dtype

    x = x_ref[...]                                             # (TB, 4S+E+1) f32
    xm = x.astype(mm_dtype)

    # ---- layer 1: both complex Linears + both biases in ONE MXU matmul -------
    h1 = jnp.dot(xm, w1_ref[...], preferred_element_type=f32)  # (TB, 4S)

    # ---- complex SiLU on the (real | imag) lane halves ------------------------
    ar, ai = _complex_silu(h1[:, :2 * S], h1[:, 2 * S:])
    a = jnp.concatenate([ar, ai], axis=-1).astype(mm_dtype)    # (TB, 4S)

    # ---- layer 2: both complex Linears in ONE matmul; bias via broadcast add --
    h2 = jnp.dot(a, w2_ref[...], preferred_element_type=f32) + b2_ref[...]
    # h2 columns: [h_next_r (S) | y_embed_r (S) | h_next_i (S) | y_embed_i (S)]

    # ---- per-block loss partial sums ------------------------------------------
    ht_r = x[:, 2 * S:3 * S]
    ht_i = x[:, 3 * S:4 * S]
    yp = x[:, 4 * S:4 * S + E]

    dr = h2[:, 0:S] - ht_r
    di = h2[:, 2 * S:3 * S] - ht_i
    e_sum = jnp.sum(dr * dr + di * di)                         # sum |h_next - h_t|^2

    # compression_fn is traced inline (must be Pallas-compatible jnp ops;
    # it maps the complex (TB, S) embedding -> real (TB, E)).
    y_pred = compression_fn(h2[:, S:2 * S], h2[:, 3 * S:4 * S])
    dd = y_pred - yp
    i_sum = jnp.sum(dd * dd)

    lane = jax.lax.broadcasted_iota(jnp.int32, (8, 128), 1)
    tile = jnp.where(lane == 0, e_sum, jnp.where(lane == 1, i_sum, 0.0)).astype(f32)
    out_ref[...] = tile[None, :, :]


def _pick_block(batch):
    for tb in (128, 64, 32, 16, 8):
        if batch % tb == 0 and batch >= tb:
            return tb
    return batch  # single block covering the full (possibly small/odd) batch


def icm_forward(params, h_prev_r, h_prev_i, h_t_r, h_t_i, y_prev,
                compression_fn, block_b=None):
    """ICM.forward: returns (exploration_signal, total_curiosity_loss) as f32 scalars."""
    w1, w2, b2 = params["w1"], params["w2"], params["b2"]
    S = w2.shape[0] // 4
    E = w1.shape[0] - 4 * S - 1
    B = h_prev_r.shape[0]
    K = 4 * S + E + 1

    # One packed activation slab, assembled by XLA outside the kernel.
    ones = jnp.ones((B, 1), jnp.float32)
    x = jnp.concatenate(
        [h_prev_r, h_prev_i, h_t_r, h_t_i, y_prev, ones], axis=-1
    ).astype(jnp.float32)                                      # (B, 4S+E+1)

    tb = block_b if block_b is not None else _pick_block(B)
    assert B % tb == 0, "batch must be divisible by the block size"
    nblk = B // tb

    partials = pl.pallas_call(
        functools.partial(_icm_kernel, S=S, E=E, compression_fn=compression_fn),
        out_shape=jax.ShapeDtypeStruct((nblk, 8, 128), jnp.float32),
        grid=(nblk,),
        in_specs=[
            pl.BlockSpec((tb, K), lambda i: (i, 0)),           # activations stream
            pl.BlockSpec(w1.shape, lambda i: (0, 0)),          # weights stay resident
            pl.BlockSpec(w2.shape, lambda i: (0, 0)),
            pl.BlockSpec(b2.shape, lambda i: (0, 0)),
        ],
        out_specs=pl.BlockSpec((1, 8, 128), lambda i: (i, 0, 0)),
        compiler_params=pltpu.CompilerParams(
            dimension_semantics=("parallel",)),                # 2-TC sharding on v7x
    )(x, w1, w2, b2)

    # Tiny final reduction + normalization in XLA (a handful of f32 per block).
    # NOTE: exploration uses mean over COMPLEX elements (divisor B*S); the
    # real-view interpretation of torch MSELoss would use B*2S instead.
    exploration = jnp.sum(partials[:, 0, 0]) / float(B * S)
    inverse = jnp.sum(partials[:, 0, 1]) / float(B * E)
    return exploration, exploration + inverse


# -----------------------------------------------------------------------------
# Parameter init (deterministic, torch.nn.Linear-style uniform(-1/sqrt(fan_in)))
# followed by host-side packing into the merged lane-dense real form.
#   layer-1 rows:    [hp_r | hp_i | ht_r | ht_i | y_prev | bias]
#   layer-1/2 cols:  [fwd_r | inv_r | fwd_i | inv_i]
#   layer-2 rows:    [a_fwd_r | a_inv_r | a_fwd_i | a_inv_i]
# Complex Linear y = x @ (Wr + i Wi):  y_r = x_r@Wr - x_i@Wi, y_i = x_r@Wi + x_i@Wr.
# -----------------------------------------------------------------------------
def init_complex_linear(key, d_in, d_out):
    kwr, kwi, kbr, kbi = jax.random.split(key, 4)
    bound = 1.0 / (d_in ** 0.5)
    wr = jax.random.uniform(kwr, (d_in, d_out), jnp.float32, -bound, bound)
    wi = jax.random.uniform(kwi, (d_in, d_out), jnp.float32, -bound, bound)
    br = jax.random.uniform(kbr, (d_out,), jnp.float32, -bound, bound)
    bi = jax.random.uniform(kbi, (d_out,), jnp.float32, -bound, bound)
    return wr, wi, br, bi


def init_icm_params(key, state_space_size, embedding_size, matmul_dtype=jnp.bfloat16):
    S, E = state_space_size, embedding_size
    k1, k2, k3, k4 = jax.random.split(key, 4)
    w1r, w1i, b1r, b1i = init_complex_linear(k1, S + E, S)   # forward_curiosity layer 1
    w2r, w2i, b2r, b2i = init_complex_linear(k2, S, S)       # forward_curiosity layer 2
    v1r, v1i, c1r, c1i = init_complex_linear(k3, 2 * S, S)   # inverse_curiosity layer 1
    v2r, v2i, c2r, c2i = init_complex_linear(k4, S, S)       # inverse_curiosity layer 2

    Z = jnp.zeros((S, S), jnp.float32)
    ZE = jnp.zeros((E, S), jnp.float32)

    def rows(*blocks):
        return jnp.concatenate(blocks, axis=1)

    # Merged layer-1 weight (4S+E+1, 4S); y_prev imaginary part is identically 0
    # so only its real rows appear; last row is the fused bias.
    w1 = jnp.concatenate([
        rows(w1r[:S],  v1r[:S],  w1i[:S],  v1i[:S]),          # h_prev real rows
        rows(-w1i[:S], -v1i[:S], w1r[:S],  v1r[:S]),          # h_prev imag rows
        rows(Z,        v1r[S:],  Z,        v1i[S:]),          # h_t   real rows
        rows(Z,        -v1i[S:], Z,        v1r[S:]),          # h_t   imag rows
        rows(w1r[S:],  ZE,       w1i[S:],  ZE),               # y_prev rows
        rows(b1r[None, :], c1r[None, :], b1i[None, :], c1i[None, :]),  # bias row
    ], axis=0).astype(matmul_dtype)

    # Merged block-diagonal layer-2 weight (4S, 4S).
    w2 = jnp.concatenate([
        rows(w2r,  Z,    w2i,  Z),
        rows(Z,    v2r,  Z,    v2i),
        rows(-w2i, Z,    w2r,  Z),
        rows(Z,    -v2i, Z,    v2r),
    ], axis=0).astype(matmul_dtype)

    b2 = jnp.concatenate([b2r, c2r, b2i, c2i])[None, :].astype(jnp.float32)  # (1, 4S)

    return {"w1": w1, "w2": w2, "b2": b2}


if __name__ == "__main__":
    STATE = 32     # state_space_size  -> 4S = 128 lane-dense matmul width
    EMBED = 16     # embedding_size
    BATCH = 256    # batched env steps -> grid of 2 blocks of 128 rows (MXU-height M)

    key = jax.random.PRNGKey(0)
    kp, khr, khi, ktr, kti, ky = jax.random.split(key, 6)
    params = init_icm_params(kp, STATE, EMBED)

    h_prev_r = jax.random.normal(khr, (BATCH, STATE), jnp.float32)
    h_prev_i = jax.random.normal(khi, (BATCH, STATE), jnp.float32)
    h_t_r = jax.random.normal(ktr, (BATCH, STATE), jnp.float32)
    h_t_i = jax.random.normal(kti, (BATCH, STATE), jnp.float32)
    y_prev = jax.random.normal(ky, (BATCH, EMBED), jnp.float32)

    # Example compression_fn: complex (B, STATE) embedding -> real (B, EMBED)
    # via magnitude + slice.  It is traced INSIDE the fused kernel, so it must
    # consist of Pallas-compatible jnp ops (the real app supplies its own).
    def compression_fn(zr, zi):
        return jnp.sqrt(zr * zr + zi * zi)[:, :EMBED]

    # TODO(synk): torch.nn.MSELoss has no defined complex semantics; we use
    # mean(|diff|^2) per complex element for the exploration signal.
    fwd = jax.jit(functools.partial(icm_forward, compression_fn=compression_fn))
    exploration_signal, total_curiosity_loss = fwd(
        params, h_prev_r, h_prev_i, h_t_r, h_t_i, y_prev)
    jax.block_until_ready((exploration_signal, total_curiosity_loss))
    print("KERNEL_OK")
</pallas_src>

<mosaic_0001>
module attributes {stable_mosaic.version = 11 : i64} {
  func.func @_icm_kernel(%arg0: i32, %arg1: memref<128x145xf32, #tpu.memory_space<vmem>>, %arg2: memref<145x128xbf16, #tpu.memory_space<vmem>>, %arg3: memref<128x128xbf16, #tpu.memory_space<vmem>>, %arg4: memref<1x128xf32, #tpu.memory_space<vmem>>, %arg5: memref<1x8x128xf32, #tpu.memory_space<vmem>>) attributes {dimension_semantics = [#tpu.dimension_semantics<parallel>], iteration_bounds = array<i64: 2>, scalar_prefetch = 0 : i64, scratch_operands = 0 : i64, tpu.core_type = #tpu.core_type<tc>, window_params = [{transform_indices = @transform_0, window_bounds = array<i64: 128, 145>}, {pipeline_mode = #tpu.pipeline_mode<synchronous>, transform_indices = @transform_1, window_bounds = array<i64: 145, 128>}, {pipeline_mode = #tpu.pipeline_mode<synchronous>, transform_indices = @transform_2, window_bounds = array<i64: 128, 128>}, {pipeline_mode = #tpu.pipeline_mode<synchronous>, transform_indices = @transform_3, window_bounds = array<i64: 1, 128>}, {transform_indices = @transform_4, window_bounds = array<i64: 1, 8, 128>}]} {
    %c0 = arith.constant 0 : index
    %c0_0 = arith.constant 0 : index
    %0 = vector.load %arg1[%c0, %c0_0] : memref<128x145xf32, #tpu.memory_space<vmem>>, vector<128x145xf32>
    %1 = arith.truncf %0 : vector<128x145xf32> to vector<128x145xbf16>
    %c0_1 = arith.constant 0 : index
    %c0_2 = arith.constant 0 : index
    %2 = vector.load %arg2[%c0_1, %c0_2] : memref<145x128xbf16, #tpu.memory_space<vmem>>, vector<145x128xbf16>
    %cst = arith.constant dense<0.000000e+00> : vector<128x128xf32>
    %3 = tpu.matmul %1, %2, %cst {dimension_numbers = #tpu.dot_dimension_numbers<[1], [0], [0], [1], [0, 0, 1, 1], [], []>} : vector<128x145xbf16>, vector<145x128xbf16>, vector<128x128xf32> -> vector<128x128xf32>
    %4 = vector.extract_strided_slice %3 {offsets = [0, 0], sizes = [128, 64], strides = [1, 1]} : vector<128x128xf32> to vector<128x64xf32>
    %5 = vector.extract_strided_slice %3 {offsets = [0, 64], sizes = [128, 64], strides = [1, 1]} : vector<128x128xf32> to vector<128x64xf32>
    %6 = math.cos %5 : vector<128x64xf32>
    %7 = math.sin %5 : vector<128x64xf32>
    %8 = math.absf %4 : vector<128x64xf32>
    %cst_3 = arith.constant 0.000000e+00 : f32
    %9 = vector.broadcast %cst_3 : f32 to vector<128x64xf32>
    %10 = arith.subf %9, %8 : vector<128x64xf32>
    %11 = math.exp %10 : vector<128x64xf32>
    %cst_4 = arith.constant 0.000000e+00 : f32
    %12 = vector.broadcast %cst_4 : f32 to vector<128x64xf32>
    %13 = arith.cmpf oge, %4, %12 : vector<128x64xf32>
    %14 = arith.mulf %11, %6 : vector<128x64xf32>
    %cst_5 = arith.constant 1.000000e+00 : f32
    %15 = vector.broadcast %cst_5 : f32 to vector<128x64xf32>
    %16 = arith.addf %15, %14 : vector<128x64xf32>
    %cst_6 = arith.constant 0.000000e+00 : f32
    %17 = vector.broadcast %cst_6 : f32 to vector<128x64xf32>
    %18 = arith.subf %17, %11 : vector<128x64xf32>
    %19 = arith.mulf %18, %7 : vector<128x64xf32>
    %20 = arith.mulf %11, %7 : vector<128x64xf32>
    %21 = arith.select %13, %19, %20 : vector<128x64xi1>, vector<128x64xf32>
    %22 = arith.mulf %11, %6 : vector<128x64xf32>
    %cst_7 = arith.constant 1.000000e+00 : f32
    %23 = vector.broadcast %cst_7 : f32 to vector<128x64xf32>
    %24 = arith.select %13, %23, %22 : vector<128x64xi1>, vector<128x64xf32>
    %25 = arith.mulf %11, %7 : vector<128x64xf32>
    %cst_8 = arith.constant 0.000000e+00 : f32
    %26 = vector.broadcast %cst_8 : f32 to vector<128x64xf32>
    %27 = arith.select %13, %26, %25 : vector<128x64xi1>, vector<128x64xf32>
    %28 = arith.mulf %16, %16 : vector<128x64xf32>
    %29 = arith.mulf %21, %21 : vector<128x64xf32>
    %30 = arith.addf %28, %29 : vector<128x64xf32>
    %31 = tpu.reciprocal %30 {approx = true} : vector<128x64xf32> -> vector<128x64xf32>
    %32 = arith.mulf %24, %16 : vector<128x64xf32>
    %33 = arith.mulf %27, %21 : vector<128x64xf32>
    %34 = arith.addf %32, %33 : vector<128x64xf32>
    %35 = arith.mulf %34, %31 : vector<128x64xf32>
    %36 = arith.mulf %27, %16 : vector<128x64xf32>
    %37 = arith.mulf %24, %21 : vector<128x64xf32>
    %38 = arith.subf %36, %37 : vector<128x64xf32>
    %39 = arith.mulf %38, %31 : vector<128x64xf32>
    %40 = arith.mulf %4, %35 : vector<128x64xf32>
    %41 = arith.mulf %5, %39 : vector<128x64xf32>
    %42 = arith.subf %40, %41 : vector<128x64xf32>
    %43 = arith.mulf %4, %39 : vector<128x64xf32>
    %44 = arith.mulf %5, %35 : vector<128x64xf32>
    %45 = arith.addf %43, %44 : vector<128x64xf32>
    %46 = tpu.concatenate %42, %45 in 1 : vector<128x64xf32>, vector<128x64xf32> -> vector<128x128xf32>
    %47 = arith.truncf %46 : vector<128x128xf32> to vector<128x128xbf16>
    %c0_9 = arith.constant 0 : index
    %c0_10 = arith.constant 0 : index
    %48 = vector.load %arg3[%c0_9, %c0_10] : memref<128x128xbf16, #tpu.memory_space<vmem>>, vector<128x128xbf16>
    %cst_11 = arith.constant dense<0.000000e+00> : vector<128x128xf32>
    %49 = tpu.matmul %47, %48, %cst_11 {dimension_numbers = #tpu.dot_dimension_numbers<[1], [0], [0], [1], [0, 0, 1, 1], [], []>} : vector<128x128xbf16>, vector<128x128xbf16>, vector<128x128xf32> -> vector<128x128xf32>
    %c0_12 = arith.constant 0 : index
    %c0_13 = arith.constant 0 : index
    %50 = vector.load %arg4[%c0_12, %c0_13] : memref<1x128xf32, #tpu.memory_space<vmem>>, vector<1x128xf32>
    %51 = vector.broadcast %50 : vector<1x128xf32> to vector<128x128xf32>
    %52 = arith.addf %49, %51 : vector<128x128xf32>
    %53 = vector.extract_strided_slice %0 {offsets = [0, 64], sizes = [128, 32], strides = [1, 1]} : vector<128x145xf32> to vector<128x32xf32>
    %54 = vector.extract_strided_slice %0 {offsets = [0, 96], sizes = [128, 32], strides = [1, 1]} : vector<128x145xf32> to vector<128x32xf32>
    %55 = vector.extract_strided_slice %0 {offsets = [0, 128], sizes = [128, 16], strides = [1, 1]} : vector<128x145xf32> to vector<128x16xf32>
    %56 = vector.extract_strided_slice %52 {offsets = [0, 0], sizes = [128, 32], strides = [1, 1]} : vector<128x128xf32> to vector<128x32xf32>
    %57 = arith.subf %56, %53 : vector<128x32xf32>
    %58 = vector.extract_strided_slice %52 {offsets = [0, 64], sizes = [128, 32], strides = [1, 1]} : vector<128x128xf32> to vector<128x32xf32>
    %59 = arith.subf %58, %54 : vector<128x32xf32>
    %60 = arith.mulf %57, %57 : vector<128x32xf32>
    %61 = arith.mulf %59, %59 : vector<128x32xf32>
    %62 = arith.addf %60, %61 : vector<128x32xf32>
    %63 = vector.shape_cast %62 : vector<128x32xf32> to vector<1x128x32xf32>
    %cst_14 = arith.constant dense<0.000000e+00> : vector<1xf32>
    %64 = vector.multi_reduction <add>, %63, %cst_14 [1, 2] : vector<1x128x32xf32> to vector<1xf32>
    %65 = vector.shape_cast %64 : vector<1xf32> to vector<1x1x1xf32>
    %66 = vector.extract %65[0, 0, 0] : f32 from vector<1x1x1xf32>
    %67 = vector.extract_strided_slice %52 {offsets = [0, 32], sizes = [128, 32], strides = [1, 1]} : vector<128x128xf32> to vector<128x32xf32>
    %68 = vector.extract_strided_slice %52 {offsets = [0, 96], sizes = [128, 32], strides = [1, 1]} : vector<128x128xf32> to vector<128x32xf32>
    %69 = arith.mulf %67, %67 : vector<128x32xf32>
    %70 = arith.mulf %68, %68 : vector<128x32xf32>
    %71 = arith.addf %69, %70 : vector<128x32xf32>
    %72 = math.sqrt %71 : vector<128x32xf32>
    %73 = vector.extract_strided_slice %72 {offsets = [0, 0], sizes = [128, 16], strides = [1, 1]} : vector<128x32xf32> to vector<128x16xf32>
    %74 = arith.subf %73, %55 : vector<128x16xf32>
    %75 = arith.mulf %74, %74 : vector<128x16xf32>
    %76 = vector.shape_cast %75 : vector<128x16xf32> to vector<1x128x16xf32>
    %cst_15 = arith.constant dense<0.000000e+00> : vector<1xf32>
    %77 = vector.multi_reduction <add>, %76, %cst_15 [1, 2] : vector<1x128x16xf32> to vector<1xf32>
    %78 = vector.shape_cast %77 : vector<1xf32> to vector<1x1x1xf32>
    %79 = vector.extract %78[0, 0, 0] : f32 from vector<1x1x1xf32>
    %80 = tpu.iota {dimensions = array<i32: 1>} : vector<8x128xi32>
    %c0_i32 = arith.constant 0 : i32
    %81 = vector.broadcast %c0_i32 : i32 to vector<8x128xi32>
    %82 = arith.cmpi eq, %80, %81 : vector<8x128xi32>
    %c1_i32 = arith.constant 1 : i32
    %83 = vector.broadcast %c1_i32 : i32 to vector<8x128xi32>
    %84 = arith.cmpi eq, %80, %83 : vector<8x128xi32>
    %cst_16 = arith.constant 0.000000e+00 : f32
    %85 = vector.broadcast %79 : f32 to vector<8x128xf32>
    %86 = vector.broadcast %cst_16 : f32 to vector<8x128xf32>
    %87 = arith.select %84, %85, %86 : vector<8x128xi1>, vector<8x128xf32>
    %88 = vector.broadcast %66 : f32 to vector<8x128xf32>
    %89 = arith.select %82, %88, %87 : vector<8x128xi1>, vector<8x128xf32>
    %90 = vector.shape_cast %89 : vector<8x128xf32> to vector<1x8x128xf32>
    %c0_17 = arith.constant 0 : index
    %c0_18 = arith.constant 0 : index
    %c0_19 = arith.constant 0 : index
    %91 = vector.load %arg5[%c0_17, %c0_18, %c0_19] : memref<1x8x128xf32, #tpu.memory_space<vmem>>, vector<1x8x128xf32>
    tpu.vector_store %arg5[%c0_17, %c0_18, %c0_19], %90 {strides = array<i32>} : memref<1x8x128xf32, #tpu.memory_space<vmem>>, vector<1x8x128xf32>,
    return
  }
  func.func @transform_0(%arg0: i32) -> (i32, i32) {
    %c0_i32 = arith.constant 0 : i32
    %c0_i32_0 = arith.constant 0 : i32
    return %arg0, %c0_i32 : i32, i32
  }
  func.func @transform_1(%arg0: i32) -> (i32, i32) {
    %c0_i32 = arith.constant 0 : i32
    %c0_i32_0 = arith.constant 0 : i32
    %c0_i32_1 = arith.constant 0 : i32
    return %c0_i32, %c0_i32_0 : i32, i32
  }
  func.func @transform_2(%arg0: i32) -> (i32, i32) {
    %c0_i32 = arith.constant 0 : i32
    %c0_i32_0 = arith.constant 0 : i32
    %c0_i32_1 = arith.constant 0 : i32
    return %c0_i32, %c0_i32_0 : i32, i32
  }
  func.func @transform_3(%arg0: i32) -> (i32, i32) {
    %c0_i32 = arith.constant 0 : i32
    %c0_i32_0 = arith.constant 0 : i32
    %c0_i32_1 = arith.constant 0 : i32
    return %c0_i32, %c0_i32_0 : i32, i32
  }
  func.func @transform_4(%arg0: i32) -> (i32, i32, i32) {
    %c0_i32 = arith.constant 0 : i32
    %c0_i32_0 = arith.constant 0 : i32
    %c0_i32_1 = arith.constant 0 : i32
    return %arg0, %c0_i32, %c0_i32_0 : i32, i32, i32
  }
}

</mosaic_0001>

<llo_original>
// kernel: icm_forward.1
$region0: #{icm_forward.1}
  #allocation0 [shape = 'u32[]', space=smem, size = 0x4, offset = 0x4, fixed_abs, tag = 'smem constant byte address 0x4 - core index']
  #allocation1 [shape = 'u32[144,128]{1,0:T(1,128)}', space=vmem, size = 0x12000, scoped, tag = 'internal scratch']
  %s0 = inlined_call_operand.vmem [shape: f32[256,145], index: 0, kind: input, shape index: {}]
  %s1 = inlined_call_operand.vmem [shape: bf16[145,128], index: 1, kind: input, shape index: {}]
  %s2 = inlined_call_operand.vmem [shape: bf16[128,128], index: 2, kind: input, shape index: {}]
  %s3 = inlined_call_operand.vmem [shape: f32[1,128], index: 3, kind: input, shape index: {}]
  %s4 = inlined_call_operand.vmem [shape: f32[2,8,128], index: 4, kind: output, shape index: {}]
  %s5 = sld [smem:[#allocation0]]
  $region49: #{icm_forward.1} parent=0
    _
  %s7 = ssub.s32 1, %s5
  %s8 = scalar_select 0, %s7, %s5
  loop: start=0, step=1, limit=4
  $region2: #{icm_forward.1} parent=0 // loop_pre_header
    _
  $region3: #{icm_forward.1} parent=0 // loop_header
    %s10 = sphi 0, %s14
    %p11 = scmp.ge.s32.totalorder %s10, 4
    %s20 = sphi 0, %s22
    %s23 = sphi 0, %s20
    %s24 = sphi 0, %s23
    %s40 = sphi 0, %s24
    %s44 = sphi 0, %s44
    %s46 = sphi 0, %s44
    %s47 = sphi 0, %s46
    %s61 = sphi 0, %s47
    %s65 = sphi 0, %s65
    %s67 = sphi 0, %s65
    %s68 = sphi 0, %s67
    %s82 = sphi 0, %s68
    %s86 = sphi 0, %s86
    %s88 = sphi 0, %s86
    %s89 = sphi 0, %s88
    %s103 = sphi 0, %s89
    %s109 = sphi 0, %s111
    %s112 = sphi 0, %s109
    %s113 = sphi 0, %s112
    %s129 = sphi 0, %s113
  $region4: #{icm_forward.1} parent=0 // loop_header_branch
    %13 = sbr.rel (%p11) target = $region8
  $region5: #{icm_forward.1} parent=0 // loop_body
    %s15 = ssub.s32 %s10, 1
    %s16 = ssub.s32 %s10, 2
    %s17 = sadd.s32 %s10, 1
    %s18 = ssub.s32 %s10, %s17
    %p19 = scmp.eq.s32.totalorder %s18, 0
    %s21 = sadd.s32 %s20, 1
    %s22 = scalar_select %p19, %s20, %s21
    %p25 = pneg %p19
    %p26 = scmp.eq.s32.totalorder %s10, 1
    %p27 = por %p25, %p26
    %p28 = scmp.ne.s32.totalorder %s20, %s23
    %p29 = scmp.eq.s32.totalorder %s10, 0
    %p30 = por %p28, %p29
    %p31 = scmp.ne.s32.totalorder %s20, %s23
    %p32 = scmp.eq.s32.totalorder %s15, 1
    %p33 = por %p31, %p32
    %p34 = scmp.ne.s32.totalorder %s23, %s24
    %p35 = scmp.eq.s32.totalorder %s15, 0
    %p36 = por %p34, %p35
    %p37 = scmp.ne.s32.totalorder %s23, %s24
    %p38 = scmp.eq.s32.totalorder %s16, 1
    %p39 = por %p37, %p38
    %p41 = scmp.ne.s32.totalorder %s24, %s40
    %p42 = scmp.eq.s32.totalorder %s16, 0
    %p43 = por %p41, %p42
    %s45 = sadd.s32 %s44, 1
    %p48 = scmp.eq.s32.totalorder %s10, 1
    %p49 = scmp.ne.s32.totalorder %s44, %s46
    %p50 = scmp.eq.s32.totalorder %s10, 0
    %p51 = por %p49, %p50
    %p52 = scmp.ne.s32.totalorder %s44, %s46
    %p53 = scmp.eq.s32.totalorder %s15, 1
    %p54 = por %p52, %p53
    %p55 = scmp.ne.s32.totalorder %s46, %s47
    %p56 = scmp.eq.s32.totalorder %s15, 0
    %p57 = por %p55, %p56
    %p58 = scmp.ne.s32.totalorder %s46, %s47
    %p59 = scmp.eq.s32.totalorder %s16, 1
    %p60 = por %p58, %p59
    %p62 = scmp.ne.s32.totalorder %s47, %s61
    %p63 = scmp.eq.s32.totalorder %s16, 0
    %p64 = por %p62, %p63
    %s66 = sadd.s32 %s65, 1
    %p69 = scmp.eq.s32.totalorder %s10, 1
    %p70 = scmp.ne.s32.totalorder %s65, %s67
    %p71 = scmp.eq.s32.totalorder %s10, 0
    %p72 = por %p70, %p71
    %p73 = scmp.ne.s32.totalorder %s65, %s67
    %p74 = scmp.eq.s32.totalorder %s15, 1
    %p75 = por %p73, %p74
    %p76 = scmp.ne.s32.totalorder %s67, %s68
    %p77 = scmp.eq.s32.totalorder %s15, 0
    %p78 = por %p76, %p77
    %p79 = scmp.ne.s32.totalorder %s67, %s68
    %p80 = scmp.eq.s32.totalorder %s16, 1
    %p81 = por %p79, %p80
    %p83 = scmp.ne.s32.totalorder %s68, %s82
    %p84 = scmp.eq.s32.totalorder %s16, 0
    %p85 = por %p83, %p84
    %s87 = sadd.s32 %s86, 1
    %p90 = scmp.eq.s32.totalorder %s10, 1
    %p91 = scmp.ne.s32.totalorder %s86, %s88
    %p92 = scmp.eq.s32.totalorder %s10, 0
    %p93 = por %p91, %p92
    %p94 = scmp.ne.s32.totalorder %s86, %s88
    %p95 = scmp.eq.s32.totalorder %s15, 1
    %p96 = por %p94, %p95
    %p97 = scmp.ne.s32.totalorder %s88, %s89
    %p98 = scmp.eq.s32.totalorder %s15, 0
    %p99 = por %p97, %p98
    %p100 = scmp.ne.s32.totalorder %s88, %s89
    %p101 = scmp.eq.s32.totalorder %s16, 1
    %p102 = por %p100, %p101
    %p104 = scmp.ne.s32.totalorder %s89, %s103
    %p105 = scmp.eq.s32.totalorder %s16, 0
    %p106 = por %p104, %p105
    %s107 = ssub.s32 %s10, %s17
    %p108 = scmp.eq.s32.totalorder %s107, 0
    %s110 = sadd.s32 %s109, 1
    %s111 = scalar_select %p108, %s109, %s110
    %p114 = pneg %p108
    %p115 = scmp.eq.s32.totalorder %s10, 1
    %p116 = por %p114, %p115
    %p117 = scmp.ne.s32.totalorder %s109, %s112
    %p118 = scmp.eq.s32.totalorder %s10, 0
    %p119 = por %p117, %p118
    %p120 = scmp.ne.s32.totalorder %s109, %s112
    %p121 = scmp.eq.s32.totalorder %s15, 1
    %p122 = por %p120, %p121
    %p123 = scmp.ne.s32.totalorder %s112, %s113
    %p124 = scmp.eq.s32.totalorder %s15, 0
    %p125 = por %p123, %p124
    %p126 = scmp.ne.s32.totalorder %s112, %s113
    %p127 = scmp.eq.s32.totalorder %s16, 1
    %p128 = por %p126, %p127
    %p130 = scmp.ne.s32.totalorder %s113, %s129
    %p131 = scmp.eq.s32.totalorder %s16, 0
    %p132 = por %p130, %p131
    %p133 = scmp.le.s32.totalorder 1, %s10
    %p134 = scmp.lt.s32.totalorder %s10, 3
    %p135 = pnand %p133, %p134
    %p136 = pneg %p135
    // Predicated region
    $region9: #{icm_forward.1} parent=5 // pred_check
      _
    $region10: #{icm_forward.1} parent=5 // pred_check_branch
      %138 = sbr.rel (%p135) target = $region12
    $region11: #{icm_forward.1} parent=5 // pred_region
      %s139 = ssub.s32 %s10, 1
      // Predicated region
      $region13: #{icm_forward.1} parent=11 // pred_check
        %p140 = pneg %p57
      $region14: #{icm_forward.1} parent=11 // pred_check_branch
        %142 = sbr.rel (%p140) target = $region16
      $region15: #{icm_forward.1} parent=11 // pred_region
        _
      $region16: #{icm_forward.1} parent=11 // pred_fallthru
        _
      // Predicated region
      $region17: #{icm_forward.1} parent=11 // pred_check
        %p143 = pneg %p78
      $region18: #{icm_forward.1} parent=11 // pred_check_branch
        %145 = sbr.rel (%p143) target = $region20
      $region19: #{icm_forward.1} parent=11 // pred_region
        _
      $region20: #{icm_forward.1} parent=11 // pred_fallthru
        _
      // Predicated region
      $region21: #{icm_forward.1} parent=11 // pred_check
        %p146 = pneg %p99
      $region22: #{icm_forward.1} parent=11 // pred_check_branch
        %148 = sbr.rel (%p146) target = $region24
      $region23: #{icm_forward.1} parent=11 // pred_region
        _
      $region24: #{icm_forward.1} parent=11 // pred_fallthru
        _
    $region12: #{icm_forward.1} parent=5 // pred_fallthru
      _
    %p149 = scmp.lt.s32.totalorder %s10, 2
    // Predicated region
    $region25: #{icm_forward.1} parent=5 // pred_check
      %p150 = pneg %p149
    $region26: #{icm_forward.1} parent=5 // pred_check_branch
      %152 = sbr.rel (%p150) target = $region28
    $region27: #{icm_forward.1} parent=5 // pred_region
      // Predicated region
      $region29: #{icm_forward.1} parent=27 // pred_check
        %p153 = pneg %p30
      $region30: #{icm_forward.1} parent=27 // pred_check_branch
        %155 = sbr.rel (%p153) target = $region32
      $region31: #{icm_forward.1} parent=27 // pred_region
        %s156 = smul.u32 16, %s10
        %p157 = scmp.lt.s32.totalorder %s156, 31
        %s158 = scalar_select %p157, %s156, 31
        %s159 = smul.addr %s158, 2
        %s160 = smul.addr %s159, 8
        %s161 = scalar_lea.vmem %s0, %s160
        %s162 = smul.u32 16, %s10
      $region32: #{icm_forward.1} parent=27 // pred_fallthru
        _
    $region28: #{icm_forward.1} parent=5 // pred_fallthru
      _
    %p163 = scmp.le.s32.totalorder 1, %s10
    %p164 = scmp.lt.s32.totalorder %s10, 3
    %p165 = pnand %p163, %p164
    %p166 = pneg %p165
    // Predicated region
    $region33: #{icm_forward.1} parent=5 // pred_check
      _
    $region34: #{icm_forward.1} parent=5 // pred_check_branch
      %168 = sbr.rel (%p165) target = $region36
    $region35: #{icm_forward.1} parent=5 // pred_region
      %s169 = ssub.s32 %s10, 1
      %s170 = smul.u32 16, %s15
      %p171 = scmp.lt.s32.totalorder %s170, 31
      %s172 = scalar_select %p171, %s170, 31
      %s173 = smul.addr %s172, 2
      %s174 = smul.addr %s173, 8
      %s175 = scalar_lea.vmem %s0, %s174
      %p176 = pneg %p36
      %p177 = pneg %p33
      %p178 = pneg %p57
      %p179 = pneg %p54
      %p180 = pneg %p78
      %p181 = pneg %p75
      %p182 = pneg %p99
      %p183 = pneg %p96
      %p184 = pneg %p125
      %p185 = pneg %p122
      %p186 = scmp.lt.s32.totalorder %s15, 1
      %s187 = scalar_select %p186, %s15, 1
      %s188 = smul.addr %s187, 8
      %s189 = scalar_lea.vmem %s4, %s188
      %s190 = smul.u32 16, %s15
      %p191 = scmp.lt.s32.totalorder %s190, 31
      %s192 = scalar_select %p191, %s190, 31
      %s193 = smul.addr %s192, 2
      %s194 = smul.addr %s193, 8
      %s195 = scalar_lea.vmem %s0, %s194
      %s196 = smul.u32 16, %s15
      %p197 = scmp.lt.s32.totalorder %s15, 1
      %s198 = scalar_select %p197, %s15, 1
      %s199 = smul.addr %s198, 8
      %s200 = scalar_lea.vmem %s4, %s199
      %v202 = vld [vmem:[%s195] sm:$0xff]
      %v203 = vld [vmem:[%s195 + $0x8] sm:$0xff]
      %v204 = vld [vmem:[%s195 + $0x10] sm:$0xff]
      %v205 = vld [vmem:[%s195 + $0x18] sm:$0xff]
      %v206 = vld [vmem:[%s195 + $0x20] sm:$0xff]
      %v207 = vld [vmem:[%s195 + $0x28] sm:$0xff]
      %v208 = vld [vmem:[%s195 + $0x30] sm:$0xff]
      %v209 = vld [vmem:[%s195 + $0x38] sm:$0xff]
      %v210 = vld [vmem:[%s195 + $0x40] sm:$0xff]
      %v211 = vld [vmem:[%s195 + $0x48] sm:$0xff]
      %v212 = vld [vmem:[%s195 + $0x50] sm:$0xff]
      %v213 = vld [vmem:[%s195 + $0x58] sm:$0xff]
      %v214 = vld [vmem:[%s195 + $0x60] sm:$0xff]
      %v215 = vld [vmem:[%s195 + $0x68] sm:$0xff]
      %v216 = vld [vmem:[%s195 + $0x70] sm:$0xff]
      %v217 = vld [vmem:[%s195 + $0x78] sm:$0xff]
      %v218 = vld [vmem:[%s195 + $0x80] sm:$0xff]
      %v219 = vld [vmem:[%s195 + $0x88] sm:$0xff]
      %v220 = vld [vmem:[%s195 + $0x90] sm:$0xff]
      %v221 = vld [vmem:[%s195 + $0x98] sm:$0xff]
      %v222 = vld [vmem:[%s195 + $0xa0] sm:$0xff]
      %v223 = vld [vmem:[%s195 + $0xa8] sm:$0xff]
      %v224 = vld [vmem:[%s195 + $0xb0] sm:$0xff]
      %v225 = vld [vmem:[%s195 + $0xb8] sm:$0xff]
      %v226 = vld [vmem:[%s195 + $0xc0] sm:$0xff]
      %v227 = vld [vmem:[%s195 + $0xc8] sm:$0xff]
      %v228 = vld [vmem:[%s195 + $0xd0] sm:$0xff]
      %v229 = vld [vmem:[%s195 + $0xd8] sm:$0xff]
      %v230 = vld [vmem:[%s195 + $0xe0] sm:$0xff]
      %v231 = vld [vmem:[%s195 + $0xe8] sm:$0xff]
      %v232 = vld [vmem:[%s195 + $0xf0] sm:$0xff]
      %v233 = vld [vmem:[%s195 + $0xf8] sm:$0xff]
      %v234 = vpack.c.bf16 %v204, %v202
      %v235 = vpack.c.bf16 %v205, %v203
      %v236 = vpack.c.bf16 %v208, %v206
      %v237 = vpack.c.bf16 %v209, %v207
      %v238 = vpack.c.bf16 %v212, %v210
      %v239 = vpack.c.bf16 %v213, %v211
      %v240 = vpack.c.bf16 %v216, %v214
      %v241 = vpack.c.bf16 %v217, %v215
      %v242 = vpack.c.bf16 %v220, %v218
      %v243 = vpack.c.bf16 %v221, %v219
      %v244 = vpack.c.bf16 %v224, %v222
      %v245 = vpack.c.bf16 %v225, %v223
      %v246 = vpack.c.bf16 %v228, %v226
      %v247 = vpack.c.bf16 %v229, %v227
      %v248 = vpack.c.bf16 %v232, %v230
      %v249 = vpack.c.bf16 %v233, %v231
      %v250 = vld [vmem:[%s1] sm:$0xf]
      %v251 = vld [vmem:[%s1 + $0x4] sm:$0xf]
      %v252 = vld [vmem:[%s1 + $0x8] sm:$0xf]
      %v253 = vld [vmem:[%s1 + $0xc] sm:$0xf]
      %v254 = vld [vmem:[%s1 + $0x10] sm:$0xf]
      %v255 = vld [vmem:[%s1 + $0x14] sm:$0xf]
      %v256 = vld [vmem:[%s1 + $0x18] sm:$0xf]
      %v257 = vld [vmem:[%s1 + $0x1c] sm:$0xf]
      %v258 = vld [vmem:[%s1 + $0x20] sm:$0xf]
      %v259 = vld [vmem:[%s1 + $0x24] sm:$0xf]
      %v260 = vld [vmem:[%s1 + $0x28] sm:$0xf]
      %v261 = vld [vmem:[%s1 + $0x2c] sm:$0xf]
      %v262 = vld [vmem:[%s1 + $0x30] sm:$0xf]
      %v263 = vld [vmem:[%s1 + $0x34] sm:$0xf]
      %v264 = vld [vmem:[%s1 + $0x38] sm:$0xf]
      %v265 = vld [vmem:[%s1 + $0x3c] sm:$0xf]
      %v266 = vld [vmem:[%s1 + $0x40] sm:$0xf]
      %v267 = vld [vmem:[%s1 + $0x44] sm:$0xf]
      %v268 = vld [vmem:[%s1 + $0x48] sm:$0x1]
      %v288 = vunpack.c.l.b16 %v250
      %v289 = vunpack.c.l.b16 %v251
      %v290 = vunpack.c.l.b16 %v252
      %v291 = vunpack.c.l.b16 %v253
      %v292 = vunpack.c.l.b16 %v254
      %v293 = vunpack.c.l.b16 %v255
      %v294 = vunpack.c.l.b16 %v256
      %v295 = vunpack.c.l.b16 %v257
      %v296 = vunpack.c.l.b16 %v258
      %v297 = vunpack.c.l.b16 %v259
      %v298 = vunpack.c.l.b16 %v260
      %v299 = vunpack.c.l.b16 %v261
      %v300 = vunpack.c.l.b16 %v262
      %v301 = vunpack.c.l.b16 %v263
      %v302 = vunpack.c.l.b16 %v264
      %v303 = vunpack.c.l.b16 %v265
      %v304 = vunpack.c.l.b16 %v266
      %v305 = vunpack.c.l.b16 %v267
      %v306 = vunpack.c.l.b16 %v268
      %v307 = vpack.c.b16 %v289, %v288
      %v308 = vpack.c.b16 %v291, %v290
      %v309 = vpack.c.b16 %v293, %v292
      %v310 = vpack.c.b16 %v295, %v294
      %v311 = vpack.c.b16 %v297, %v296
      %v312 = vpack.c.b16 %v299, %v298
      %v313 = vpack.c.b16 %v301, %v300
      %v314 = vpack.c.b16 %v303, %v302
      %v315 = vpack.c.b16 %v305, %v304
      %v316 = vpack.c.b16 %v306, %v306
      %vm326 = vcmask 138240
      %v328 = vsel %vm326, %v235, 0
      %v331 = vsel %vm326, %v237, 0
      %v334 = vsel %vm326, %v239, 0
      %v337 = vsel %vm326, %v241, 0
      %v340 = vsel %vm326, %v243, 0
      %v343 = vsel %vm326, %v245, 0
      %v346 = vsel %vm326, %v247, 0
      %v349 = vsel %vm326, %v249, 0
      %vm351 = vcmask 1040384
      %v352 = vsel 0, 4294967295, 65535
      %v353 = vsel %vm351, %v352, 0
      %v355 = vand.u32 %v316, %v353
      %357 = vmatprep.subr.bf16.mxu0 0
      %358 = vmatpush1.bf16.msra.mxu0 %v314
      %359 = vmatprep.subr.bf16.mxu0 0
      %360 = vmatpush1.bf16.msra.mxu0 %v313
      %361 = vmatprep.subr.bf16.mxu0 0
      %362 = vmatpush1.bf16.msra.mxu0 %v312
      %363 = vmatprep.subr.bf16.mxu0 0
      %364 = vmatpush1.bf16.msra.mxu0 %v311
      %365 = vmatprep.subr.bf16.mxu0 0
      %366 = vmatpush1.bf16.msra.mxu0 %v310
      %367 = vmatprep.subr.bf16.mxu0 0
      %368 = vmatpush1.bf16.msra.mxu0 %v309
      %369 = vmatprep.subr.bf16.mxu0 0
      %370 = vmatpush1.bf16.msra.mxu0 %v308
      %371 = vmatprep.subr.bf16.mxu0 0
      %372 = vmatpush1.bf16.msra.mxu0 %v307
      %373 = vmatprep.subr.bf16.mxu0 0
      %374 = vmatpush2.bf16.msra.mxu0 0
      %375 = vmatprep.subr.bf16.mxu0 0
      %376 = vmatpush2.bf16.msra.mxu0 0
      %377 = vmatprep.subr.bf16.mxu0 0
      %378 = vmatpush2.bf16.msra.mxu0 0
      %379 = vmatprep.subr.bf16.mxu0 0
      %380 = vmatpush2.bf16.msra.mxu0 0
      %381 = vmatprep.subr.bf16.mxu0 0
      %382 = vmatpush2.bf16.msra.mxu0 0
      %383 = vmatprep.subr.bf16.mxu0 0
      %384 = vmatpush2.bf16.msra.mxu0 0
      %385 = vmatprep.subr.bf16.mxu0 0
      %386 = vmatpush2.bf16.msra.mxu0 %v355
      %387 = vmatprep.subr.bf16.mxu0 0
      %388 = vmatpush2.bf16.msra.mxu0 %v315
      %389 = vmatprep.mubr.bf16.mxu0 %v328
      %390 = vmatmul.mubr.bf16.gmra.mxu0 %v234
      %v391 = vpop.f32.mrf.mxu0
      %v392 = vadd.f32 0.0, %v391
      %v393 = vpop.f32.mrf.mxu0
      %v394 = vpop.f32.mrf.mxu0
      %v395 = vadd.f32 0.0, %v394
      %v396 = vpop.f32.mrf.mxu0
      %397 = vmatprep.mubr.bf16.mxu0 %v331
      %398 = vmatmul.mubr.bf16.gmra.mxu0 %v236
      %v399 = vpop.f32.mrf.mxu0
      %v400 = vadd.f32 0.0, %v399
      %v401 = vpop.f32.mrf.mxu0
      %v402 = vpop.f32.mrf.mxu0
      %v403 = vadd.f32 0.0, %v402
      %v404 = vpop.f32.mrf.mxu0
      %405 = vmatprep.mubr.bf16.mxu0 %v334
      %406 = vmatmul.mubr.bf16.gmra.mxu0 %v238
      %v407 = vpop.f32.mrf.mxu0
      %v408 = vadd.f32 0.0, %v407
      %v409 = vpop.f32.mrf.mxu0
      %v410 = vpop.f32.mrf.mxu0
      %v411 = vadd.f32 0.0, %v410
      %v412 = vpop.f32.mrf.mxu0
      %413 = vmatprep.mubr.bf16.mxu0 %v337
      %414 = vmatmul.mubr.bf16.gmra.mxu0 %v240
      %v415 = vpop.f32.mrf.mxu0
      %v416 = vadd.f32 0.0, %v415
      %v417 = vpop.f32.mrf.mxu0
      %v418 = vpop.f32.mrf.mxu0
      %v419 = vadd.f32 0.0, %v418
      %v420 = vpop.f32.mrf.mxu0
      %421 = vmatprep.mubr.bf16.mxu0 %v340
      %422 = vmatmul.mubr.bf16.gmra.mxu0 %v242
      %v423 = vpop.f32.mrf.mxu0
      %v424 = vadd.f32 0.0, %v423
      %v425 = vpop.f32.mrf.mxu0
      %v426 = vpop.f32.mrf.mxu0
      %v427 = vadd.f32 0.0, %v426
      %v428 = vpop.f32.mrf.mxu0
      %429 = vmatprep.mubr.bf16.mxu0 %v343
      %430 = vmatmul.mubr.bf16.gmra.mxu0 %v244
      %v431 = vpop.f32.mrf.mxu0
      %v432 = vadd.f32 0.0, %v431
      %v433 = vpop.f32.mrf.mxu0
      %v434 = vpop.f32.mrf.mxu0
      %v435 = vadd.f32 0.0, %v434
      %v436 = vpop.f32.mrf.mxu0
      %437 = vmatprep.mubr.bf16.mxu0 %v346
      %438 = vmatmul.mubr.bf16.gmra.mxu0 %v246
      %v439 = vpop.f32.mrf.mxu0
      %v440 = vadd.f32 0.0, %v439
      %v441 = vpop.f32.mrf.mxu0
      %v442 = vpop.f32.mrf.mxu0
      %v443 = vadd.f32 0.0, %v442
      %v444 = vpop.f32.mrf.mxu0
      %445 = vmatprep.mubr.bf16.mxu0 %v349
      %446 = vmatmul.mubr.bf16.gmra.mxu0 %v248
      %v447 = vpop.f32.mrf.mxu0
      %v448 = vadd.f32 0.0, %v447
      %v449 = vpop.f32.mrf.mxu0
      %v450 = vpop.f32.mrf.mxu0
      %v451 = vadd.f32 0.0, %v450
      %v452 = vpop.f32.mrf.mxu0
      %453 = vdwg.mxu0
      %v454 = vand.u32 2147483647, %v392
      %vm455 = vcmp.le.f32.partialorder %v454, 0.7853982
      %vm456 = vcmp.lt.s32.totalorder %v392, 0
      %v457 = vand.u32 %v392, 2139095040
      %v458 = vshrl.u32 %v457, 23
      %v459 = vsub.s32 %v458, 127
      %v460 = vand.u32 2147483647, %v392
      %v461 = vand.u32 %v460, 8388607
      %v462 = vor.u32 %v461, 8388608
      %v463 = vsub.s32 0, %v462
      %v464 = vadd.s32 %v459, 1
      %vm465 = vcmp.gt.s32.totalorder %v464, 0
      %v466 = vsel %vm465, %v464, 0
      %v467 = vshrl.u32 %v466, 5
      %v468 = vand.u32 %v466, 31
      %v469 = vsub.s32 32, %v468
      %v470 = vshrl.u32 683565275, %v469
      %v471 = vshll.u32 683565275, %v468
      %v472 = vshrl.u32 2475754826, %v469
      %v473 = vor.u32 %v471, %v472
      %v474 = vshll.u32 2475754826, %v468
      %v475 = vshrl.u32 2131351028, %v469
      %v476 = vor.u32 %v474, %v475
      %v477 = vshll.u32 2131351028, %v468
      %v478 = vshrl.u32 2102212464, %v469
      %v479 = vor.u32 %v477, %v478
      %v480 = vshll.u32 2102212464, %v468
      %v481 = vshrl.u32 920167782, %v469
      %v482 = vor.u32 %v480, %v481
      %v483 = vshll.u32 920167782, %v468
      %v484 = vshrl.u32 1326507024, %v469
      %v485 = vor.u32 %v483, %v484
      %vm486 = vcmp.lt.s32.totalorder %v467, 1
      %vm487 = vcmp.lt.s32.totalorder %v467, 2
      %vm488 = vcmp.lt.s32.totalorder %v467, 3
      %vm489 = vcmp.lt.s32.totalorder %v467, 4
      %v490 = vsel %vm486, %v470, %v473
      %v491 = vsel %vm489, %v479, 2102212464
      %v492 = vsel %vm488, %v476, %v491
      %v493 = vsel %vm487, %v490, %v492
      %v494 = vsel %vm486, %v473, %v476
      %v495 = vsel %vm489, %v482, 920167782
      %v496 = vsel %vm488, %v479, %v495
      %v497 = vsel %vm487, %v494, %v496
      %v498 = vsel %vm486, %v476, %v479
      %v499 = vsel %vm489, %v485, 1326507024
      %v500 = vsel %vm488, %v482, %v499
      %v501 = vsel %vm487, %v498, %v500
      %v502 = vshll.u32 %v462, 8
      %v503 = vmul.u32.u64.compose %v502, %v501
      %v504 = vextract.low.u32 %v503
      %v505 = vextract.high.u32 %v503
      %v506 = vmul.u32.u64.compose %v502, %v497
      %v507 = vextract.low.u32 %v506
      %v508 = vextract.high.u32 %v506
      %v509 = vmul.u32 %v502, %v493
      %v510 = vadd.s32 %v505, %v507
      %vm511 = vc.u32 %v505, %v507
      %v512 = vadd.s32 %v508, 1
      %v513 = vsel %vm511, %v512, %v508
      %v514 = vadd.s32 %v509, %v513
      %v515 = vadd.s32 %v514, 536870912
      %v516 = vshrl.u32 %v515, 30
      %v517 = vshll.u32 %v516, 30
      %v518 = vsub.s32 %v514, %v517
      %vm519 = vcmp.lt.s32.totalorder %v518, 0
      %v520 = vsub.s32 0, %v518
      %v521 = vsel %vm519, %v520, %v518
      %v522 = vclz %v521
      %v523 = vsub.s32 %v522, 2
      %vm524 = vcmp.gt.s32.totalorder 0, %v523
      %v525 = vsel %vm524, 0, %v523
      %v526 = vsub.s32 32, %v525
      %v527 = vshll.u32 %v518, %v525
      %v528 = vshrl.u32 %v510, %v526
      %v529 = vor.u32 %v527, %v528
      %v530 = vsub.s32 4294967266, %v525
      %v531 = vadd.s32 %v530, 127
      %v532 = vshll.u32 %v531, 23
      %v533 = vor.u32 4788187, %v532
      %v534 = vand.u32 2147483647, %v533
      %v536 = vcvt.s32.f32 %v529
      %v537 = vmul.f32 %v536, %v534
      %v538 = vxor.u32 %v537, 2147483648
      %v539 = vsel %vm456, %v538, %v537
      %v540 = vsub.s32 4, %v516
      %v541 = vsel %vm456, %v540, %v516
      %v542 = vsel %vm455, %v392, %v539
      %v543 = vsel %vm455, 0, %v541
      %v544 = vcosq.f32.pop %v542
      %v545 = vsinq.f32.pop %v542
      %vm546 = vweird.f32 %v392
      %v547 = vand.u32 %v543, 3
      %vm548 = vcmp.lt.s32.totalorder %v547, 2
      %vm549 = vcmp.eq.s32.totalorder %v547, 0
      %v550 = vxor.u32 %v545, 2147483648
      %v551 = vsel %vm549, %v544, %v550
      %vm552 = vcmp.eq.s32.totalorder %v547, 2
      %v553 = vxor.u32 %v544, 2147483648
      %v554 = vsel %vm552, %v553, %v545
      %v555 = vsel %vm548, %v551, %v554
      %v556 = vsel %vm546, nan, %v555
      %v557 = vand.u32 2147483647, %v395
      %vm558 = vcmp.le.f32.partialorder %v557, 0.7853982
      %vm559 = vcmp.lt.s32.totalorder %v395, 0
      %v560 = vand.u32 %v395, 2139095040
      %v561 = vshrl.u32 %v560, 23
      %v562 = vsub.s32 %v561, 127
      %v563 = vand.u32 2147483647, %v395
      %v564 = vand.u32 %v563, 8388607
      %v565 = vor.u32 %v564, 8388608
      %v566 = vsub.s32 0, %v565
      %v567 = vadd.s32 %v562, 1
      %vm568 = vcmp.gt.s32.totalorder %v567, 0
      %v569 = vsel %vm568, %v567, 0
      %v570 = vshrl.u32 %v569, 5
      %v571 = vand.u32 %v569, 31
      %v572 = vsub.s32 32, %v571
      %v573 = vshrl.u32 683565275, %v572
      %v574 = vshll.u32 683565275, %v571
      %v575 = vshrl.u32 2475754826, %v572
      %v576 = vor.u32 %v574, %v575
      %v577 = vshll.u32 2475754826, %v571
      %v578 = vshrl.u32 2131351028, %v572
      %v579 = vor.u32 %v577, %v578
      %v580 = vshll.u32 2131351028, %v571
      %v581 = vshrl.u32 2102212464, %v572
      %v582 = vor.u32 %v580, %v581
      %v583 = vshll.u32 2102212464, %v571
      %v584 = vshrl.u32 920167782, %v572
      %v585 = vor.u32 %v583, %v584
      %v586 = vshll.u32 920167782, %v571
      %v587 = vshrl.u32 1326507024, %v572
      %v588 = vor.u32 %v586, %v587
      %vm589 = vcmp.lt.s32.totalorder %v570, 1
      %vm590 = vcmp.lt.s32.totalorder %v570, 2
      %vm591 = vcmp.lt.s32.totalorder %v570, 3
      %vm592 = vcmp.lt.s32.totalorder %v570, 4
      %v593 = vsel %vm589, %v573, %v576
      %v594 = vsel %vm592, %v582, 2102212464
      %v595 = vsel %vm591, %v579, %v594
      %v596 = vsel %vm590, %v593, %v595
      %v597 = vsel %vm589, %v576, %v579
      %v598 = vsel %vm592, %v585, 920167782
      %v599 = vsel %vm591, %v582, %v598
      %v600 = vsel %vm590, %v597, %v599
      %v601 = vsel %vm589, %v579, %v582
      %v602 = vsel %vm592, %v588, 1326507024
      %v603 = vsel %vm591, %v585, %v602
      %v604 = vsel %vm590, %v601, %v603
      %v605 = vshll.u32 %v565, 8
      %v606 = vmul.u32.u64.compose %v605, %v604
      %v607 = vextract.low.u32 %v606
      %v608 = vextract.high.u32 %v606
      %v609 = vmul.u32.u64.compose %v605, %v600
      %v610 = vextract.low.u32 %v609
      %v611 = vextract.high.u32 %v609
      %v612 = vmul.u32 %v605, %v596
      %v613 = vadd.s32 %v608, %v610
      %vm614 = vc.u32 %v608, %v610
      %v615 = vadd.s32 %v611, 1
      %v616 = vsel %vm614, %v615, %v611
      %v617 = vadd.s32 %v612, %v616
      %v618 = vadd.s32 %v617, 536870912
      %v619 = vshrl.u32 %v618, 30
      %v620 = vshll.u32 %v619, 30
      %v621 = vsub.s32 %v617, %v620
      %vm622 = vcmp.lt.s32.totalorder %v621, 0
      %v623 = vsub.s32 0, %v621
      %v624 = vsel %vm622, %v623, %v621
      %v625 = vclz %v624
      %v626 = vsub.s32 %v625, 2
      %vm627 = vcmp.gt.s32.totalorder 0, %v626
      %v628 = vsel %vm627, 0, %v626
      %v629 = vsub.s32 32, %v628
      %v630 = vshll.u32 %v621, %v628
      %v631 = vshrl.u32 %v613, %v629
      %v632 = vor.u32 %v630, %v631
      %v633 = vsub.s32 4294967266, %v628
      %v634 = vadd.s32 %v633, 127
      %v635 = vshll.u32 %v634, 23
      %v636 = vor.u32 4788187, %v635
      %v637 = vand.u32 2147483647, %v636
      %v639 = vcvt.s32.f32 %v632
      %v640 = vmul.f32 %v639, %v637
      %v641 = vxor.u32 %v640, 2147483648
      %v642 = vsel %vm559, %v641, %v640
      %v643 = vsub.s32 4, %v619
      %v644 = vsel %vm559, %v643, %v619
      %v645 = vsel %vm558, %v395, %v642
      %v646 = vsel %vm558, 0, %v644
      %v647 = vcosq.f32.pop %v645
      %v648 = vsinq.f32.pop %v645
      %vm649 = vweird.f32 %v395
      %v650 = vand.u32 %v646, 3
      %vm651 = vcmp.lt.s32.totalorder %v650, 2
      %vm652 = vcmp.eq.s32.totalorder %v650, 0
      %v653 = vxor.u32 %v648, 2147483648
      %v654 = vsel %vm652, %v647, %v653
      %vm655 = vcmp.eq.s32.totalorder %v650, 2
      %v656 = vxor.u32 %v647, 2147483648
      %v657 = vsel %vm655, %v656, %v648
      %v658 = vsel %vm651, %v654, %v657
      %v659 = vsel %vm649, nan, %v658
      %v660 = vand.u32 2147483647, %v400
      %vm661 = vcmp.le.f32.partialorder %v660, 0.7853982
      %vm662 = vcmp.lt.s32.totalorder %v400, 0
      %v663 = vand.u32 %v400, 2139095040
      %v664 = vshrl.u32 %v663, 23
      %v665 = vsub.s32 %v664, 127
      %v666 = vand.u32 2147483647, %v400
      %v667 = vand.u32 %v666, 8388607
      %v668 = vor.u32 %v667, 8388608
      %v669 = vsub.s32 0, %v668
      %v670 = vadd.s32 %v665, 1
      %vm671 = vcmp.gt.s32.totalorder %v670, 0
      %v672 = vsel %vm671, %v670, 0
      %v673 = vshrl.u32 %v672, 5
      %v674 = vand.u32 %v672, 31
      %v675 = vsub.s32 32, %v674
      %v676 = vshrl.u32 683565275, %v675
      %v677 = vshll.u32 683565275, %v674
      %v678 = vshrl.u32 2475754826, %v675
      %v679 = vor.u32 %v677, %v678
      %v680 = vshll.u32 2475754826, %v674
      %v681 = vshrl.u32 2131351028, %v675
      %v682 = vor.u32 %v680, %v681
      %v683 = vshll.u32 2131351028, %v674
      %v684 = vshrl.u32 2102212464, %v675
      %v685 = vor.u32 %v683, %v684
      %v686 = vshll.u32 2102212464, %v674
      %v687 = vshrl.u32 920167782, %v675
      %v688 = vor.u32 %v686, %v687
      %v689 = vshll.u32 920167782, %v674
      %v690 = vshrl.u32 1326507024, %v675
      %v691 = vor.u32 %v689, %v690
      %vm692 = vcmp.lt.s32.totalorder %v673, 1
      %vm693 = vcmp.lt.s32.totalorder %v673, 2
      %vm694 = vcmp.lt.s32.totalorder %v673, 3
      %vm695 = vcmp.lt.s32.totalorder %v673, 4
      %v696 = vsel %vm692, %v676, %v679
      %v697 = vsel %vm695, %v685, 2102212464
      %v698 = vsel %vm694, %v682, %v697
      %v699 = vsel %vm693, %v696, %v698
      %v700 = vsel %vm692, %v679, %v682
      %v701 = vsel %vm695, %v688, 920167782
      %v702 = vsel %vm694, %v685, %v701
      %v703 = vsel %vm693, %v700, %v702
      %v704 = vsel %vm692, %v682, %v685
      %v705 = vsel %vm695, %v691, 1326507024
      %v706 = vsel %vm694, %v688, %v705
      %v707 = vsel %vm693, %v704, %v706
      %v708 = vshll.u32 %v668, 8
      %v709 = vmul.u32.u64.compose %v708, %v707
      %v710 = vextract.low.u32 %v709
      %v711 = vextract.high.u32 %v709
      %v712 = vmul.u32.u64.compose %v708, %v703
      %v713 = vextract.low.u32 %v712
      %v714 = vextract.high.u32 %v712
      %v715 = vmul.u32 %v708, %v699
      %v716 = vadd.s32 %v711, %v713
      %vm717 = vc.u32 %v711, %v713
      %v718 = vadd.s32 %v714, 1
      %v719 = vsel %vm717, %v718, %v714
      %v720 = vadd.s32 %v715, %v719
      %v721 = vadd.s32 %v720, 536870912
      %v722 = vshrl.u32 %v721, 30
      %v723 = vshll.u32 %v722, 30
      %v724 = vsub.s32 %v720, %v723
      %vm725 = vcmp.lt.s32.totalorder %v724, 0
      %v726 = vsub.s32 0, %v724
      %v727 = vsel %vm725, %v726, %v724
      %v728 = vclz %v727
      %v729 = vsub.s32 %v728, 2
      %vm730 = vcmp.gt.s32.totalorder 0, %v729
      %v731 = vsel %vm730, 0, %v729
      %v732 = vsub.s32 32, %v731
      %v733 = vshll.u32 %v724, %v731
      %v734 = vshrl.u32 %v716, %v732
      %v735 = vor.u32 %v733, %v734
      %v736 = vsub.s32 4294967266, %v731
      %v737 = vadd.s32 %v736, 127
      %v738 = vshll.u32 %v737, 23
      %v739 = vor.u32 4788187, %v738
      %v740 = vand.u32 2147483647, %v739
      %v742 = vcvt.s32.f32 %v735
      %v743 = vmul.f32 %v742, %v740
      %v744 = vxor.u32 %v743, 2147483648
      %v745 = vsel %vm662, %v744, %v743
      %v746 = vsub.s32 4, %v722
      %v747 = vsel %vm662, %v746, %v722
      %v748 = vsel %vm661, %v400, %v745
      %v749 = vsel %vm661, 0, %v747
      %v750 = vcosq.f32.pop %v748
      %v751 = vsinq.f32.pop %v748
      %vm752 = vweird.f32 %v400
      %v753 = vand.u32 %v749, 3
      %vm754 = vcmp.lt.s32.totalorder %v753, 2
      %vm755 = vcmp.eq.s32.totalorder %v753, 0
      %v756 = vxor.u32 %v751, 2147483648
      %v757 = vsel %vm755, %v750, %v756
      %vm758 = vcmp.eq.s32.totalorder %v753, 2
      %v759 = vxor.u32 %v750, 2147483648
      %v760 = vsel %vm758, %v759, %v751
      %v761 = vsel %vm754, %v757, %v760
      %v762 = vsel %vm752, nan, %v761
      %v763 = vand.u32 2147483647, %v403
      %vm764 = vcmp.le.f32.partialorder %v763, 0.7853982
      %vm765 = vcmp.lt.s32.totalorder %v403, 0
      %v766 = vand.u32 %v403, 2139095040
      %v767 = vshrl.u32 %v766, 23
      %v768 = vsub.s32 %v767, 127
      %v769 = vand.u32 2147483647, %v403
      %v770 = vand.u32 %v769, 8388607
      %v771 = vor.u32 %v770, 8388608
      %v772 = vsub.s32 0, %v771
      %v773 = vadd.s32 %v768, 1
      %vm774 = vcmp.gt.s32.totalorder %v773, 0
      %v775 = vsel %vm774, %v773, 0
      %v776 = vshrl.u32 %v775, 5
      %v777 = vand.u32 %v775, 31
      %v778 = vsub.s32 32, %v777
      %v779 = vshrl.u32 683565275, %v778
      %v780 = vshll.u32 683565275, %v777
      %v781 = vshrl.u32 2475754826, %v778
      %v782 = vor.u32 %v780, %v781
      %v783 = vshll.u32 2475754826, %v777
      %v784 = vshrl.u32 2131351028, %v778
      %v785 = vor.u32 %v783, %v784
      %v786 = vshll.u32 2131351028, %v777
      %v787 = vshrl.u32 2102212464, %v778
      %v788 = vor.u32 %v786, %v787
      %v789 = vshll.u32 2102212464, %v777
      %v790 = vshrl.u32 920167782, %v778
      %v791 = vor.u32 %v789, %v790
      %v792 = vshll.u32 920167782, %v777
      %v793 = vshrl.u32 1326507024, %v778
      %v794 = vor.u32 %v792, %v793
      %vm795 = vcmp.lt.s32.totalorder %v776, 1
      %vm796 = vcmp.lt.s32.totalorder %v776, 2
      %vm797 = vcmp.lt.s32.totalorder %v776, 3
      %vm798 = vcmp.lt.s32.totalorder %v776, 4
      %v799 = vsel %vm795, %v779, %v782
      %v800 = vsel %vm798, %v788, 2102212464
      %v801 = vsel %vm797, %v785, %v800
      %v802 = vsel %vm796, %v799, %v801
      %v803 = vsel %vm795, %v782, %v785
      %v804 = vsel %vm798, %v791, 920167782
      %v805 = vsel %vm797, %v788, %v804
      %v806 = vsel %vm796, %v803, %v805
      %v807 = vsel %vm795, %v785, %v788
      %v808 = vsel %vm798, %v794, 1326507024
      %v809 = vsel %vm797, %v791, %v808
      %v810 = vsel %vm796, %v807, %v809
      %v811 = vshll.u32 %v771, 8
      %v812 = vmul.u32.u64.compose %v811, %v810
      %v813 = vextract.low.u32 %v812
      %v814 = vextract.high.u32 %v812
      %v815 = vmul.u32.u64.compose %v811, %v806
      %v816 = vextract.low.u32 %v815
      %v817 = vextract.high.u32 %v815
      %v818 = vmul.u32 %v811, %v802
      %v819 = vadd.s32 %v814, %v816
      %vm820 = vc.u32 %v814, %v816
      %v821 = vadd.s32 %v817, 1
      %v822 = vsel %vm820, %v821, %v817
      %v823 = vadd.s32 %v818, %v822
      %v824 = vadd.s32 %v823, 536870912
      %v825 = vshrl.u32 %v824, 30
      %v826 = vshll.u32 %v825, 30
      %v827 = vsub.s32 %v823, %v826
      %vm828 = vcmp.lt.s32.totalorder %v827, 0
      %v829 = vsub.s32 0, %v827
      %v830 = vsel %vm828, %v829, %v827
      %v831 = vclz %v830
      %v832 = vsub.s32 %v831, 2
      %vm833 = vcmp.gt.s32.totalorder 0, %v832
      %v834 = vsel %vm833, 0, %v832
      %v835 = vsub.s32 32, %v834
      %v836 = vshll.u32 %v827, %v834
      %v837 = vshrl.u32 %v819, %v835
      %v838 = vor.u32 %v836, %v837
      %v839 = vsub.s32 4294967266, %v834
      %v840 = vadd.s32 %v839, 127
      %v841 = vshll.u32 %v840, 23
      %v842 = vor.u32 4788187, %v841
      %v843 = vand.u32 2147483647, %v842
      %v845 = vcvt.s32.f32 %v838
      %v846 = vmul.f32 %v845, %v843
      %v847 = vxor.u32 %v846, 2147483648
      %v848 = vsel %vm765, %v847, %v846
      %v849 = vsub.s32 4, %v825
      %v850 = vsel %vm765, %v849, %v825
      %v851 = vsel %vm764, %v403, %v848
      %v852 = vsel %vm764, 0, %v850
      %v853 = vcosq.f32.pop %v851
      %v854 = vsinq.f32.pop %v851
      %vm855 = vweird.f32 %v403
      %v856 = vand.u32 %v852, 3
      %vm857 = vcmp.lt.s32.totalorder %v856, 2
      %vm858 = vcmp.eq.s32.totalorder %v856, 0
      %v859 = vxor.u32 %v854, 2147483648
      %v860 = vsel %vm858, %v853, %v859
      %vm861 = vcmp.eq.s32.totalorder %v856, 2
      %v862 = vxor.u32 %v853, 2147483648
      %v863 = vsel %vm861, %v862, %v854
      %v864 = vsel %vm857, %v860, %v863
      %v865 = vsel %vm855, nan, %v864
      %v866 = vand.u32 2147483647, %v408
      %vm867 = vcmp.le.f32.partialorder %v866, 0.7853982
      %vm868 = vcmp.lt.s32.totalorder %v408, 0
      %v869 = vand.u32 %v408, 2139095040
      %v870 = vshrl.u32 %v869, 23
      %v871 = vsub.s32 %v870, 127
      %v872 = vand.u32 2147483647, %v408
      %v873 = vand.u32 %v872, 8388607
      %v874 = vor.u32 %v873, 8388608
      %v875 = vsub.s32 0, %v874
      %v876 = vadd.s32 %v871, 1
      %vm877 = vcmp.gt.s32.totalorder %v876, 0
      %v878 = vsel %vm877, %v876, 0
      %v879 = vshrl.u32 %v878, 5
      %v880 = vand.u32 %v878, 31
      %v881 = vsub.s32 32, %v880
      %v882 = vshrl.u32 683565275, %v881
      %v883 = vshll.u32 683565275, %v880
      %v884 = vshrl.u32 2475754826, %v881
      %v885 = vor.u32 %v883, %v884
      %v886 = vshll.u32 2475754826, %v880
      %v887 = vshrl.u32 2131351028, %v881
      %v888 = vor.u32 %v886, %v887
      %v889 = vshll.u32 2131351028, %v880
      %v890 = vshrl.u32 2102212464, %v881
      %v891 = vor.u32 %v889, %v890
      %v892 = vshll.u32 2102212464, %v880
      %v893 = vshrl.u32 920167782, %v881
      %v894 = vor.u32 %v892, %v893
      %v895 = vshll.u32 920167782, %v880
      %v896 = vshrl.u32 1326507024, %v881
      %v897 = vor.u32 %v895, %v896
      %vm898 = vcmp.lt.s32.totalorder %v879, 1
      %vm899 = vcmp.lt.s32.totalorder %v879, 2
      %vm900 = vcmp.lt.s32.totalorder %v879, 3
      %vm901 = vcmp.lt.s32.totalorder %v879, 4
      %v902 = vsel %vm898, %v882, %v885
      %v903 = vsel %vm901, %v891, 2102212464
      %v904 = vsel %vm900, %v888, %v903
      %v905 = vsel %vm899, %v902, %v904
      %v906 = vsel %vm898, %v885, %v888
      %v907 = vsel %vm901, %v894, 920167782
      %v908 = vsel %vm900, %v891, %v907
      %v909 = vsel %vm899, %v906, %v908
      %v910 = vsel %vm898, %v888, %v891
      %v911 = vsel %vm901, %v897, 1326507024
      %v912 = vsel %vm900, %v894, %v911
      %v913 = vsel %vm899, %v910, %v912
      %v914 = vshll.u32 %v874, 8
      %v915 = vmul.u32.u64.compose %v914, %v913
      %v916 = vextract.low.u32 %v915
      %v917 = vextract.high.u32 %v915
      %v918 = vmul.u32.u64.compose %v914, %v909
      %v919 = vextract.low.u32 %v918
      %v920 = vextract.high.u32 %v918
      %v921 = vmul.u32 %v914, %v905
      %v922 = vadd.s32 %v917, %v919
      %vm923 = vc.u32 %v917, %v919
      %v924 = vadd.s32 %v920, 1
      %v925 = vsel %vm923, %v924, %v920
      %v926 = vadd.s32 %v921, %v925
      %v927 = vadd.s32 %v926, 536870912
      %v928 = vshrl.u32 %v927, 30
      %v929 = vshll.u32 %v928, 30
      %v930 = vsub.s32 %v926, %v929
      %vm931 = vcmp.lt.s32.totalorder %v930, 0
      %v932 = vsub.s32 0, %v930
      %v933 = vsel %vm931, %v932, %v930
      %v934 = vclz %v933
      %v935 = vsub.s32 %v934, 2
      %vm936 = vcmp.gt.s32.totalorder 0, %v935
      %v937 = vsel %vm936, 0, %v935
      %v938 = vsub.s32 32, %v937
      %v939 = vshll.u32 %v930, %v937
      %v940 = vshrl.u32 %v922, %v938
      %v941 = vor.u32 %v939, %v940
      %v942 = vsub.s32 4294967266, %v937
      %v943 = vadd.s32 %v942, 127
      %v944 = vshll.u32 %v943, 23
      %v945 = vor.u32 4788187, %v944
      %v946 = vand.u32 2147483647, %v945
      %v948 = vcvt.s32.f32 %v941
      %v949 = vmul.f32 %v948, %v946
      %v950 = vxor.u32 %v949, 2147483648
      %v951 = vsel %vm868, %v950, %v949
      %v952 = vsub.s32 4, %v928
      %v953 = vsel %vm868, %v952, %v928
      %v954 = vsel %vm867, %v408, %v951
      %v955 = vsel %vm867, 0, %v953
      %v956 = vcosq.f32.pop %v954
      %v957 = vsinq.f32.pop %v954
      %vm958 = vweird.f32 %v408
      %v959 = vand.u32 %v955, 3
      %vm960 = vcmp.lt.s32.totalorder %v959, 2
      %vm961 = vcmp.eq.s32.totalorder %v959, 0
      %v962 = vxor.u32 %v957, 2147483648
      %v963 = vsel %vm961, %v956, %v962
      %vm964 = vcmp.eq.s32.totalorder %v959, 2
      %v965 = vxor.u32 %v956, 2147483648
      %v966 = vsel %vm964, %v965, %v957
      %v967 = vsel %vm960, %v963, %v966
      %v968 = vsel %vm958, nan, %v967
      %v969 = vand.u32 2147483647, %v411
      %vm970 = vcmp.le.f32.partialorder %v969, 0.7853982
      %vm971 = vcmp.lt.s32.totalorder %v411, 0
      %v972 = vand.u32 %v411, 2139095040
      %v973 = vshrl.u32 %v972, 23
      %v974 = vsub.s32 %v973, 127
      %v975 = vand.u32 2147483647, %v411
      %v976 = vand.u32 %v975, 8388607
      %v977 = vor.u32 %v976, 8388608
      %v978 = vsub.s32 0, %v977
      %v979 = vadd.s32 %v974, 1
      %vm980 = vcmp.gt.s32.totalorder %v979, 0
      %v981 = vsel %vm980, %v979, 0
      %v982 = vshrl.u32 %v981, 5
      %v983 = vand.u32 %v981, 31
      %v984 = vsub.s32 32, %v983
      %v985 = vshrl.u32 683565275, %v984
      %v986 = vshll.u32 683565275, %v983
      %v987 = vshrl.u32 2475754826, %v984
      %v988 = vor.u32 %v986, %v987
      %v989 = vshll.u32 2475754826, %v983
      %v990 = vshrl.u32 2131351028, %v984
      %v991 = vor.u32 %v989, %v990
      %v992 = vshll.u32 2131351028, %v983
      %v993 = vshrl.u32 2102212464, %v984
      %v994 = vor.u32 %v992, %v993
      %v995 = vshll.u32 2102212464, %v983
      %v996 = vshrl.u32 920167782, %v984
      %v997 = vor.u32 %v995, %v996
      %v998 = vshll.u32 920167782, %v983
      %v999 = vshrl.u32 1326507024, %v984
      %v1000 = vor.u32 %v998, %v999
      %vm1001 = vcmp.lt.s32.totalorder %v982, 1
      %vm1002 = vcmp.lt.s32.totalorder %v982, 2
      %vm1003 = vcmp.lt.s32.totalorder %v982, 3
      %vm1004 = vcmp.lt.s32.totalorder %v982, 4
      %v1005 = vsel %vm1001, %v985, %v988
      %v1006 = vsel %vm1004, %v994, 2102212464
      %v1007 = vsel %vm1003, %v991, %v1006
      %v1008 = vsel %vm1002, %v1005, %v1007
      %v1009 = vsel %vm1001, %v988, %v991
      %v1010 = vsel %vm1004, %v997, 920167782
      %v1011 = vsel %vm1003, %v994, %v1010
      %v1012 = vsel %vm1002, %v1009, %v1011
      %v1013 = vsel %vm1001, %v991, %v994
      %v1014 = vsel %vm1004, %v1000, 1326507024
      %v1015 = vsel %vm1003, %v997, %v1014
      %v1016 = vsel %vm1002, %v1013, %v1015
      %v1017 = vshll.u32 %v977, 8
      %v1018 = vmul.u32.u64.compose %v1017, %v1016
      %v1019 = vextract.low.u32 %v1018
      %v1020 = vextract.high.u32 %v1018
      %v1021 = vmul.u32.u64.compose %v1017, %v1012
      %v1022 = vextract.low.u32 %v1021
      %v1023 = vextract.high.u32 %v1021
      %v1024 = vmul.u32 %v1017, %v1008
      %v1025 = vadd.s32 %v1020, %v1022
      %vm1026 = vc.u32 %v1020, %v1022
      %v1027 = vadd.s32 %v1023, 1
      %v1028 = vsel %vm1026, %v1027, %v1023
      %v1029 = vadd.s32 %v1024, %v1028
      %v1030 = vadd.s32 %v1029, 536870912
      %v1031 = vshrl.u32 %v1030, 30
      %v1032 = vshll.u32 %v1031, 30
      %v1033 = vsub.s32 %v1029, %v1032
      %vm1034 = vcmp.lt.s32.totalorder %v1033, 0
      %v1035 = vsub.s32 0, %v1033
      %v1036 = vsel %vm1034, %v1035, %v1033
      %v1037 = vclz %v1036
      %v1038 = vsub.s32 %v1037, 2
      %vm1039 = vcmp.gt.s32.totalorder 0, %v1038
      %v1040 = vsel %vm1039, 0, %v1038
      %v1041 = vsub.s32 32, %v1040
      %v1042 = vshll.u32 %v1033, %v1040
      %v1043 = vshrl.u32 %v1025, %v1041
      %v1044 = vor.u32 %v1042, %v1043
      %v1045 = vsub.s32 4294967266, %v1040
      %v1046 = vadd.s32 %v1045, 127
      %v1047 = vshll.u32 %v1046, 23
      %v1048 = vor.u32 4788187, %v1047
      %v1049 = vand.u32 2147483647, %v1048
      %v1051 = vcvt.s32.f32 %v1044
      %v1052 = vmul.f32 %v1051, %v1049
      %v1053 = vxor.u32 %v1052, 2147483648
      %v1054 = vsel %vm971, %v1053, %v1052
      %v1055 = vsub.s32 4, %v1031
      %v1056 = vsel %vm971, %v1055, %v1031
      %v1057 = vsel %vm970, %v411, %v1054
      %v1058 = vsel %vm970, 0, %v1056
      %v1059 = vcosq.f32.pop %v1057
      %v1060 = vsinq.f32.pop %v1057
      %vm1061 = vweird.f32 %v411
      %v1062 = vand.u32 %v1058, 3
      %vm1063 = vcmp.lt.s32.totalorder %v1062, 2
      %vm1064 = vcmp.eq.s32.totalorder %v1062, 0
      %v1065 = vxor.u32 %v1060, 2147483648
      %v1066 = vsel %vm1064, %v1059, %v1065
      %vm1067 = vcmp.eq.s32.totalorder %v1062, 2
      %v1068 = vxor.u32 %v1059, 2147483648
      %v1069 = vsel %vm1067, %v1068, %v1060
      %v1070 = vsel %vm1063, %v1066, %v1069
      %v1071 = vsel %vm1061, nan, %v1070
      %v1072 = vand.u32 2147483647, %v416
      %vm1073 = vcmp.le.f32.partialorder %v1072, 0.7853982
      %vm1074 = vcmp.lt.s32.totalorder %v416, 0
      %v1075 = vand.u32 %v416, 2139095040
      %v1076 = vshrl.u32 %v1075, 23
      %v1077 = vsub.s32 %v1076, 127
      %v1078 = vand.u32 2147483647, %v416
      %v1079 = vand.u32 %v1078, 8388607
      %v1080 = vor.u32 %v1079, 8388608
      %v1081 = vsub.s32 0, %v1080
      %v1082 = vadd.s32 %v1077, 1
      %vm1083 = vcmp.gt.s32.totalorder %v1082, 0
      %v1084 = vsel %vm1083, %v1082, 0
      %v1085 = vshrl.u32 %v1084, 5
      %v1086 = vand.u32 %v1084, 31
      %v1087 = vsub.s32 32, %v1086
      %v1088 = vshrl.u32 683565275, %v1087
      %v1089 = vshll.u32 683565275, %v1086
      %v1090 = vshrl.u32 2475754826, %v1087
      %v1091 = vor.u32 %v1089, %v1090
      %v1092 = vshll.u32 2475754826, %v1086
      %v1093 = vshrl.u32 2131351028, %v1087
      %v1094 = vor.u32 %v1092, %v1093
      %v1095 = vshll.u32 2131351028, %v1086
      %v1096 = vshrl.u32 2102212464, %v1087
      %v1097 = vor.u32 %v1095, %v1096
      %v1098 = vshll.u32 2102212464, %v1086
      %v1099 = vshrl.u32 920167782, %v1087
      %v1100 = vor.u32 %v1098, %v1099
      %v1101 = vshll.u32 920167782, %v1086
      %v1102 = vshrl.u32 1326507024, %v1087
      %v1103 = vor.u32 %v1101, %v1102
      %vm1104 = vcmp.lt.s32.totalorder %v1085, 1
      %vm1105 = vcmp.lt.s32.totalorder %v1085, 2
      %vm1106 = vcmp.lt.s32.totalorder %v1085, 3
      %vm1107 = vcmp.lt.s32.totalorder %v1085, 4
      %v1108 = vsel %vm1104, %v1088, %v1091
      %v1109 = vsel %vm1107, %v1097, 2102212464
      %v1110 = vsel %vm1106, %v1094, %v1109
      %v1111 = vsel %vm1105, %v1108, %v1110
      %v1112 = vsel %vm1104, %v1091, %v1094
      %v1113 = vsel %vm1107, %v1100, 920167782
      %v1114 = vsel %vm1106, %v1097, %v1113
      %v1115 = vsel %vm1105, %v1112, %v1114
      %v1116 = vsel %vm1104, %v1094, %v1097
      %v1117 = vsel %vm1107, %v1103, 1326507024
      %v1118 = vsel %vm1106, %v1100, %v1117
      %v1119 = vsel %vm1105, %v1116, %v1118
      %v1120 = vshll.u32 %v1080, 8
      %v1121 = vmul.u32.u64.compose %v1120, %v1119
      %v1122 = vextract.low.u32 %v1121
      %v1123 = vextract.high.u32 %v1121
      %v1124 = vmul.u32.u64.compose %v1120, %v1115
      %v1125 = vextract.low.u32 %v1124
      %v1126 = vextract.high.u32 %v1124
      %v1127 = vmul.u32 %v1120, %v1111
      %v1128 = vadd.s32 %v1123, %v1125
      %vm1129 = vc.u32 %v1123, %v1125
      %v1130 = vadd.s32 %v1126, 1
      %v1131 = vsel %vm1129, %v1130, %v1126
      %v1132 = vadd.s32 %v1127, %v1131
      %v1133 = vadd.s32 %v1132, 536870912
      %v1134 = vshrl.u32 %v1133, 30
      %v1135 = vshll.u32 %v1134, 30
      %v1136 = vsub.s32 %v1132, %v1135
      %vm1137 = vcmp.lt.s32.totalorder %v1136, 0
      %v1138 = vsub.s32 0, %v1136
      %v1139 = vsel %vm1137, %v1138, %v1136
      %v1140 = vclz %v1139
      %v1141 = vsub.s32 %v1140, 2
      %vm1142 = vcmp.gt.s32.totalorder 0, %v1141
      %v1143 = vsel %vm1142, 0, %v1141
      %v1144 = vsub.s32 32, %v1143
      %v1145 = vshll.u32 %v1136, %v1143
      %v1146 = vshrl.u32 %v1128, %v1144
      %v1147 = vor.u32 %v1145, %v1146
      %v1148 = vsub.s32 4294967266, %v1143
      %v1149 = vadd.s32 %v1148, 127
      %v1150 = vshll.u32 %v1149, 23
      %v1151 = vor.u32 4788187, %v1150
      %v1152 = vand.u32 2147483647, %v1151
      %v1154 = vcvt.s32.f32 %v1147
      %v1155 = vmul.f32 %v1154, %v1152
      %v1156 = vxor.u32 %v1155, 2147483648
      %v1157 = vsel %vm1074, %v1156, %v1155
      %v1158 = vsub.s32 4, %v1134
      %v1159 = vsel %vm1074, %v1158, %v1134
      %v1160 = vsel %vm1073, %v416, %v1157
      %v1161 = vsel %vm1073, 0, %v1159
      %v1162 = vcosq.f32.pop %v1160
      %v1163 = vsinq.f32.pop %v1160
      %vm1164 = vweird.f32 %v416
      %v1165 = vand.u32 %v1161, 3
      %vm1166 = vcmp.lt.s32.totalorder %v1165, 2
      %vm1167 = vcmp.eq.s32.totalorder %v1165, 0
      %v1168 = vxor.u32 %v1163, 2147483648
      %v1169 = vsel %vm1167, %v1162, %v1168
      %vm1170 = vcmp.eq.s32.totalorder %v1165, 2
      %v1171 = vxor.u32 %v1162, 2147483648
      %v1172 = vsel %vm1170, %v1171, %v1163
      %v1173 = vsel %vm1166, %v1169, %v1172
      %v1174 = vsel %vm1164, nan, %v1173
      %v1175 = vand.u32 2147483647, %v419
      %vm1176 = vcmp.le.f32.partialorder %v1175, 0.7853982
      %vm1177 = vcmp.lt.s32.totalorder %v419, 0
      %v1178 = vand.u32 %v419, 2139095040
      %v1179 = vshrl.u32 %v1178, 23
      %v1180 = vsub.s32 %v1179, 127
      %v1181 = vand.u32 2147483647, %v419
      %v1182 = vand.u32 %v1181, 8388607
      %v1183 = vor.u32 %v1182, 8388608
      %v1184 = vsub.s32 0, %v1183
      %v1185 = vadd.s32 %v1180, 1
      %vm1186 = vcmp.gt.s32.totalorder %v1185, 0
      %v1187 = vsel %vm1186, %v1185, 0
      %v1188 = vshrl.u32 %v1187, 5
      %v1189 = vand.u32 %v1187, 31
      %v1190 = vsub.s32 32, %v1189
      %v1191 = vshrl.u32 683565275, %v1190
      %v1192 = vshll.u32 683565275, %v1189
      %v1193 = vshrl.u32 2475754826, %v1190
      %v1194 = vor.u32 %v1192, %v1193
      %v1195 = vshll.u32 2475754826, %v1189
      %v1196 = vshrl.u32 2131351028, %v1190
      %v1197 = vor.u32 %v1195, %v1196
      %v1198 = vshll.u32 2131351028, %v1189
      %v1199 = vshrl.u32 2102212464, %v1190
      %v1200 = vor.u32 %v1198, %v1199
      %v1201 = vshll.u32 2102212464, %v1189
      %v1202 = vshrl.u32 920167782, %v1190
      %v1203 = vor.u32 %v1201, %v1202
      %v1204 = vshll.u32 920167782, %v1189
      %v1205 = vshrl.u32 1326507024, %v1190
      %v1206 = vor.u32 %v1204, %v1205
      %vm1207 = vcmp.lt.s32.totalorder %v1188, 1
      %vm1208 = vcmp.lt.s32.totalorder %v1188, 2
      %vm1209 = vcmp.lt.s32.totalorder %v1188, 3
      %vm1210 = vcmp.lt.s32.totalorder %v1188, 4
      %v1211 = vsel %vm1207, %v1191, %v1194
      %v1212 = vsel %vm1210, %v1200, 2102212464
      %v1213 = vsel %vm1209, %v1197, %v1212
      %v1214 = vsel %vm1208, %v1211, %v1213
      %v1215 = vsel %vm1207, %v1194, %v1197
      %v1216 = vsel %vm1210, %v1203, 920167782
      %v1217 = vsel %vm1209, %v1200, %v1216
      %v1218 = vsel %vm1208, %v1215, %v1217
      %v1219 = vsel %vm1207, %v1197, %v1200
      %v1220 = vsel %vm1210, %v1206, 1326507024
      %v1221 = vsel %vm1209, %v1203, %v1220
      %v1222 = vsel %vm1208, %v1219, %v1221
      %v1223 = vshll.u32 %v1183, 8
      %v1224 = vmul.u32.u64.compose %v1223, %v1222
      %v1225 = vextract.low.u32 %v1224
      %v1226 = vextract.high.u32 %v1224
      %v1227 = vmul.u32.u64.compose %v1223, %v1218
      %v1228 = vextract.low.u32 %v1227
      %v1229 = vextract.high.u32 %v1227
      %v1230 = vmul.u32 %v1223, %v1214
      %v1231 = vadd.s32 %v1226, %v1228
      %vm1232 = vc.u32 %v1226, %v1228
      %v1233 = vadd.s32 %v1229, 1
      %v1234 = vsel %vm1232, %v1233, %v1229
      %v1235 = vadd.s32 %v1230, %v1234
      %v1236 = vadd.s32 %v1235, 536870912
      %v1237 = vshrl.u32 %v1236, 30
      %v1238 = vshll.u32 %v1237, 30
      %v1239 = vsub.s32 %v1235, %v1238
      %vm1240 = vcmp.lt.s32.totalorder %v1239, 0
      %v1241 = vsub.s32 0, %v1239
      %v1242 = vsel %vm1240, %v1241, %v1239
      %v1243 = vclz %v1242
      %v1244 = vsub.s32 %v1243, 2
      %vm1245 = vcmp.gt.s32.totalorder 0, %v1244
      %v1246 = vsel %vm1245, 0, %v1244
      %v1247 = vsub.s32 32, %v1246
      %v1248 = vshll.u32 %v1239, %v1246
      %v1249 = vshrl.u32 %v1231, %v1247
      %v1250 = vor.u32 %v1248, %v1249
      %v1251 = vsub.s32 4294967266, %v1246
      %v1252 = vadd.s32 %v1251, 127
      %v1253 = vshll.u32 %v1252, 23
      %v1254 = vor.u32 4788187, %v1253
      %v1255 = vand.u32 2147483647, %v1254
      %v1257 = vcvt.s32.f32 %v1250
      %v1258 = vmul.f32 %v1257, %v1255
      %v1259 = vxor.u32 %v1258, 2147483648
      %v1260 = vsel %vm1177, %v1259, %v1258
      %v1261 = vsub.s32 4, %v1237
      %v1262 = vsel %vm1177, %v1261, %v1237
      %v1263 = vsel %vm1176, %v419, %v1260
      %v1264 = vsel %vm1176, 0, %v1262
      %v1265 = vcosq.f32.pop %v1263
      %v1266 = vsinq.f32.pop %v1263
      %vm1267 = vweird.f32 %v419
      %v1268 = vand.u32 %v1264, 3
      %vm1269 = vcmp.lt.s32.totalorder %v1268, 2
      %vm1270 = vcmp.eq.s32.totalorder %v1268, 0
      %v1271 = vxor.u32 %v1266, 2147483648
      %v1272 = vsel %vm1270, %v1265, %v1271
      %vm1273 = vcmp.eq.s32.totalorder %v1268, 2
      %v1274 = vxor.u32 %v1265, 2147483648
      %v1275 = vsel %vm1273, %v1274, %v1266
      %v1276 = vsel %vm1269, %v1272, %v1275
      %v1277 = vsel %vm1267, nan, %v1276
      %v1278 = vand.u32 2147483647, %v424
      %vm1279 = vcmp.le.f32.partialorder %v1278, 0.7853982
      %vm1280 = vcmp.lt.s32.totalorder %v424, 0
      %v1281 = vand.u32 %v424, 2139095040
      %v1282 = vshrl.u32 %v1281, 23
      %v1283 = vsub.s32 %v1282, 127
      %v1284 = vand.u32 2147483647, %v424
      %v1285 = vand.u32 %v1284, 8388607
      %v1286 = vor.u32 %v1285, 8388608
      %v1287 = vsub.s32 0, %v1286
      %v1288 = vadd.s32 %v1283, 1
      %vm1289 = vcmp.gt.s32.totalorder %v1288, 0
      %v1290 = vsel %vm1289, %v1288, 0
      %v1291 = vshrl.u32 %v1290, 5
      %v1292 = vand.u32 %v1290, 31
      %v1293 = vsub.s32 32, %v1292
      %v1294 = vshrl.u32 683565275, %v1293
      %v1295 = vshll.u32 683565275, %v1292
      %v1296 = vshrl.u32 2475754826, %v1293
      %v1297 = vor.u32 %v1295, %v1296
      %v1298 = vshll.u32 2475754826, %v1292
      %v1299 = vshrl.u32 2131351028, %v1293
      %v1300 = vor.u32 %v1298, %v1299
      %v1301 = vshll.u32 2131351028, %v1292
      %v1302 = vshrl.u32 2102212464, %v1293
      %v1303 = vor.u32 %v1301, %v1302
      %v1304 = vshll.u32 2102212464, %v1292
      %v1305 = vshrl.u32 920167782, %v1293
      %v1306 = vor.u32 %v1304, %v1305
      %v1307 = vshll.u32 920167782, %v1292
      %v1308 = vshrl.u32 1326507024, %v1293
      %v1309 = vor.u32 %v1307, %v1308
      %vm1310 = vcmp.lt.s32.totalorder %v1291, 1
      %vm1311 = vcmp.lt.s32.totalorder %v1291, 2
      %vm1312 = vcmp.lt.s32.totalorder %v1291, 3
      %vm1313 = vcmp.lt.s32.totalorder %v1291, 4
      %v1314 = vsel %vm1310, %v1294, %v1297
      %v1315 = vsel %vm1313, %v1303, 2102212464
      %v1316 = vsel %vm1312, %v1300, %v1315
      %v1317 = vsel %vm1311, %v1314, %v1316
      %v1318 = vsel %vm1310, %v1297, %v1300
      %v1319 = vsel %vm1313, %v1306, 920167782
      %v1320 = vsel %vm1312, %v1303, %v1319
      %v1321 = vsel %vm1311, %v1318, %v1320
      %v1322 = vsel %vm1310, %v1300, %v1303
      %v1323 = vsel %vm1313, %v1309, 1326507024
      %v1324 = vsel %vm1312, %v1306, %v1323
      %v1325 = vsel %vm1311, %v1322, %v1324
      %v1326 = vshll.u32 %v1286, 8
      %v1327 = vmul.u32.u64.compose %v1326, %v1325
      %v1328 = vextract.low.u32 %v1327
      %v1329 = vextract.high.u32 %v1327
      %v1330 = vmul.u32.u64.compose %v1326, %v1321
      %v1331 = vextract.low.u32 %v1330
      %v1332 = vextract.high.u32 %v1330
      %v1333 = vmul.u32 %v1326, %v1317
      %v1334 = vadd.s32 %v1329, %v1331
      %vm1335 = vc.u32 %v1329, %v1331
      %v1336 = vadd.s32 %v1332, 1
      %v1337 = vsel %vm1335, %v1336, %v1332
      %v1338 = vadd.s32 %v1333, %v1337
      %v1339 = vadd.s32 %v1338, 536870912
      %v1340 = vshrl.u32 %v1339, 30
      %v1341 = vshll.u32 %v1340, 30
      %v1342 = vsub.s32 %v1338, %v1341
      %vm1343 = vcmp.lt.s32.totalorder %v1342, 0
      %v1344 = vsub.s32 0, %v1342
      %v1345 = vsel %vm1343, %v1344, %v1342
      %v1346 = vclz %v1345
      %v1347 = vsub.s32 %v1346, 2
      %vm1348 = vcmp.gt.s32.totalorder 0, %v1347
      %v1349 = vsel %vm1348, 0, %v1347
      %v1350 = vsub.s32 32, %v1349
      %v1351 = vshll.u32 %v1342, %v1349
      %v1352 = vshrl.u32 %v1334, %v1350
      %v1353 = vor.u32 %v1351, %v1352
      %v1354 = vsub.s32 4294967266, %v1349
      %v1355 = vadd.s32 %v1354, 127
      %v1356 = vshll.u32 %v1355, 23
      %v1357 = vor.u32 4788187, %v1356
      %v1358 = vand.u32 2147483647, %v1357
      %v1360 = vcvt.s32.f32 %v1353
      %v1361 = vmul.f32 %v1360, %v1358
      %v1362 = vxor.u32 %v1361, 2147483648
      %v1363 = vsel %vm1280, %v1362, %v1361
      %v1364 = vsub.s32 4, %v1340
      %v1365 = vsel %vm1280, %v1364, %v1340
      %v1366 = vsel %vm1279, %v424, %v1363
      %v1367 = vsel %vm1279, 0, %v1365
      %v1368 = vcosq.f32.pop %v1366
      %v1369 = vsinq.f32.pop %v1366
      %vm1370 = vweird.f32 %v424
      %v1371 = vand.u32 %v1367, 3
      %vm1372 = vcmp.lt.s32.totalorder %v1371, 2
      %vm1373 = vcmp.eq.s32.totalorder %v1371, 0
      %v1374 = vxor.u32 %v1369, 2147483648
      %v1375 = vsel %vm1373, %v1368, %v1374
      %vm1376 = vcmp.eq.s32.totalorder %v1371, 2
      %v1377 = vxor.u32 %v1368, 2147483648
      %v1378 = vsel %vm1376, %v1377, %v1369
      %v1379 = vsel %vm1372, %v1375, %v1378
      %v1380 = vsel %vm1370, nan, %v1379
      %v1381 = vand.u32 2147483647, %v427
      %vm1382 = vcmp.le.f32.partialorder %v1381, 0.7853982
      %vm1383 = vcmp.lt.s32.totalorder %v427, 0
      %v1384 = vand.u32 %v427, 2139095040
      %v1385 = vshrl.u32 %v1384, 23
      %v1386 = vsub.s32 %v1385, 127
      %v1387 = vand.u32 2147483647, %v427
      %v1388 = vand.u32 %v1387, 8388607
      %v1389 = vor.u32 %v1388, 8388608
      %v1390 = vsub.s32 0, %v1389
      %v1391 = vadd.s32 %v1386, 1
      %vm1392 = vcmp.gt.s32.totalorder %v1391, 0
      %v1393 = vsel %vm1392, %v1391, 0
      %v1394 = vshrl.u32 %v1393, 5
      %v1395 = vand.u32 %v1393, 31
      %v1396 = vsub.s32 32, %v1395
      %v1397 = vshrl.u32 683565275, %v1396
      %v1398 = vshll.u32 683565275, %v1395
      %v1399 = vshrl.u32 2475754826, %v1396
      %v1400 = vor.u32 %v1398, %v1399
      %v1401 = vshll.u32 2475754826, %v1395
      %v1402 = vshrl.u32 2131351028, %v1396
      %v1403 = vor.u32 %v1401, %v1402
      %v1404 = vshll.u32 2131351028, %v1395
      %v1405 = vshrl.u32 2102212464, %v1396
      %v1406 = vor.u32 %v1404, %v1405
      %v1407 = vshll.u32 2102212464, %v1395
      %v1408 = vshrl.u32 920167782, %v1396
      %v1409 = vor.u32 %v1407, %v1408
      %v1410 = vshll.u32 920167782, %v1395
      %v1411 = vshrl.u32 1326507024, %v1396
      %v1412 = vor.u32 %v1410, %v1411
      %vm1413 = vcmp.lt.s32.totalorder %v1394, 1
      %vm1414 = vcmp.lt.s32.totalorder %v1394, 2
      %vm1415 = vcmp.lt.s32.totalorder %v1394, 3
      %vm1416 = vcmp.lt.s32.totalorder %v1394, 4
      %v1417 = vsel %vm1413, %v1397, %v1400
      %v1418 = vsel %vm1416, %v1406, 2102212464
      %v1419 = vsel %vm1415, %v1403, %v1418
      %v1420 = vsel %vm1414, %v1417, %v1419
      %v1421 = vsel %vm1413, %v1400, %v1403
      %v1422 = vsel %vm1416, %v1409, 920167782
      %v1423 = vsel %vm1415, %v1406, %v1422
      %v1424 = vsel %vm1414, %v1421, %v1423
      %v1425 = vsel %vm1413, %v1403, %v1406
      %v1426 = vsel %vm1416, %v1412, 1326507024
      %v1427 = vsel %vm1415, %v1409, %v1426
      %v1428 = vsel %vm1414, %v1425, %v1427
      %v1429 = vshll.u32 %v1389, 8
      %v1430 = vmul.u32.u64.compose %v1429, %v1428
      %v1431 = vextract.low.u32 %v1430
      %v1432 = vextract.high.u32 %v1430
      %v1433 = vmul.u32.u64.compose %v1429, %v1424
      %v1434 = vextract.low.u32 %v1433
      %v1435 = vextract.high.u32 %v1433
      %v1436 = vmul.u32 %v1429, %v1420
      %v1437 = vadd.s32 %v1432, %v1434
      %vm1438 = vc.u32 %v1432, %v1434
      %v1439 = vadd.s32 %v1435, 1
      %v1440 = vsel %vm1438, %v1439, %v1435
      %v1441 = vadd.s32 %v1436, %v1440
      %v1442 = vadd.s32 %v1441, 536870912
      %v1443 = vshrl.u32 %v1442, 30
      %v1444 = vshll.u32 %v1443, 30
      %v1445 = vsub.s32 %v1441, %v1444
      %vm1446 = vcmp.lt.s32.totalorder %v1445, 0
      %v1447 = vsub.s32 0, %v1445
      %v1448 = vsel %vm1446, %v1447, %v1445
      %v1449 = vclz %v1448
      %v1450 = vsub.s32 %v1449, 2
      %vm1451 = vcmp.gt.s32.totalorder 0, %v1450
      %v1452 = vsel %vm1451, 0, %v1450
      %v1453 = vsub.s32 32, %v1452
      %v1454 = vshll.u32 %v1445, %v1452
      %v1455 = vshrl.u32 %v1437, %v1453
      %v1456 = vor.u32 %v1454, %v1455
      %v1457 = vsub.s32 4294967266, %v1452
      %v1458 = vadd.s32 %v1457, 127
      %v1459 = vshll.u32 %v1458, 23
      %v1460 = vor.u32 4788187, %v1459
      %v1461 = vand.u32 2147483647, %v1460
      %v1463 = vcvt.s32.f32 %v1456
      %v1464 = vmul.f32 %v1463, %v1461
      %v1465 = vxor.u32 %v1464, 2147483648
      %v1466 = vsel %vm1383, %v1465, %v1464
      %v1467 = vsub.s32 4, %v1443
      %v1468 = vsel %vm1383, %v1467, %v1443
      %v1469 = vsel %vm1382, %v427, %v1466
      %v1470 = vsel %vm1382, 0, %v1468
      %v1471 = vcosq.f32.pop %v1469
      %v1472 = vsinq.f32.pop %v1469
      %vm1473 = vweird.f32 %v427
      %v1474 = vand.u32 %v1470, 3
      %vm1475 = vcmp.lt.s32.totalorder %v1474, 2
      %vm1476 = vcmp.eq.s32.totalorder %v1474, 0
      %v1477 = vxor.u32 %v1472, 2147483648
      %v1478 = vsel %vm1476, %v1471, %v1477
      %vm1479 = vcmp.eq.s32.totalorder %v1474, 2
      %v1480 = vxor.u32 %v1471, 2147483648
      %v1481 = vsel %vm1479, %v1480, %v1472
      %v1482 = vsel %vm1475, %v1478, %v1481
      %v1483 = vsel %vm1473, nan, %v1482
      %v1484 = vand.u32 2147483647, %v432
      %vm1485 = vcmp.le.f32.partialorder %v1484, 0.7853982
      %vm1486 = vcmp.lt.s32.totalorder %v432, 0
      %v1487 = vand.u32 %v432, 2139095040
      %v1488 = vshrl.u32 %v1487, 23
      %v1489 = vsub.s32 %v1488, 127
      %v1490 = vand.u32 2147483647, %v432
      %v1491 = vand.u32 %v1490, 8388607
      %v1492 = vor.u32 %v1491, 8388608
      %v1493 = vsub.s32 0, %v1492
      %v1494 = vadd.s32 %v1489, 1
      %vm1495 = vcmp.gt.s32.totalorder %v1494, 0
      %v1496 = vsel %vm1495, %v1494, 0
      %v1497 = vshrl.u32 %v1496, 5
      %v1498 = vand.u32 %v1496, 31
      %v1499 = vsub.s32 32, %v1498
      %v1500 = vshrl.u32 683565275, %v1499
      %v1501 = vshll.u32 683565275, %v1498
      %v1502 = vshrl.u32 2475754826, %v1499
      %v1503 = vor.u32 %v1501, %v1502
      %v1504 = vshll.u32 2475754826, %v1498
      %v1505 = vshrl.u32 2131351028, %v1499
      %v1506 = vor.u32 %v1504, %v1505
      %v1507 = vshll.u32 2131351028, %v1498
      %v1508 = vshrl.u32 2102212464, %v1499
      %v1509 = vor.u32 %v1507, %v1508
      %v1510 = vshll.u32 2102212464, %v1498
      %v1511 = vshrl.u32 920167782, %v1499
      %v1512 = vor.u32 %v1510, %v1511
      %v1513 = vshll.u32 920167782, %v1498
      %v1514 = vshrl.u32 1326507024, %v1499
      %v1515 = vor.u32 %v1513, %v1514
      %vm1516 = vcmp.lt.s32.totalorder %v1497, 1
      %vm1517 = vcmp.lt.s32.totalorder %v1497, 2
      %vm1518 = vcmp.lt.s32.totalorder %v1497, 3
      %vm1519 = vcmp.lt.s32.totalorder %v1497, 4
      %v1520 = vsel %vm1516, %v1500, %v1503
      %v1521 = vsel %vm1519, %v1509, 2102212464
      %v1522 = vsel %vm1518, %v1506, %v1521
      %v1523 = vsel %vm1517, %v1520, %v1522
      %v1524 = vsel %vm1516, %v1503, %v1506
      %v1525 = vsel %vm1519, %v1512, 920167782
      %v1526 = vsel %vm1518, %v1509, %v1525
      %v1527 = vsel %vm1517, %v1524, %v1526
      %v1528 = vsel %vm1516, %v1506, %v1509
      %v1529 = vsel %vm1519, %v1515, 1326507024
      %v1530 = vsel %vm1518, %v1512, %v1529
      %v1531 = vsel %vm1517, %v1528, %v1530
      %v1532 = vshll.u32 %v1492, 8
      %v1533 = vmul.u32.u64.compose %v1532, %v1531
      %v1534 = vextract.low.u32 %v1533
      %v1535 = vextract.high.u32 %v1533
      %v1536 = vmul.u32.u64.compose %v1532, %v1527
      %v1537 = vextract.low.u32 %v1536
      %v1538 = vextract.high.u32 %v1536
      %v1539 = vmul.u32 %v1532, %v1523
      %v1540 = vadd.s32 %v1535, %v1537
      %vm1541 = vc.u32 %v1535, %v1537
      %v1542 = vadd.s32 %v1538, 1
      %v1543 = vsel %vm1541, %v1542, %v1538
      %v1544 = vadd.s32 %v1539, %v1543
      %v1545 = vadd.s32 %v1544, 536870912
      %v1546 = vshrl.u32 %v1545, 30
      %v1547 = vshll.u32 %v1546, 30
      %v1548 = vsub.s32 %v1544, %v1547
      %vm1549 = vcmp.lt.s32.totalorder %v1548, 0
      %v1550 = vsub.s32 0, %v1548
      %v1551 = vsel %vm1549, %v1550, %v1548
      %v1552 = vclz %v1551
      %v1553 = vsub.s32 %v1552, 2
      %vm1554 = vcmp.gt.s32.totalorder 0, %v1553
      %v1555 = vsel %vm1554, 0, %v1553
      %v1556 = vsub.s32 32, %v1555
      %v1557 = vshll.u32 %v1548, %v1555
      %v1558 = vshrl.u32 %v1540, %v1556
      %v1559 = vor.u32 %v1557, %v1558
      %v1560 = vsub.s32 4294967266, %v1555
      %v1561 = vadd.s32 %v1560, 127
      %v1562 = vshll.u32 %v1561, 23
      %v1563 = vor.u32 4788187, %v1562
      %v1564 = vand.u32 2147483647, %v1563
      %v1566 = vcvt.s32.f32 %v1559
      %v1567 = vmul.f32 %v1566, %v1564
      %v1568 = vxor.u32 %v1567, 2147483648
      %v1569 = vsel %vm1486, %v1568, %v1567
      %v1570 = vsub.s32 4, %v1546
      %v1571 = vsel %vm1486, %v1570, %v1546
      %v1572 = vsel %vm1485, %v432, %v1569
      %v1573 = vsel %vm1485, 0, %v1571
      %v1574 = vcosq.f32.pop %v1572
      %v1575 = vsinq.f32.pop %v1572
      %vm1576 = vweird.f32 %v432
      %v1577 = vand.u32 %v1573, 3
      %vm1578 = vcmp.lt.s32.totalorder %v1577, 2
      %vm1579 = vcmp.eq.s32.totalorder %v1577, 0
      %v1580 = vxor.u32 %v1575, 2147483648
      %v1581 = vsel %vm1579, %v1574, %v1580
      %vm1582 = vcmp.eq.s32.totalorder %v1577, 2
      %v1583 = vxor.u32 %v1574, 2147483648
      %v1584 = vsel %vm1582, %v1583, %v1575
      %v1585 = vsel %vm1578, %v1581, %v1584
      %v1586 = vsel %vm1576, nan, %v1585
      %v1587 = vand.u32 2147483647, %v435
      %vm1588 = vcmp.le.f32.partialorder %v1587, 0.7853982
      %vm1589 = vcmp.lt.s32.totalorder %v435, 0
      %v1590 = vand.u32 %v435, 2139095040
      %v1591 = vshrl.u32 %v1590, 23
      %v1592 = vsub.s32 %v1591, 127
      %v1593 = vand.u32 2147483647, %v435
      %v1594 = vand.u32 %v1593, 8388607
      %v1595 = vor.u32 %v1594, 8388608
      %v1596 = vsub.s32 0, %v1595
      %v1597 = vadd.s32 %v1592, 1
      %vm1598 = vcmp.gt.s32.totalorder %v1597, 0
      %v1599 = vsel %vm1598, %v1597, 0
      %v1600 = vshrl.u32 %v1599, 5
      %v1601 = vand.u32 %v1599, 31
      %v1602 = vsub.s32 32, %v1601
      %v1603 = vshrl.u32 683565275, %v1602
      %v1604 = vshll.u32 683565275, %v1601
      %v1605 = vshrl.u32 2475754826, %v1602
      %v1606 = vor.u32 %v1604, %v1605
      %v1607 = vshll.u32 2475754826, %v1601
      %v1608 = vshrl.u32 2131351028, %v1602
      %v1609 = vor.u32 %v1607, %v1608
      %v1610 = vshll.u32 2131351028, %v1601
      %v1611 = vshrl.u32 2102212464, %v1602
      %v1612 = vor.u32 %v1610, %v1611
      %v1613 = vshll.u32 2102212464, %v1601
      %v1614 = vshrl.u32 920167782, %v1602
      %v1615 = vor.u32 %v1613, %v1614
      %v1616 = vshll.u32 920167782, %v1601
      %v1617 = vshrl.u32 1326507024, %v1602
      %v1618 = vor.u32 %v1616, %v1617
      %vm1619 = vcmp.lt.s32.totalorder %v1600, 1
      %vm1620 = vcmp.lt.s32.totalorder %v1600, 2
      %vm1621 = vcmp.lt.s32.totalorder %v1600, 3
      %vm1622 = vcmp.lt.s32.totalorder %v1600, 4
      %v1623 = vsel %vm1619, %v1603, %v1606
      %v1624 = vsel %vm1622, %v1612, 2102212464
      %v1625 = vsel %vm1621, %v1609, %v1624
      %v1626 = vsel %vm1620, %v1623, %v1625
      %v1627 = vsel %vm1619, %v1606, %v1609
      %v1628 = vsel %vm1622, %v1615, 920167782
      %v1629 = vsel %vm1621, %v1612, %v1628
      %v1630 = vsel %vm1620, %v1627, %v1629
      %v1631 = vsel %vm1619, %v1609, %v1612
      %v1632 = vsel %vm1622, %v1618, 1326507024
      %v1633 = vsel %vm1621, %v1615, %v1632
      %v1634 = vsel %vm1620, %v1631, %v1633
      %v1635 = vshll.u32 %v1595, 8
      %v1636 = vmul.u32.u64.compose %v1635, %v1634
      %v1637 = vextract.low.u32 %v1636
      %v1638 = vextract.high.u32 %v1636
      %v1639 = vmul.u32.u64.compose %v1635, %v1630
      %v1640 = vextract.low.u32 %v1639
      %v1641 = vextract.high.u32 %v1639
      %v1642 = vmul.u32 %v1635, %v1626
      %v1643 = vadd.s32 %v1638, %v1640
      %vm1644 = vc.u32 %v1638, %v1640
      %v1645 = vadd.s32 %v1641, 1
      %v1646 = vsel %vm1644, %v1645, %v1641
      %v1647 = vadd.s32 %v1642, %v1646
      %v1648 = vadd.s32 %v1647, 536870912
      %v1649 = vshrl.u32 %v1648, 30
      %v1650 = vshll.u32 %v1649, 30
      %v1651 = vsub.s32 %v1647, %v1650
      %vm1652 = vcmp.lt.s32.totalorder %v1651, 0
      %v1653 = vsub.s32 0, %v1651
      %v1654 = vsel %vm1652, %v1653, %v1651
      %v1655 = vclz %v1654
      %v1656 = vsub.s32 %v1655, 2
      %vm1657 = vcmp.gt.s32.totalorder 0, %v1656
      %v1658 = vsel %vm1657, 0, %v1656
      %v1659 = vsub.s32 32, %v1658
      %v1660 = vshll.u32 %v1651, %v1658
      %v1661 = vshrl.u32 %v1643, %v1659
      %v1662 = vor.u32 %v1660, %v1661
      %v1663 = vsub.s32 4294967266, %v1658
      %v1664 = vadd.s32 %v1663, 127
      %v1665 = vshll.u32 %v1664, 23
      %v1666 = vor.u32 4788187, %v1665
      %v1667 = vand.u32 2147483647, %v1666
      %v1669 = vcvt.s32.f32 %v1662
      %v1670 = vmul.f32 %v1669, %v1667
      %v1671 = vxor.u32 %v1670, 2147483648
      %v1672 = vsel %vm1589, %v1671, %v1670
      %v1673 = vsub.s32 4, %v1649
      %v1674 = vsel %vm1589, %v1673, %v1649
      %v1675 = vsel %vm1588, %v435, %v1672
      %v1676 = vsel %vm1588, 0, %v1674
      %v1677 = vcosq.f32.pop %v1675
      %v1678 = vsinq.f32.pop %v1675
      %vm1679 = vweird.f32 %v435
      %v1680 = vand.u32 %v1676, 3
      %vm1681 = vcmp.lt.s32.totalorder %v1680, 2
      %vm1682 = vcmp.eq.s32.totalorder %v1680, 0
      %v1683 = vxor.u32 %v1678, 2147483648
      %v1684 = vsel %vm1682, %v1677, %v1683
      %vm1685 = vcmp.eq.s32.totalorder %v1680, 2
      %v1686 = vxor.u32 %v1677, 2147483648
      %v1687 = vsel %vm1685, %v1686, %v1678
      %v1688 = vsel %vm1681, %v1684, %v1687
      %v1689 = vsel %vm1679, nan, %v1688
      %v1690 = vand.u32 2147483647, %v440
      %vm1691 = vcmp.le.f32.partialorder %v1690, 0.7853982
      %vm1692 = vcmp.lt.s32.totalorder %v440, 0
      %v1693 = vand.u32 %v440, 2139095040
      %v1694 = vshrl.u32 %v1693, 23
      %v1695 = vsub.s32 %v1694, 127
      %v1696 = vand.u32 2147483647, %v440
      %v1697 = vand.u32 %v1696, 8388607
      %v1698 = vor.u32 %v1697, 8388608
      %v1699 = vsub.s32 0, %v1698
      %v1700 = vadd.s32 %v1695, 1
      %vm1701 = vcmp.gt.s32.totalorder %v1700, 0
      %v1702 = vsel %vm1701, %v1700, 0
      %v1703 = vshrl.u32 %v1702, 5
      %v1704 = vand.u32 %v1702, 31
      %v1705 = vsub.s32 32, %v1704
      %v1706 = vshrl.u32 683565275, %v1705
      %v1707 = vshll.u32 683565275, %v1704
      %v1708 = vshrl.u32 2475754826, %v1705
      %v1709 = vor.u32 %v1707, %v1708
      %v1710 = vshll.u32 2475754826, %v1704
      %v1711 = vshrl.u32 2131351028, %v1705
      %v1712 = vor.u32 %v1710, %v1711
      %v1713 = vshll.u32 2131351028, %v1704
      %v1714 = vshrl.u32 2102212464, %v1705
      %v1715 = vor.u32 %v1713, %v1714
      %v1716 = vshll.u32 2102212464, %v1704
      %v1717 = vshrl.u32 920167782, %v1705
      %v1718 = vor.u32 %v1716, %v1717
      %v1719 = vshll.u32 920167782, %v1704
      %v1720 = vshrl.u32 1326507024, %v1705
      %v1721 = vor.u32 %v1719, %v1720
      %vm1722 = vcmp.lt.s32.totalorder %v1703, 1
      %vm1723 = vcmp.lt.s32.totalorder %v1703, 2
      %vm1724 = vcmp.lt.s32.totalorder %v1703, 3
      %vm1725 = vcmp.lt.s32.totalorder %v1703, 4
      %v1726 = vsel %vm1722, %v1706, %v1709
      %v1727 = vsel %vm1725, %v1715, 2102212464
      %v1728 = vsel %vm1724, %v1712, %v1727
      %v1729 = vsel %vm1723, %v1726, %v1728
      %v1730 = vsel %vm1722, %v1709, %v1712
      %v1731 = vsel %vm1725, %v1718, 920167782
      %v1732 = vsel %vm1724, %v1715, %v1731
      %v1733 = vsel %vm1723, %v1730, %v1732
      %v1734 = vsel %vm1722, %v1712, %v1715
      %v1735 = vsel %vm1725, %v1721, 1326507024
      %v1736 = vsel %vm1724, %v1718, %v1735
      %v1737 = vsel %vm1723, %v1734, %v1736
      %v1738 = vshll.u32 %v1698, 8
      %v1739 = vmul.u32.u64.compose %v1738, %v1737
      %v1740 = vextract.low.u32 %v1739
      %v1741 = vextract.high.u32 %v1739
      %v1742 = vmul.u32.u64.compose %v1738, %v1733
      %v1743 = vextract.low.u32 %v1742
      %v1744 = vextract.high.u32 %v1742
      %v1745 = vmul.u32 %v1738, %v1729
      %v1746 = vadd.s32 %v1741, %v1743
      %vm1747 = vc.u32 %v1741, %v1743
      %v1748 = vadd.s32 %v1744, 1
      %v1749 = vsel %vm1747, %v1748, %v1744
      %v1750 = vadd.s32 %v1745, %v1749
      %v1751 = vadd.s32 %v1750, 536870912
      %v1752 = vshrl.u32 %v1751, 30
      %v1753 = vshll.u32 %v1752, 30
      %v1754 = vsub.s32 %v1750, %v1753
      %vm1755 = vcmp.lt.s32.totalorder %v1754, 0
      %v1756 = vsub.s32 0, %v1754
      %v1757 = vsel %vm1755, %v1756, %v1754
      %v1758 = vclz %v1757
      %v1759 = vsub.s32 %v1758, 2
      %vm1760 = vcmp.gt.s32.totalorder 0, %v1759
      %v1761 = vsel %vm1760, 0, %v1759
      %v1762 = vsub.s32 32, %v1761
      %v1763 = vshll.u32 %v1754, %v1761
      %v1764 = vshrl.u32 %v1746, %v1762
      %v1765 = vor.u32 %v1763, %v1764
      %v1766 = vsub.s32 4294967266, %v1761
      %v1767 = vadd.s32 %v1766, 127
      %v1768 = vshll.u32 %v1767, 23
      %v1769 = vor.u32 4788187, %v1768
      %v1770 = vand.u32 2147483647, %v1769
      %v1772 = vcvt.s32.f32 %v1765
      %v1773 = vmul.f32 %v1772, %v1770
      %v1774 = vxor.u32 %v1773, 2147483648
      %v1775 = vsel %vm1692, %v1774, %v1773
      %v1776 = vsub.s32 4, %v1752
      %v1777 = vsel %vm1692, %v1776, %v1752
      %v1778 = vsel %vm1691, %v440, %v1775
      %v1779 = vsel %vm1691, 0, %v1777
      %v1780 = vcosq.f32.pop %v1778
      %v1781 = vsinq.f32.pop %v1778
      %vm1782 = vweird.f32 %v440
      %v1783 = vand.u32 %v1779, 3
      %vm1784 = vcmp.lt.s32.totalorder %v1783, 2
      %vm1785 = vcmp.eq.s32.totalorder %v1783, 0
      %v1786 = vxor.u32 %v1781, 2147483648
      %v1787 = vsel %vm1785, %v1780, %v1786
      %vm1788 = vcmp.eq.s32.totalorder %v1783, 2
      %v1789 = vxor.u32 %v1780, 2147483648
      %v1790 = vsel %vm1788, %v1789, %v1781
      %v1791 = vsel %vm1784, %v1787, %v1790
      %v1792 = vsel %vm1782, nan, %v1791
      %v1793 = vand.u32 2147483647, %v443
      %vm1794 = vcmp.le.f32.partialorder %v1793, 0.7853982
      %vm1795 = vcmp.lt.s32.totalorder %v443, 0
      %v1796 = vand.u32 %v443, 2139095040
      %v1797 = vshrl.u32 %v1796, 23
      %v1798 = vsub.s32 %v1797, 127
      %v1799 = vand.u32 2147483647, %v443
      %v1800 = vand.u32 %v1799, 8388607
      %v1801 = vor.u32 %v1800, 8388608
      %v1802 = vsub.s32 0, %v1801
      %v1803 = vadd.s32 %v1798, 1
      %vm1804 = vcmp.gt.s32.totalorder %v1803, 0
      %v1805 = vsel %vm1804, %v1803, 0
      %v1806 = vshrl.u32 %v1805, 5
      %v1807 = vand.u32 %v1805, 31
      %v1808 = vsub.s32 32, %v1807
      %v1809 = vshrl.u32 683565275, %v1808
      %v1810 = vshll.u32 683565275, %v1807
      %v1811 = vshrl.u32 2475754826, %v1808
      %v1812 = vor.u32 %v1810, %v1811
      %v1813 = vshll.u32 2475754826, %v1807
      %v1814 = vshrl.u32 2131351028, %v1808
      %v1815 = vor.u32 %v1813, %v1814
      %v1816 = vshll.u32 2131351028, %v1807
      %v1817 = vshrl.u32 2102212464, %v1808
      %v1818 = vor.u32 %v1816, %v1817
      %v1819 = vshll.u32 2102212464, %v1807
      %v1820 = vshrl.u32 920167782, %v1808
      %v1821 = vor.u32 %v1819, %v1820
      %v1822 = vshll.u32 920167782, %v1807
      %v1823 = vshrl.u32 1326507024, %v1808
      %v1824 = vor.u32 %v1822, %v1823
      %vm1825 = vcmp.lt.s32.totalorder %v1806, 1
      %vm1826 = vcmp.lt.s32.totalorder %v1806, 2
      %vm1827 = vcmp.lt.s32.totalorder %v1806, 3
      %vm1828 = vcmp.lt.s32.totalorder %v1806, 4
      %v1829 = vsel %vm1825, %v1809, %v1812
      %v1830 = vsel %vm1828, %v1818, 2102212464
      %v1831 = vsel %vm1827, %v1815, %v1830
      %v1832 = vsel %vm1826, %v1829, %v1831
      %v1833 = vsel %vm1825, %v1812, %v1815
      %v1834 = vsel %vm1828, %v1821, 920167782
      %v1835 = vsel %vm1827, %v1818, %v1834
      %v1836 = vsel %vm1826, %v1833, %v1835
      %v1837 = vsel %vm1825, %v1815, %v1818
      %v1838 = vsel %vm1828, %v1824, 1326507024
      %v1839 = vsel %vm1827, %v1821, %v1838
      %v1840 = vsel %vm1826, %v1837, %v1839
      %v1841 = vshll.u32 %v1801, 8
      %v1842 = vmul.u32.u64.compose %v1841, %v1840
      %v1843 = vextract.low.u32 %v1842
      %v1844 = vextract.high.u32 %v1842
      %v1845 = vmul.u32.u64.compose %v1841, %v1836
      %v1846 = vextract.low.u32 %v1845
      %v1847 = vextract.high.u32 %v1845
      %v1848 = vmul.u32 %v1841, %v1832
      %v1849 = vadd.s32 %v1844, %v1846
      %vm1850 = vc.u32 %v1844, %v1846
      %v1851 = vadd.s32 %v1847, 1
      %v1852 = vsel %vm1850, %v1851, %v1847
      %v1853 = vadd.s32 %v1848, %v1852
      %v1854 = vadd.s32 %v1853, 536870912
      %v1855 = vshrl.u32 %v1854, 30
      %v1856 = vshll.u32 %v1855, 30
      %v1857 = vsub.s32 %v1853, %v1856
      %vm1858 = vcmp.lt.s32.totalorder %v1857, 0
      %v1859 = vsub.s32 0, %v1857
      %v1860 = vsel %vm1858, %v1859, %v1857
      %v1861 = vclz %v1860
      %v1862 = vsub.s32 %v1861, 2
      %vm1863 = vcmp.gt.s32.totalorder 0, %v1862
      %v1864 = vsel %vm1863, 0, %v1862
      %v1865 = vsub.s32 32, %v1864
      %v1866 = vshll.u32 %v1857, %v1864
      %v1867 = vshrl.u32 %v1849, %v1865
      %v1868 = vor.u32 %v1866, %v1867
      %v1869 = vsub.s32 4294967266, %v1864
      %v1870 = vadd.s32 %v1869, 127
      %v1871 = vshll.u32 %v1870, 23
      %v1872 = vor.u32 4788187, %v1871
      %v1873 = vand.u32 2147483647, %v1872
      %v1875 = vcvt.s32.f32 %v1868
      %v1876 = vmul.f32 %v1875, %v1873
      %v1877 = vxor.u32 %v1876, 2147483648
      %v1878 = vsel %vm1795, %v1877, %v1876
      %v1879 = vsub.s32 4, %v1855
      %v1880 = vsel %vm1795, %v1879, %v1855
      %v1881 = vsel %vm1794, %v443, %v1878
      %v1882 = vsel %vm1794, 0, %v1880
      %v1883 = vcosq.f32.pop %v1881
      %v1884 = vsinq.f32.pop %v1881
      %vm1885 = vweird.f32 %v443
      %v1886 = vand.u32 %v1882, 3
      %vm1887 = vcmp.lt.s32.totalorder %v1886, 2
      %vm1888 = vcmp.eq.s32.totalorder %v1886, 0
      %v1889 = vxor.u32 %v1884, 2147483648
      %v1890 = vsel %vm1888, %v1883, %v1889
      %vm1891 = vcmp.eq.s32.totalorder %v1886, 2
      %v1892 = vxor.u32 %v1883, 2147483648
      %v1893 = vsel %vm1891, %v1892, %v1884
      %v1894 = vsel %vm1887, %v1890, %v1893
      %v1895 = vsel %vm1885, nan, %v1894
      %v1896 = vand.u32 2147483647, %v448
      %vm1897 = vcmp.le.f32.partialorder %v1896, 0.7853982
      %vm1898 = vcmp.lt.s32.totalorder %v448, 0
      %v1899 = vand.u32 %v448, 2139095040
      %v1900 = vshrl.u32 %v1899, 23
      %v1901 = vsub.s32 %v1900, 127
      %v1902 = vand.u32 2147483647, %v448
      %v1903 = vand.u32 %v1902, 8388607
      %v1904 = vor.u32 %v1903, 8388608
      %v1905 = vsub.s32 0, %v1904
      %v1906 = vadd.s32 %v1901, 1
      %vm1907 = vcmp.gt.s32.totalorder %v1906, 0
      %v1908 = vsel %vm1907, %v1906, 0
      %v1909 = vshrl.u32 %v1908, 5
      %v1910 = vand.u32 %v1908, 31
      %v1911 = vsub.s32 32, %v1910
      %v1912 = vshrl.u32 683565275, %v1911
      %v1913 = vshll.u32 683565275, %v1910
      %v1914 = vshrl.u32 2475754826, %v1911
      %v1915 = vor.u32 %v1913, %v1914
      %v1916 = vshll.u32 2475754826, %v1910
      %v1917 = vshrl.u32 2131351028, %v1911
      %v1918 = vor.u32 %v1916, %v1917
      %v1919 = vshll.u32 2131351028, %v1910
      %v1920 = vshrl.u32 2102212464, %v1911
      %v1921 = vor.u32 %v1919, %v1920
      %v1922 = vshll.u32 2102212464, %v1910
      %v1923 = vshrl.u32 920167782, %v1911
      %v1924 = vor.u32 %v1922, %v1923
      %v1925 = vshll.u32 920167782, %v1910
      %v1926 = vshrl.u32 1326507024, %v1911
      %v1927 = vor.u32 %v1925, %v1926
      %vm1928 = vcmp.lt.s32.totalorder %v1909, 1
      %vm1929 = vcmp.lt.s32.totalorder %v1909, 2
      %vm1930 = vcmp.lt.s32.totalorder %v1909, 3
      %vm1931 = vcmp.lt.s32.totalorder %v1909, 4
      %v1932 = vsel %vm1928, %v1912, %v1915
      %v1933 = vsel %vm1931, %v1921, 2102212464
      %v1934 = vsel %vm1930, %v1918, %v1933
      %v1935 = vsel %vm1929, %v1932, %v1934
      %v1936 = vsel %vm1928, %v1915, %v1918
      %v1937 = vsel %vm1931, %v1924, 920167782
      %v1938 = vsel %vm1930, %v1921, %v1937
      %v1939 = vsel %vm1929, %v1936, %v1938
      %v1940 = vsel %vm1928, %v1918, %v1921
      %v1941 = vsel %vm1931, %v1927, 1326507024
      %v1942 = vsel %vm1930, %v1924, %v1941
      %v1943 = vsel %vm1929, %v1940, %v1942
      %v1944 = vshll.u32 %v1904, 8
      %v1945 = vmul.u32.u64.compose %v1944, %v1943
      %v1946 = vextract.low.u32 %v1945
      %v1947 = vextract.high.u32 %v1945
      %v1948 = vmul.u32.u64.compose %v1944, %v1939
      %v1949 = vextract.low.u32 %v1948
      %v1950 = vextract.high.u32 %v1948
      %v1951 = vmul.u32 %v1944, %v1935
      %v1952 = vadd.s32 %v1947, %v1949
      %vm1953 = vc.u32 %v1947, %v1949
      %v1954 = vadd.s32 %v1950, 1
      %v1955 = vsel %vm1953, %v1954, %v1950
      %v1956 = vadd.s32 %v1951, %v1955
      %v1957 = vadd.s32 %v1956, 536870912
      %v1958 = vshrl.u32 %v1957, 30
      %v1959 = vshll.u32 %v1958, 30
      %v1960 = vsub.s32 %v1956, %v1959
      %vm1961 = vcmp.lt.s32.totalorder %v1960, 0
      %v1962 = vsub.s32 0, %v1960
      %v1963 = vsel %vm1961, %v1962, %v1960
      %v1964 = vclz %v1963
      %v1965 = vsub.s32 %v1964, 2
      %vm1966 = vcmp.gt.s32.totalorder 0, %v1965
      %v1967 = vsel %vm1966, 0, %v1965
      %v1968 = vsub.s32 32, %v1967
      %v1969 = vshll.u32 %v1960, %v1967
      %v1970 = vshrl.u32 %v1952, %v1968
      %v1971 = vor.u32 %v1969, %v1970
      %v1972 = vsub.s32 4294967266, %v1967
      %v1973 = vadd.s32 %v1972, 127
      %v1974 = vshll.u32 %v1973, 23
      %v1975 = vor.u32 4788187, %v1974
      %v1976 = vand.u32 2147483647, %v1975
      %v1978 = vcvt.s32.f32 %v1971
      %v1979 = vmul.f32 %v1978, %v1976
      %v1980 = vxor.u32 %v1979, 2147483648
      %v1981 = vsel %vm1898, %v1980, %v1979
      %v1982 = vsub.s32 4, %v1958
      %v1983 = vsel %vm1898, %v1982, %v1958
      %v1984 = vsel %vm1897, %v448, %v1981
      %v1985 = vsel %vm1897, 0, %v1983
      %v1986 = vcosq.f32.pop %v1984
      %v1987 = vsinq.f32.pop %v1984
      %vm1988 = vweird.f32 %v448
      %v1989 = vand.u32 %v1985, 3
      %vm1990 = vcmp.lt.s32.totalorder %v1989, 2
      %vm1991 = vcmp.eq.s32.totalorder %v1989, 0
      %v1992 = vxor.u32 %v1987, 2147483648
      %v1993 = vsel %vm1991, %v1986, %v1992
      %vm1994 = vcmp.eq.s32.totalorder %v1989, 2
      %v1995 = vxor.u32 %v1986, 2147483648
      %v1996 = vsel %vm1994, %v1995, %v1987
      %v1997 = vsel %vm1990, %v1993, %v1996
      %v1998 = vsel %vm1988, nan, %v1997
      %v1999 = vand.u32 2147483647, %v451
      %vm2000 = vcmp.le.f32.partialorder %v1999, 0.7853982
      %vm2001 = vcmp.lt.s32.totalorder %v451, 0
      %v2002 = vand.u32 %v451, 2139095040
      %v2003 = vshrl.u32 %v2002, 23
      %v2004 = vsub.s32 %v2003, 127
      %v2005 = vand.u32 2147483647, %v451
      %v2006 = vand.u32 %v2005, 8388607
      %v2007 = vor.u32 %v2006, 8388608
      %v2008 = vsub.s32 0, %v2007
      %v2009 = vadd.s32 %v2004, 1
      %vm2010 = vcmp.gt.s32.totalorder %v2009, 0
      %v2011 = vsel %vm2010, %v2009, 0
      %v2012 = vshrl.u32 %v2011, 5
      %v2013 = vand.u32 %v2011, 31
      %v2014 = vsub.s32 32, %v2013
      %v2015 = vshrl.u32 683565275, %v2014
      %v2016 = vshll.u32 683565275, %v2013
      %v2017 = vshrl.u32 2475754826, %v2014
      %v2018 = vor.u32 %v2016, %v2017
      %v2019 = vshll.u32 2475754826, %v2013
      %v2020 = vshrl.u32 2131351028, %v2014
      %v2021 = vor.u32 %v2019, %v2020
      %v2022 = vshll.u32 2131351028, %v2013
      %v2023 = vshrl.u32 2102212464, %v2014
      %v2024 = vor.u32 %v2022, %v2023
      %v2025 = vshll.u32 2102212464, %v2013
      %v2026 = vshrl.u32 920167782, %v2014
      %v2027 = vor.u32 %v2025, %v2026
      %v2028 = vshll.u32 920167782, %v2013
      %v2029 = vshrl.u32 1326507024, %v2014
      %v2030 = vor.u32 %v2028, %v2029
      %vm2031 = vcmp.lt.s32.totalorder %v2012, 1
      %vm2032 = vcmp.lt.s32.totalorder %v2012, 2
      %vm2033 = vcmp.lt.s32.totalorder %v2012, 3
      %vm2034 = vcmp.lt.s32.totalorder %v2012, 4
      %v2035 = vsel %vm2031, %v2015, %v2018
      %v2036 = vsel %vm2034, %v2024, 2102212464
      %v2037 = vsel %vm2033, %v2021, %v2036
      %v2038 = vsel %vm2032, %v2035, %v2037
      %v2039 = vsel %vm2031, %v2018, %v2021
      %v2040 = vsel %vm2034, %v2027, 920167782
      %v2041 = vsel %vm2033, %v2024, %v2040
      %v2042 = vsel %vm2032, %v2039, %v2041
      %v2043 = vsel %vm2031, %v2021, %v2024
      %v2044 = vsel %vm2034, %v2030, 1326507024
      %v2045 = vsel %vm2033, %v2027, %v2044
      %v2046 = vsel %vm2032, %v2043, %v2045
      %v2047 = vshll.u32 %v2007, 8
      %v2048 = vmul.u32.u64.compose %v2047, %v2046
      %v2049 = vextract.low.u32 %v2048
      %v2050 = vextract.high.u32 %v2048
      %v2051 = vmul.u32.u64.compose %v2047, %v2042
      %v2052 = vextract.low.u32 %v2051
      %v2053 = vextract.high.u32 %v2051
      %v2054 = vmul.u32 %v2047, %v2038
      %v2055 = vadd.s32 %v2050, %v2052
      %vm2056 = vc.u32 %v2050, %v2052
      %v2057 = vadd.s32 %v2053, 1
      %v2058 = vsel %vm2056, %v2057, %v2053
      %v2059 = vadd.s32 %v2054, %v2058
      %v2060 = vadd.s32 %v2059, 536870912
      %v2061 = vshrl.u32 %v2060, 30
      %v2062 = vshll.u32 %v2061, 30
      %v2063 = vsub.s32 %v2059, %v2062
      %vm2064 = vcmp.lt.s32.totalorder %v2063, 0
      %v2065 = vsub.s32 0, %v2063
      %v2066 = vsel %vm2064, %v2065, %v2063
      %v2067 = vclz %v2066
      %v2068 = vsub.s32 %v2067, 2
      %vm2069 = vcmp.gt.s32.totalorder 0, %v2068
      %v2070 = vsel %vm2069, 0, %v2068
      %v2071 = vsub.s32 32, %v2070
      %v2072 = vshll.u32 %v2063, %v2070
      %v2073 = vshrl.u32 %v2055, %v2071
      %v2074 = vor.u32 %v2072, %v2073
      %v2075 = vsub.s32 4294967266, %v2070
      %v2076 = vadd.s32 %v2075, 127
      %v2077 = vshll.u32 %v2076, 23
      %v2078 = vor.u32 4788187, %v2077
      %v2079 = vand.u32 2147483647, %v2078
      %v2081 = vcvt.s32.f32 %v2074
      %v2082 = vmul.f32 %v2081, %v2079
      %v2083 = vxor.u32 %v2082, 2147483648
      %v2084 = vsel %vm2001, %v2083, %v2082
      %v2085 = vsub.s32 4, %v2061
      %v2086 = vsel %vm2001, %v2085, %v2061
      %v2087 = vsel %vm2000, %v451, %v2084
      %v2088 = vsel %vm2000, 0, %v2086
      %v2089 = vcosq.f32.pop %v2087
      %v2090 = vsinq.f32.pop %v2087
      %vm2091 = vweird.f32 %v451
      %v2092 = vand.u32 %v2088, 3
      %vm2093 = vcmp.lt.s32.totalorder %v2092, 2
      %vm2094 = vcmp.eq.s32.totalorder %v2092, 0
      %v2095 = vxor.u32 %v2090, 2147483648
      %v2096 = vsel %vm2094, %v2089, %v2095
      %vm2097 = vcmp.eq.s32.totalorder %v2092, 2
      %v2098 = vxor.u32 %v2089, 2147483648
      %v2099 = vsel %vm2097, %v2098, %v2090
      %v2100 = vsel %vm2093, %v2096, %v2099
      %v2101 = vsel %vm2091, nan, %v2100
      %v2102 = vand.u32 2147483647, %v392
      %vm2103 = vcmp.le.f32.partialorder %v2102, 0.7853982
      %vm2104 = vcmp.lt.s32.totalorder %v392, 0
      %v2105 = vand.u32 %v392, 2139095040
      %v2106 = vshrl.u32 %v2105, 23
      %v2107 = vsub.s32 %v2106, 127
      %v2108 = vand.u32 2147483647, %v392
      %v2109 = vand.u32 %v2108, 8388607
      %v2110 = vor.u32 %v2109, 8388608
      %v2111 = vsub.s32 0, %v2110
      %v2112 = vadd.s32 %v2107, 1
      %vm2113 = vcmp.gt.s32.totalorder %v2112, 0
      %v2114 = vsel %vm2113, %v2112, 0
      %v2115 = vshrl.u32 %v2114, 5
      %v2116 = vand.u32 %v2114, 31
      %v2117 = vsub.s32 32, %v2116
      %v2118 = vshrl.u32 683565275, %v2117
      %v2119 = vshll.u32 683565275, %v2116
      %v2120 = vshrl.u32 2475754826, %v2117
      %v2121 = vor.u32 %v2119, %v2120
      %v2122 = vshll.u32 2475754826, %v2116
      %v2123 = vshrl.u32 2131351028, %v2117
      %v2124 = vor.u32 %v2122, %v2123
      %v2125 = vshll.u32 2131351028, %v2116
      %v2126 = vshrl.u32 2102212464, %v2117
      %v2127 = vor.u32 %v2125, %v2126
      %v2128 = vshll.u32 2102212464, %v2116
      %v2129 = vshrl.u32 920167782, %v2117
      %v2130 = vor.u32 %v2128, %v2129
      %v2131 = vshll.u32 920167782, %v2116
      %v2132 = vshrl.u32 1326507024, %v2117
      %v2133 = vor.u32 %v2131, %v2132
      %vm2134 = vcmp.lt.s32.totalorder %v2115, 1
      %vm2135 = vcmp.lt.s32.totalorder %v2115, 2
      %vm2136 = vcmp.lt.s32.totalorder %v2115, 3
      %vm2137 = vcmp.lt.s32.totalorder %v2115, 4
      %v2138 = vsel %vm2134, %v2118, %v2121
      %v2139 = vsel %vm2137, %v2127, 2102212464
      %v2140 = vsel %vm2136, %v2124, %v2139
      %v2141 = vsel %vm2135, %v2138, %v2140
      %v2142 = vsel %vm2134, %v2121, %v2124
      %v2143 = vsel %vm2137, %v2130, 920167782
      %v2144 = vsel %vm2136, %v2127, %v2143
      %v2145 = vsel %vm2135, %v2142, %v2144
      %v2146 = vsel %vm2134, %v2124, %v2127
      %v2147 = vsel %vm2137, %v2133, 1326507024
      %v2148 = vsel %vm2136, %v2130, %v2147
      %v2149 = vsel %vm2135, %v2146, %v2148
      %v2150 = vshll.u32 %v2110, 8
      %v2151 = vmul.u32.u64.compose %v2150, %v2149
      %v2152 = vextract.low.u32 %v2151
      %v2153 = vextract.high.u32 %v2151
      %v2154 = vmul.u32.u64.compose %v2150, %v2145
      %v2155 = vextract.low.u32 %v2154
      %v2156 = vextract.high.u32 %v2154
      %v2157 = vmul.u32 %v2150, %v2141
      %v2158 = vadd.s32 %v2153, %v2155
      %vm2159 = vc.u32 %v2153, %v2155
      %v2160 = vadd.s32 %v2156, 1
      %v2161 = vsel %vm2159, %v2160, %v2156
      %v2162 = vadd.s32 %v2157, %v2161
      %v2163 = vadd.s32 %v2162, 536870912
      %v2164 = vshrl.u32 %v2163, 30
      %v2165 = vshll.u32 %v2164, 30
      %v2166 = vsub.s32 %v2162, %v2165
      %vm2167 = vcmp.lt.s32.totalorder %v2166, 0
      %v2168 = vsub.s32 0, %v2166
      %v2169 = vsel %vm2167, %v2168, %v2166
      %v2170 = vclz %v2169
      %v2171 = vsub.s32 %v2170, 2
      %vm2172 = vcmp.gt.s32.totalorder 0, %v2171
      %v2173 = vsel %vm2172, 0, %v2171
      %v2174 = vsub.s32 32, %v2173
      %v2175 = vshll.u32 %v2166, %v2173
      %v2176 = vshrl.u32 %v2158, %v2174
      %v2177 = vor.u32 %v2175, %v2176
      %v2178 = vsub.s32 4294967266, %v2173
      %v2179 = vadd.s32 %v2178, 127
      %v2180 = vshll.u32 %v2179, 23
      %v2181 = vor.u32 4788187, %v2180
      %v2182 = vand.u32 2147483647, %v2181
      %v2184 = vcvt.s32.f32 %v2177
      %v2185 = vmul.f32 %v2184, %v2182
      %v2186 = vxor.u32 %v2185, 2147483648
      %v2187 = vsel %vm2104, %v2186, %v2185
      %v2188 = vsub.s32 4, %v2164
      %v2189 = vsel %vm2104, %v2188, %v2164
      %v2190 = vsel %vm2103, %v392, %v2187
      %v2191 = vsel %vm2103, 0, %v2189
      %v2192 = vcosq.f32.pop %v2190
      %v2193 = vsinq.f32.pop %v2190
      %vm2194 = vweird.f32 %v392
      %v2195 = vadd.s32 %v2191, 3
      %v2196 = vand.u32 %v2195, 3
      %vm2197 = vcmp.lt.s32.totalorder %v2196, 2
      %vm2198 = vcmp.eq.s32.totalorder %v2196, 0
      %v2199 = vxor.u32 %v2193, 2147483648
      %v2200 = vsel %vm2198, %v2192, %v2199
      %vm2201 = vcmp.eq.s32.totalorder %v2196, 2
      %v2202 = vxor.u32 %v2192, 2147483648
      %v2203 = vsel %vm2201, %v2202, %v2193
      %v2204 = vsel %vm2197, %v2200, %v2203
      %v2205 = vsel %vm2194, nan, %v2204
      %v2206 = vand.u32 2147483647, %v395
      %vm2207 = vcmp.le.f32.partialorder %v2206, 0.7853982
      %vm2208 = vcmp.lt.s32.totalorder %v395, 0
      %v2209 = vand.u32 %v395, 2139095040
      %v2210 = vshrl.u32 %v2209, 23
      %v2211 = vsub.s32 %v2210, 127
      %v2212 = vand.u32 2147483647, %v395
      %v2213 = vand.u32 %v2212, 8388607
      %v2214 = vor.u32 %v2213, 8388608
      %v2215 = vsub.s32 0, %v2214
      %v2216 = vadd.s32 %v2211, 1
      %vm2217 = vcmp.gt.s32.totalorder %v2216, 0
      %v2218 = vsel %vm2217, %v2216, 0
      %v2219 = vshrl.u32 %v2218, 5
      %v2220 = vand.u32 %v2218, 31
      %v2221 = vsub.s32 32, %v2220
      %v2222 = vshrl.u32 683565275, %v2221
      %v2223 = vshll.u32 683565275, %v2220
      %v2224 = vshrl.u32 2475754826, %v2221
      %v2225 = vor.u32 %v2223, %v2224
      %v2226 = vshll.u32 2475754826, %v2220
      %v2227 = vshrl.u32 2131351028, %v2221
      %v2228 = vor.u32 %v2226, %v2227
      %v2229 = vshll.u32 2131351028, %v2220
      %v2230 = vshrl.u32 2102212464, %v2221
      %v2231 = vor.u32 %v2229, %v2230
      %v2232 = vshll.u32 2102212464, %v2220
      %v2233 = vshrl.u32 920167782, %v2221
      %v2234 = vor.u32 %v2232, %v2233
      %v2235 = vshll.u32 920167782, %v2220
      %v2236 = vshrl.u32 1326507024, %v2221
      %v2237 = vor.u32 %v2235, %v2236
      %vm2238 = vcmp.lt.s32.totalorder %v2219, 1
      %vm2239 = vcmp.lt.s32.totalorder %v2219, 2
      %vm2240 = vcmp.lt.s32.totalorder %v2219, 3
      %vm2241 = vcmp.lt.s32.totalorder %v2219, 4
      %v2242 = vsel %vm2238, %v2222, %v2225
      %v2243 = vsel %vm2241, %v2231, 2102212464
      %v2244 = vsel %vm2240, %v2228, %v2243
      %v2245 = vsel %vm2239, %v2242, %v2244
      %v2246 = vsel %vm2238, %v2225, %v2228
      %v2247 = vsel %vm2241, %v2234, 920167782
      %v2248 = vsel %vm2240, %v2231, %v2247
      %v2249 = vsel %vm2239, %v2246, %v2248
      %v2250 = vsel %vm2238, %v2228, %v2231
      %v2251 = vsel %vm2241, %v2237, 1326507024
      %v2252 = vsel %vm2240, %v2234, %v2251
      %v2253 = vsel %vm2239, %v2250, %v2252
      %v2254 = vshll.u32 %v2214, 8
      %v2255 = vmul.u32.u64.compose %v2254, %v2253
      %v2256 = vextract.low.u32 %v2255
      %v2257 = vextract.high.u32 %v2255
      %v2258 = vmul.u32.u64.compose %v2254, %v2249
      %v2259 = vextract.low.u32 %v2258
      %v2260 = vextract.high.u32 %v2258
      %v2261 = vmul.u32 %v2254, %v2245
      %v2262 = vadd.s32 %v2257, %v2259
      %vm2263 = vc.u32 %v2257, %v2259
      %v2264 = vadd.s32 %v2260, 1
      %v2265 = vsel %vm2263, %v2264, %v2260
      %v2266 = vadd.s32 %v2261, %v2265
      %v2267 = vadd.s32 %v2266, 536870912
      %v2268 = vshrl.u32 %v2267, 30
      %v2269 = vshll.u32 %v2268, 30
      %v2270 = vsub.s32 %v2266, %v2269
      %vm2271 = vcmp.lt.s32.totalorder %v2270, 0
      %v2272 = vsub.s32 0, %v2270
      %v2273 = vsel %vm2271, %v2272, %v2270
      %v2274 = vclz %v2273
      %v2275 = vsub.s32 %v2274, 2
      %vm2276 = vcmp.gt.s32.totalorder 0, %v2275
      %v2277 = vsel %vm2276, 0, %v2275
      %v2278 = vsub.s32 32, %v2277
      %v2279 = vshll.u32 %v2270, %v2277
      %v2280 = vshrl.u32 %v2262, %v2278
      %v2281 = vor.u32 %v2279, %v2280
      %v2282 = vsub.s32 4294967266, %v2277
      %v2283 = vadd.s32 %v2282, 127
      %v2284 = vshll.u32 %v2283, 23
      %v2285 = vor.u32 4788187, %v2284
      %v2286 = vand.u32 2147483647, %v2285
      %v2288 = vcvt.s32.f32 %v2281
      %v2289 = vmul.f32 %v2288, %v2286
      %v2290 = vxor.u32 %v2289, 2147483648
      %v2291 = vsel %vm2208, %v2290, %v2289
      %v2292 = vsub.s32 4, %v2268
      %v2293 = vsel %vm2208, %v2292, %v2268
      %v2294 = vsel %vm2207, %v395, %v2291
      %v2295 = vsel %vm2207, 0, %v2293
      %v2296 = vcosq.f32.pop %v2294
      %v2297 = vsinq.f32.pop %v2294
      %vm2298 = vweird.f32 %v395
      %v2299 = vadd.s32 %v2295, 3
      %v2300 = vand.u32 %v2299, 3
      %vm2301 = vcmp.lt.s32.totalorder %v2300, 2
      %vm2302 = vcmp.eq.s32.totalorder %v2300, 0
      %v2303 = vxor.u32 %v2297, 2147483648
      %v2304 = vsel %vm2302, %v2296, %v2303
      %vm2305 = vcmp.eq.s32.totalorder %v2300, 2
      %v2306 = vxor.u32 %v2296, 2147483648
      %v2307 = vsel %vm2305, %v2306, %v2297
      %v2308 = vsel %vm2301, %v2304, %v2307
      %v2309 = vsel %vm2298, nan, %v2308
      %v2310 = vand.u32 2147483647, %v400
      %vm2311 = vcmp.le.f32.partialorder %v2310, 0.7853982
      %vm2312 = vcmp.lt.s32.totalorder %v400, 0
      %v2313 = vand.u32 %v400, 2139095040
      %v2314 = vshrl.u32 %v2313, 23
      %v2315 = vsub.s32 %v2314, 127
      %v2316 = vand.u32 2147483647, %v400
      %v2317 = vand.u32 %v2316, 8388607
      %v2318 = vor.u32 %v2317, 8388608
      %v2319 = vsub.s32 0, %v2318
      %v2320 = vadd.s32 %v2315, 1
      %vm2321 = vcmp.gt.s32.totalorder %v2320, 0
      %v2322 = vsel %vm2321, %v2320, 0
      %v2323 = vshrl.u32 %v2322, 5
      %v2324 = vand.u32 %v2322, 31
      %v2325 = vsub.s32 32, %v2324
      %v2326 = vshrl.u32 683565275, %v2325
      %v2327 = vshll.u32 683565275, %v2324
      %v2328 = vshrl.u32 2475754826, %v2325
      %v2329 = vor.u32 %v2327, %v2328
      %v2330 = vshll.u32 2475754826, %v2324
      %v2331 = vshrl.u32 2131351028, %v2325
      %v2332 = vor.u32 %v2330, %v2331
      %v2333 = vshll.u32 2131351028, %v2324
      %v2334 = vshrl.u32 2102212464, %v2325
      %v2335 = vor.u32 %v2333, %v2334
      %v2336 = vshll.u32 2102212464, %v2324
      %v2337 = vshrl.u32 920167782, %v2325
      %v2338 = vor.u32 %v2336, %v2337
      %v2339 = vshll.u32 920167782, %v2324
      %v2340 = vshrl.u32 1326507024, %v2325
      %v2341 = vor.u32 %v2339, %v2340
      %vm2342 = vcmp.lt.s32.totalorder %v2323, 1
      %vm2343 = vcmp.lt.s32.totalorder %v2323, 2
      %vm2344 = vcmp.lt.s32.totalorder %v2323, 3
      %vm2345 = vcmp.lt.s32.totalorder %v2323, 4
      %v2346 = vsel %vm2342, %v2326, %v2329
      %v2347 = vsel %vm2345, %v2335, 2102212464
      %v2348 = vsel %vm2344, %v2332, %v2347
      %v2349 = vsel %vm2343, %v2346, %v2348
      %v2350 = vsel %vm2342, %v2329, %v2332
      %v2351 = vsel %vm2345, %v2338, 920167782
      %v2352 = vsel %vm2344, %v2335, %v2351
      %v2353 = vsel %vm2343, %v2350, %v2352
      %v2354 = vsel %vm2342, %v2332, %v2335
      %v2355 = vsel %vm2345, %v2341, 1326507024
      %v2356 = vsel %vm2344, %v2338, %v2355
      %v2357 = vsel %vm2343, %v2354, %v2356
      %v2358 = vshll.u32 %v2318, 8
      %v2359 = vmul.u32.u64.compose %v2358, %v2357
      %v2360 = vextract.low.u32 %v2359
      %v2361 = vextract.high.u32 %v2359
      %v2362 = vmul.u32.u64.compose %v2358, %v2353
      %v2363 = vextract.low.u32 %v2362
      %v2364 = vextract.high.u32 %v2362
      %v2365 = vmul.u32 %v2358, %v2349
      %v2366 = vadd.s32 %v2361, %v2363
      %vm2367 = vc.u32 %v2361, %v2363
      %v2368 = vadd.s32 %v2364, 1
      %v2369 = vsel %vm2367, %v2368, %v2364
      %v2370 = vadd.s32 %v2365, %v2369
      %v2371 = vadd.s32 %v2370, 536870912
      %v2372 = vshrl.u32 %v2371, 30
      %v2373 = vshll.u32 %v2372, 30
      %v2374 = vsub.s32 %v2370, %v2373
      %vm2375 = vcmp.lt.s32.totalorder %v2374, 0
      %v2376 = vsub.s32 0, %v2374
      %v2377 = vsel %vm2375, %v2376, %v2374
      %v2378 = vclz %v2377
      %v2379 = vsub.s32 %v2378, 2
      %vm2380 = vcmp.gt.s32.totalorder 0, %v2379
      %v2381 = vsel %vm2380, 0, %v2379
      %v2382 = vsub.s32 32, %v2381
      %v2383 = vshll.u32 %v2374, %v2381
      %v2384 = vshrl.u32 %v2366, %v2382
      %v2385 = vor.u32 %v2383, %v2384
      %v2386 = vsub.s32 4294967266, %v2381
      %v2387 = vadd.s32 %v2386, 127
      %v2388 = vshll.u32 %v2387, 23
      %v2389 = vor.u32 4788187, %v2388
      %v2390 = vand.u32 2147483647, %v2389
      %v2392 = vcvt.s32.f32 %v2385
      %v2393 = vmul.f32 %v2392, %v2390
      %v2394 = vxor.u32 %v2393, 2147483648
      %v2395 = vsel %vm2312, %v2394, %v2393
      %v2396 = vsub.s32 4, %v2372
      %v2397 = vsel %vm2312, %v2396, %v2372
      %v2398 = vsel %vm2311, %v400, %v2395
      %v2399 = vsel %vm2311, 0, %v2397
      %v2400 = vcosq.f32.pop %v2398
      %v2401 = vsinq.f32.pop %v2398
      %vm2402 = vweird.f32 %v400
      %v2403 = vadd.s32 %v2399, 3
      %v2404 = vand.u32 %v2403, 3
      %vm2405 = vcmp.lt.s32.totalorder %v2404, 2
      %vm2406 = vcmp.eq.s32.totalorder %v2404, 0
      %v2407 = vxor.u32 %v2401, 2147483648
      %v2408 = vsel %vm2406, %v2400, %v2407
      %vm2409 = vcmp.eq.s32.totalorder %v2404, 2
      %v2410 = vxor.u32 %v2400, 2147483648
      %v2411 = vsel %vm2409, %v2410, %v2401
      %v2412 = vsel %vm2405, %v2408, %v2411
      %v2413 = vsel %vm2402, nan, %v2412
      %v2414 = vand.u32 2147483647, %v403
      %vm2415 = vcmp.le.f32.partialorder %v2414, 0.7853982
      %vm2416 = vcmp.lt.s32.totalorder %v403, 0
      %v2417 = vand.u32 %v403, 2139095040
      %v2418 = vshrl.u32 %v2417, 23
      %v2419 = vsub.s32 %v2418, 127
      %v2420 = vand.u32 2147483647, %v403
      %v2421 = vand.u32 %v2420, 8388607
      %v2422 = vor.u32 %v2421, 8388608
      %v2423 = vsub.s32 0, %v2422
      %v2424 = vadd.s32 %v2419, 1
      %vm2425 = vcmp.gt.s32.totalorder %v2424, 0
      %v2426 = vsel %vm2425, %v2424, 0
      %v2427 = vshrl.u32 %v2426, 5
      %v2428 = vand.u32 %v2426, 31
      %v2429 = vsub.s32 32, %v2428
      %v2430 = vshrl.u32 683565275, %v2429
      %v2431 = vshll.u32 683565275, %v2428
      %v2432 = vshrl.u32 2475754826, %v2429
      %v2433 = vor.u32 %v2431, %v2432
      %v2434 = vshll.u32 2475754826, %v2428
      %v2435 = vshrl.u32 2131351028, %v2429
      %v2436 = vor.u32 %v2434, %v2435
      %v2437 = vshll.u32 2131351028, %v2428
      %v2438 = vshrl.u32 2102212464, %v2429
      %v2439 = vor.u32 %v2437, %v2438
      %v2440 = vshll.u32 2102212464, %v2428
      %v2441 = vshrl.u32 920167782, %v2429
      %v2442 = vor.u32 %v2440, %v2441
      %v2443 = vshll.u32 920167782, %v2428
      %v2444 = vshrl.u32 1326507024, %v2429
      %v2445 = vor.u32 %v2443, %v2444
      %vm2446 = vcmp.lt.s32.totalorder %v2427, 1
      %vm2447 = vcmp.lt.s32.totalorder %v2427, 2
      %vm2448 = vcmp.lt.s32.totalorder %v2427, 3
      %vm2449 = vcmp.lt.s32.totalorder %v2427, 4
      %v2450 = vsel %vm2446, %v2430, %v2433
      %v2451 = vsel %vm2449, %v2439, 2102212464
      %v2452 = vsel %vm2448, %v2436, %v2451
      %v2453 = vsel %vm2447, %v2450, %v2452
      %v2454 = vsel %vm2446, %v2433, %v2436
      %v2455 = vsel %vm2449, %v2442, 920167782
      %v2456 = vsel %vm2448, %v2439, %v2455
      %v2457 = vsel %vm2447, %v2454, %v2456
      %v2458 = vsel %vm2446, %v2436, %v2439
      %v2459 = vsel %vm2449, %v2445, 1326507024
      %v2460 = vsel %vm2448, %v2442, %v2459
      %v2461 = vsel %vm2447, %v2458, %v2460
      %v2462 = vshll.u32 %v2422, 8
      %v2463 = vmul.u32.u64.compose %v2462, %v2461
      %v2464 = vextract.low.u32 %v2463
      %v2465 = vextract.high.u32 %v2463
      %v2466 = vmul.u32.u64.compose %v2462, %v2457
      %v2467 = vextract.low.u32 %v2466
      %v2468 = vextract.high.u32 %v2466
      %v2469 = vmul.u32 %v2462, %v2453
      %v2470 = vadd.s32 %v2465, %v2467
      %vm2471 = vc.u32 %v2465, %v2467
      %v2472 = vadd.s32 %v2468, 1
      %v2473 = vsel %vm2471, %v2472, %v2468
      %v2474 = vadd.s32 %v2469, %v2473
      %v2475 = vadd.s32 %v2474, 536870912
      %v2476 = vshrl.u32 %v2475, 30
      %v2477 = vshll.u32 %v2476, 30
      %v2478 = vsub.s32 %v2474, %v2477
      %vm2479 = vcmp.lt.s32.totalorder %v2478, 0
      %v2480 = vsub.s32 0, %v2478
      %v2481 = vsel %vm2479, %v2480, %v2478
      %v2482 = vclz %v2481
      %v2483 = vsub.s32 %v2482, 2
      %vm2484 = vcmp.gt.s32.totalorder 0, %v2483
      %v2485 = vsel %vm2484, 0, %v2483
      %v2486 = vsub.s32 32, %v2485
      %v2487 = vshll.u32 %v2478, %v2485
      %v2488 = vshrl.u32 %v2470, %v2486
      %v2489 = vor.u32 %v2487, %v2488
      %v2490 = vsub.s32 4294967266, %v2485
      %v2491 = vadd.s32 %v2490, 127
      %v2492 = vshll.u32 %v2491, 23
      %v2493 = vor.u32 4788187, %v2492
      %v2494 = vand.u32 2147483647, %v2493
      %v2496 = vcvt.s32.f32 %v2489
      %v2497 = vmul.f32 %v2496, %v2494
      %v2498 = vxor.u32 %v2497, 2147483648
      %v2499 = vsel %vm2416, %v2498, %v2497
      %v2500 = vsub.s32 4, %v2476
      %v2501 = vsel %vm2416, %v2500, %v2476
      %v2502 = vsel %vm2415, %v403, %v2499
      %v2503 = vsel %vm2415, 0, %v2501
      %v2504 = vcosq.f32.pop %v2502
      %v2505 = vsinq.f32.pop %v2502
      %vm2506 = vweird.f32 %v403
      %v2507 = vadd.s32 %v2503, 3
      %v2508 = vand.u32 %v2507, 3
      %vm2509 = vcmp.lt.s32.totalorder %v2508, 2
      %vm2510 = vcmp.eq.s32.totalorder %v2508, 0
      %v2511 = vxor.u32 %v2505, 2147483648
      %v2512 = vsel %vm2510, %v2504, %v2511
      %vm2513 = vcmp.eq.s32.totalorder %v2508, 2
      %v2514 = vxor.u32 %v2504, 2147483648
      %v2515 = vsel %vm2513, %v2514, %v2505
      %v2516 = vsel %vm2509, %v2512, %v2515
      %v2517 = vsel %vm2506, nan, %v2516
      %v2518 = vand.u32 2147483647, %v408
      %vm2519 = vcmp.le.f32.partialorder %v2518, 0.7853982
      %vm2520 = vcmp.lt.s32.totalorder %v408, 0
      %v2521 = vand.u32 %v408, 2139095040
      %v2522 = vshrl.u32 %v2521, 23
      %v2523 = vsub.s32 %v2522, 127
      %v2524 = vand.u32 2147483647, %v408
      %v2525 = vand.u32 %v2524, 8388607
      %v2526 = vor.u32 %v2525, 8388608
      %v2527 = vsub.s32 0, %v2526
      %v2528 = vadd.s32 %v2523, 1
      %vm2529 = vcmp.gt.s32.totalorder %v2528, 0
      %v2530 = vsel %vm2529, %v2528, 0
      %v2531 = vshrl.u32 %v2530, 5
      %v2532 = vand.u32 %v2530, 31
      %v2533 = vsub.s32 32, %v2532
      %v2534 = vshrl.u32 683565275, %v2533
      %v2535 = vshll.u32 683565275, %v2532
      %v2536 = vshrl.u32 2475754826, %v2533
      %v2537 = vor.u32 %v2535, %v2536
      %v2538 = vshll.u32 2475754826, %v2532
      %v2539 = vshrl.u32 2131351028, %v2533
      %v2540 = vor.u32 %v2538, %v2539
      %v2541 = vshll.u32 2131351028, %v2532
      %v2542 = vshrl.u32 2102212464, %v2533
      %v2543 = vor.u32 %v2541, %v2542
      %v2544 = vshll.u32 2102212464, %v2532
      %v2545 = vshrl.u32 920167782, %v2533
      %v2546 = vor.u32 %v2544, %v2545
      %v2547 = vshll.u32 920167782, %v2532
      %v2548 = vshrl.u32 1326507024, %v2533
      %v2549 = vor.u32 %v2547, %v2548
      %vm2550 = vcmp.lt.s32.totalorder %v2531, 1
      %vm2551 = vcmp.lt.s32.totalorder %v2531, 2
      %vm2552 = vcmp.lt.s32.totalorder %v2531, 3
      %vm2553 = vcmp.lt.s32.totalorder %v2531, 4
      %v2554 = vsel %vm2550, %v2534, %v2537
      %v2555 = vsel %vm2553, %v2543, 2102212464
      %v2556 = vsel %vm2552, %v2540, %v2555
      %v2557 = vsel %vm2551, %v2554, %v2556
      %v2558 = vsel %vm2550, %v2537, %v2540
      %v2559 = vsel %vm2553, %v2546, 920167782
      %v2560 = vsel %vm2552, %v2543, %v2559
      %v2561 = vsel %vm2551, %v2558, %v2560
      %v2562 = vsel %vm2550, %v2540, %v2543
      %v2563 = vsel %vm2553, %v2549, 1326507024
      %v2564 = vsel %vm2552, %v2546, %v2563
      %v2565 = vsel %vm2551, %v2562, %v2564
      %v2566 = vshll.u32 %v2526, 8
      %v2567 = vmul.u32.u64.compose %v2566, %v2565
      %v2568 = vextract.low.u32 %v2567
      %v2569 = vextract.high.u32 %v2567
      %v2570 = vmul.u32.u64.compose %v2566, %v2561
      %v2571 = vextract.low.u32 %v2570
      %v2572 = vextract.high.u32 %v2570
      %v2573 = vmul.u32 %v2566, %v2557
      %v2574 = vadd.s32 %v2569, %v2571
      %vm2575 = vc.u32 %v2569, %v2571
      %v2576 = vadd.s32 %v2572, 1
      %v2577 = vsel %vm2575, %v2576, %v2572
      %v2578 = vadd.s32 %v2573, %v2577
      %v2579 = vadd.s32 %v2578, 536870912
      %v2580 = vshrl.u32 %v2579, 30
      %v2581 = vshll.u32 %v2580, 30
      %v2582 = vsub.s32 %v2578, %v2581
      %vm2583 = vcmp.lt.s32.totalorder %v2582, 0
      %v2584 = vsub.s32 0, %v2582
      %v2585 = vsel %vm2583, %v2584, %v2582
      %v2586 = vclz %v2585
      %v2587 = vsub.s32 %v2586, 2
      %vm2588 = vcmp.gt.s32.totalorder 0, %v2587
      %v2589 = vsel %vm2588, 0, %v2587
      %v2590 = vsub.s32 32, %v2589
      %v2591 = vshll.u32 %v2582, %v2589
      %v2592 = vshrl.u32 %v2574, %v2590
      %v2593 = vor.u32 %v2591, %v2592
      %v2594 = vsub.s32 4294967266, %v2589
      %v2595 = vadd.s32 %v2594, 127
      %v2596 = vshll.u32 %v2595, 23
      %v2597 = vor.u32 4788187, %v2596
      %v2598 = vand.u32 2147483647, %v2597
      %v2600 = vcvt.s32.f32 %v2593
      %v2601 = vmul.f32 %v2600, %v2598
      %v2602 = vxor.u32 %v2601, 2147483648
      %v2603 = vsel %vm2520, %v2602, %v2601
      %v2604 = vsub.s32 4, %v2580
      %v2605 = vsel %vm2520, %v2604, %v2580
      %v2606 = vsel %vm2519, %v408, %v2603
      %v2607 = vsel %vm2519, 0, %v2605
      %v2608 = vcosq.f32.pop %v2606
      %v2609 = vsinq.f32.pop %v2606
      %vm2610 = vweird.f32 %v408
      %v2611 = vadd.s32 %v2607, 3
      %v2612 = vand.u32 %v2611, 3
      %vm2613 = vcmp.lt.s32.totalorder %v2612, 2
      %vm2614 = vcmp.eq.s32.totalorder %v2612, 0
      %v2615 = vxor.u32 %v2609, 2147483648
      %v2616 = vsel %vm2614, %v2608, %v2615
      %vm2617 = vcmp.eq.s32.totalorder %v2612, 2
      %v2618 = vxor.u32 %v2608, 2147483648
      %v2619 = vsel %vm2617, %v2618, %v2609
      %v2620 = vsel %vm2613, %v2616, %v2619
      %v2621 = vsel %vm2610, nan, %v2620
      %v2622 = vand.u32 2147483647, %v411
      %vm2623 = vcmp.le.f32.partialorder %v2622, 0.7853982
      %vm2624 = vcmp.lt.s32.totalorder %v411, 0
      %v2625 = vand.u32 %v411, 2139095040
      %v2626 = vshrl.u32 %v2625, 23
      %v2627 = vsub.s32 %v2626, 127
      %v2628 = vand.u32 2147483647, %v411
      %v2629 = vand.u32 %v2628, 8388607
      %v2630 = vor.u32 %v2629, 8388608
      %v2631 = vsub.s32 0, %v2630
      %v2632 = vadd.s32 %v2627, 1
      %vm2633 = vcmp.gt.s32.totalorder %v2632, 0
      %v2634 = vsel %vm2633, %v2632, 0
      %v2635 = vshrl.u32 %v2634, 5
      %v2636 = vand.u32 %v2634, 31
      %v2637 = vsub.s32 32, %v2636
      %v2638 = vshrl.u32 683565275, %v2637
      %v2639 = vshll.u32 683565275, %v2636
      %v2640 = vshrl.u32 2475754826, %v2637
      %v2641 = vor.u32 %v2639, %v2640
      %v2642 = vshll.u32 2475754826, %v2636
      %v2643 = vshrl.u32 2131351028, %v2637
      %v2644 = vor.u32 %v2642, %v2643
      %v2645 = vshll.u32 2131351028, %v2636
      %v2646 = vshrl.u32 2102212464, %v2637
      %v2647 = vor.u32 %v2645, %v2646
      %v2648 = vshll.u32 2102212464, %v2636
      %v2649 = vshrl.u32 920167782, %v2637
      %v2650 = vor.u32 %v2648, %v2649
      %v2651 = vshll.u32 920167782, %v2636
      %v2652 = vshrl.u32 1326507024, %v2637
      %v2653 = vor.u32 %v2651, %v2652
      %vm2654 = vcmp.lt.s32.totalorder %v2635, 1
      %vm2655 = vcmp.lt.s32.totalorder %v2635, 2
      %vm2656 = vcmp.lt.s32.totalorder %v2635, 3
      %vm2657 = vcmp.lt.s32.totalorder %v2635, 4
      %v2658 = vsel %vm2654, %v2638, %v2641
      %v2659 = vsel %vm2657, %v2647, 2102212464
      %v2660 = vsel %vm2656, %v2644, %v2659
      %v2661 = vsel %vm2655, %v2658, %v2660
      %v2662 = vsel %vm2654, %v2641, %v2644
      %v2663 = vsel %vm2657, %v2650, 920167782
      %v2664 = vsel %vm2656, %v2647, %v2663
      %v2665 = vsel %vm2655, %v2662, %v2664
      %v2666 = vsel %vm2654, %v2644, %v2647
      %v2667 = vsel %vm2657, %v2653, 1326507024
      %v2668 = vsel %vm2656, %v2650, %v2667
      %v2669 = vsel %vm2655, %v2666, %v2668
      %v2670 = vshll.u32 %v2630, 8
      %v2671 = vmul.u32.u64.compose %v2670, %v2669
      %v2672 = vextract.low.u32 %v2671
      %v2673 = vextract.high.u32 %v2671
      %v2674 = vmul.u32.u64.compose %v2670, %v2665
      %v2675 = vextract.low.u32 %v2674
      %v2676 = vextract.high.u32 %v2674
      %v2677 = vmul.u32 %v2670, %v2661
      %v2678 = vadd.s32 %v2673, %v2675
      %vm2679 = vc.u32 %v2673, %v2675
      %v2680 = vadd.s32 %v2676, 1
      %v2681 = vsel %vm2679, %v2680, %v2676
      %v2682 = vadd.s32 %v2677, %v2681
      %v2683 = vadd.s32 %v2682, 536870912
      %v2684 = vshrl.u32 %v2683, 30
      %v2685 = vshll.u32 %v2684, 30
      %v2686 = vsub.s32 %v2682, %v2685
      %vm2687 = vcmp.lt.s32.totalorder %v2686, 0
      %v2688 = vsub.s32 0, %v2686
      %v2689 = vsel %vm2687, %v2688, %v2686
      %v2690 = vclz %v2689
      %v2691 = vsub.s32 %v2690, 2
      %vm2692 = vcmp.gt.s32.totalorder 0, %v2691
      %v2693 = vsel %vm2692, 0, %v2691
      %v2694 = vsub.s32 32, %v2693
      %v2695 = vshll.u32 %v2686, %v2693
      %v2696 = vshrl.u32 %v2678, %v2694
      %v2697 = vor.u32 %v2695, %v2696
      %v2698 = vsub.s32 4294967266, %v2693
      %v2699 = vadd.s32 %v2698, 127
      %v2700 = vshll.u32 %v2699, 23
      %v2701 = vor.u32 4788187, %v2700
      %v2702 = vand.u32 2147483647, %v2701
      %v2704 = vcvt.s32.f32 %v2697
      %v2705 = vmul.f32 %v2704, %v2702
      %v2706 = vxor.u32 %v2705, 2147483648
      %v2707 = vsel %vm2624, %v2706, %v2705
      %v2708 = vsub.s32 4, %v2684
      %v2709 = vsel %vm2624, %v2708, %v2684
      %v2710 = vsel %vm2623, %v411, %v2707
      %v2711 = vsel %vm2623, 0, %v2709
      %v2712 = vcosq.f32.pop %v2710
      %v2713 = vsinq.f32.pop %v2710
      %vm2714 = vweird.f32 %v411
      %v2715 = vadd.s32 %v2711, 3
      %v2716 = vand.u32 %v2715, 3
      %vm2717 = vcmp.lt.s32.totalorder %v2716, 2
      %vm2718 = vcmp.eq.s32.totalorder %v2716, 0
      %v2719 = vxor.u32 %v2713, 2147483648
      %v2720 = vsel %vm2718, %v2712, %v2719
      %vm2721 = vcmp.eq.s32.totalorder %v2716, 2
      %v2722 = vxor.u32 %v2712, 2147483648
      %v2723 = vsel %vm2721, %v2722, %v2713
      %v2724 = vsel %vm2717, %v2720, %v2723
      %v2725 = vsel %vm2714, nan, %v2724
      %v2726 = vand.u32 2147483647, %v416
      %vm2727 = vcmp.le.f32.partialorder %v2726, 0.7853982
      %vm2728 = vcmp.lt.s32.totalorder %v416, 0
      %v2729 = vand.u32 %v416, 2139095040
      %v2730 = vshrl.u32 %v2729, 23
      %v2731 = vsub.s32 %v2730, 127
      %v2732 = vand.u32 2147483647, %v416
      %v2733 = vand.u32 %v2732, 8388607
      %v2734 = vor.u32 %v2733, 8388608
      %v2735 = vsub.s32 0, %v2734
      %v2736 = vadd.s32 %v2731, 1
      %vm2737 = vcmp.gt.s32.totalorder %v2736, 0
      %v2738 = vsel %vm2737, %v2736, 0
      %v2739 = vshrl.u32 %v2738, 5
      %v2740 = vand.u32 %v2738, 31
      %v2741 = vsub.s32 32, %v2740
      %v2742 = vshrl.u32 683565275, %v2741
      %v2743 = vshll.u32 683565275, %v2740
      %v2744 = vshrl.u32 2475754826, %v2741
      %v2745 = vor.u32 %v2743, %v2744
      %v2746 = vshll.u32 2475754826, %v2740
      %v2747 = vshrl.u32 2131351028, %v2741
      %v2748 = vor.u32 %v2746, %v2747
      %v2749 = vshll.u32 2131351028, %v2740
      %v2750 = vshrl.u32 2102212464, %v2741
      %v2751 = vor.u32 %v2749, %v2750
      %v2752 = vshll.u32 2102212464, %v2740
      %v2753 = vshrl.u32 920167782, %v2741
      %v2754 = vor.u32 %v2752, %v2753
      %v2755 = vshll.u32 920167782, %v2740
      %v2756 = vshrl.u32 1326507024, %v2741
      %v2757 = vor.u32 %v2755, %v2756
      %vm2758 = vcmp.lt.s32.totalorder %v2739, 1
      %vm2759 = vcmp.lt.s32.totalorder %v2739, 2
      %vm2760 = vcmp.lt.s32.totalorder %v2739, 3
      %vm2761 = vcmp.lt.s32.totalorder %v2739, 4
      %v2762 = vsel %vm2758, %v2742, %v2745
      %v2763 = vsel %vm2761, %v2751, 2102212464
      %v2764 = vsel %vm2760, %v2748, %v2763
      %v2765 = vsel %vm2759, %v2762, %v2764
      %v2766 = vsel %vm2758, %v2745, %v2748
      %v2767 = vsel %vm2761, %v2754, 920167782
      %v2768 = vsel %vm2760, %v2751, %v2767
      %v2769 = vsel %vm2759, %v2766, %v2768
      %v2770 = vsel %vm2758, %v2748, %v2751
      %v2771 = vsel %vm2761, %v2757, 1326507024
      %v2772 = vsel %vm2760, %v2754, %v2771
      %v2773 = vsel %vm2759, %v2770, %v2772
      %v2774 = vshll.u32 %v2734, 8
      %v2775 = vmul.u32.u64.compose %v2774, %v2773
      %v2776 = vextract.low.u32 %v2775
      %v2777 = vextract.high.u32 %v2775
      %v2778 = vmul.u32.u64.compose %v2774, %v2769
      %v2779 = vextract.low.u32 %v2778
      %v2780 = vextract.high.u32 %v2778
      %v2781 = vmul.u32 %v2774, %v2765
      %v2782 = vadd.s32 %v2777, %v2779
      %vm2783 = vc.u32 %v2777, %v2779
      %v2784 = vadd.s32 %v2780, 1
      %v2785 = vsel %vm2783, %v2784, %v2780
      %v2786 = vadd.s32 %v2781, %v2785
      %v2787 = vadd.s32 %v2786, 536870912
      %v2788 = vshrl.u32 %v2787, 30
      %v2789 = vshll.u32 %v2788, 30
      %v2790 = vsub.s32 %v2786, %v2789
      %vm2791 = vcmp.lt.s32.totalorder %v2790, 0
      %v2792 = vsub.s32 0, %v2790
      %v2793 = vsel %vm2791, %v2792, %v2790
      %v2794 = vclz %v2793
      %v2795 = vsub.s32 %v2794, 2
      %vm2796 = vcmp.gt.s32.totalorder 0, %v2795
      %v2797 = vsel %vm2796, 0, %v2795
      %v2798 = vsub.s32 32, %v2797
      %v2799 = vshll.u32 %v2790, %v2797
      %v2800 = vshrl.u32 %v2782, %v2798
      %v2801 = vor.u32 %v2799, %v2800
      %v2802 = vsub.s32 4294967266, %v2797
      %v2803 = vadd.s32 %v2802, 127
      %v2804 = vshll.u32 %v2803, 23
      %v2805 = vor.u32 4788187, %v2804
      %v2806 = vand.u32 2147483647, %v2805
      %v2808 = vcvt.s32.f32 %v2801
      %v2809 = vmul.f32 %v2808, %v2806
      %v2810 = vxor.u32 %v2809, 2147483648
      %v2811 = vsel %vm2728, %v2810, %v2809
      %v2812 = vsub.s32 4, %v2788
      %v2813 = vsel %vm2728, %v2812, %v2788
      %v2814 = vsel %vm2727, %v416, %v2811
      %v2815 = vsel %vm2727, 0, %v2813
      %v2816 = vcosq.f32.pop %v2814
      %v2817 = vsinq.f32.pop %v2814
      %vm2818 = vweird.f32 %v416
      %v2819 = vadd.s32 %v2815, 3
      %v2820 = vand.u32 %v2819, 3
      %vm2821 = vcmp.lt.s32.totalorder %v2820, 2
      %vm2822 = vcmp.eq.s32.totalorder %v2820, 0
      %v2823 = vxor.u32 %v2817, 2147483648
      %v2824 = vsel %vm2822, %v2816, %v2823
      %vm2825 = vcmp.eq.s32.totalorder %v2820, 2
      %v2826 = vxor.u32 %v2816, 2147483648
      %v2827 = vsel %vm2825, %v2826, %v2817
      %v2828 = vsel %vm2821, %v2824, %v2827
      %v2829 = vsel %vm2818, nan, %v2828
      %v2830 = vand.u32 2147483647, %v419
      %vm2831 = vcmp.le.f32.partialorder %v2830, 0.7853982
      %vm2832 = vcmp.lt.s32.totalorder %v419, 0
      %v2833 = vand.u32 %v419, 2139095040
      %v2834 = vshrl.u32 %v2833, 23
      %v2835 = vsub.s32 %v2834, 127
      %v2836 = vand.u32 2147483647, %v419
      %v2837 = vand.u32 %v2836, 8388607
      %v2838 = vor.u32 %v2837, 8388608
      %v2839 = vsub.s32 0, %v2838
      %v2840 = vadd.s32 %v2835, 1
      %vm2841 = vcmp.gt.s32.totalorder %v2840, 0
      %v2842 = vsel %vm2841, %v2840, 0
      %v2843 = vshrl.u32 %v2842, 5
      %v2844 = vand.u32 %v2842, 31
      %v2845 = vsub.s32 32, %v2844
      %v2846 = vshrl.u32 683565275, %v2845
      %v2847 = vshll.u32 683565275, %v2844
      %v2848 = vshrl.u32 2475754826, %v2845
      %v2849 = vor.u32 %v2847, %v2848
      %v2850 = vshll.u32 2475754826, %v2844
      %v2851 = vshrl.u32 2131351028, %v2845
      %v2852 = vor.u32 %v2850, %v2851
      %v2853 = vshll.u32 2131351028, %v2844
      %v2854 = vshrl.u32 2102212464, %v2845
      %v2855 = vor.u32 %v2853, %v2854
      %v2856 = vshll.u32 2102212464, %v2844
      %v2857 = vshrl.u32 920167782, %v2845
      %v2858 = vor.u32 %v2856, %v2857
      %v2859 = vshll.u32 920167782, %v2844
      %v2860 = vshrl.u32 1326507024, %v2845
      %v2861 = vor.u32 %v2859, %v2860
      %vm2862 = vcmp.lt.s32.totalorder %v2843, 1
      %vm2863 = vcmp.lt.s32.totalorder %v2843, 2
      %vm2864 = vcmp.lt.s32.totalorder %v2843, 3
      %vm2865 = vcmp.lt.s32.totalorder %v2843, 4
      %v2866 = vsel %vm2862, %v2846, %v2849
      %v2867 = vsel %vm2865, %v2855, 2102212464
      %v2868 = vsel %vm2864, %v2852, %v2867
      %v2869 = vsel %vm2863, %v2866, %v2868
      %v2870 = vsel %vm2862, %v2849, %v2852
      %v2871 = vsel %vm2865, %v2858, 920167782
      %v2872 = vsel %vm2864, %v2855, %v2871
      %v2873 = vsel %vm2863, %v2870, %v2872
      %v2874 = vsel %vm2862, %v2852, %v2855
      %v2875 = vsel %vm2865, %v2861, 1326507024
      %v2876 = vsel %vm2864, %v2858, %v2875
      %v2877 = vsel %vm2863, %v2874, %v2876
      %v2878 = vshll.u32 %v2838, 8
      %v2879 = vmul.u32.u64.compose %v2878, %v2877
      %v2880 = vextract.low.u32 %v2879
      %v2881 = vextract.high.u32 %v2879
      %v2882 = vmul.u32.u64.compose %v2878, %v2873
      %v2883 = vextract.low.u32 %v2882
      %v2884 = vextract.high.u32 %v2882
      %v2885 = vmul.u32 %v2878, %v2869
      %v2886 = vadd.s32 %v2881, %v2883
      %vm2887 = vc.u32 %v2881, %v2883
      %v2888 = vadd.s32 %v2884, 1
      %v2889 = vsel %vm2887, %v2888, %v2884
      %v2890 = vadd.s32 %v2885, %v2889
      %v2891 = vadd.s32 %v2890, 536870912
      %v2892 = vshrl.u32 %v2891, 30
      %v2893 = vshll.u32 %v2892, 30
      %v2894 = vsub.s32 %v2890, %v2893
      %vm2895 = vcmp.lt.s32.totalorder %v2894, 0
      %v2896 = vsub.s32 0, %v2894
      %v2897 = vsel %vm2895, %v2896, %v2894
      %v2898 = vclz %v2897
      %v2899 = vsub.s32 %v2898, 2
      %vm2900 = vcmp.gt.s32.totalorder 0, %v2899
      %v2901 = vsel %vm2900, 0, %v2899
      %v2902 = vsub.s32 32, %v2901
      %v2903 = vshll.u32 %v2894, %v2901
      %v2904 = vshrl.u32 %v2886, %v2902
      %v2905 = vor.u32 %v2903, %v2904
      %v2906 = vsub.s32 4294967266, %v2901
      %v2907 = vadd.s32 %v2906, 127
      %v2908 = vshll.u32 %v2907, 23
      %v2909 = vor.u32 4788187, %v2908
      %v2910 = vand.u32 2147483647, %v2909
      %v2912 = vcvt.s32.f32 %v2905
      %v2913 = vmul.f32 %v2912, %v2910
      %v2914 = vxor.u32 %v2913, 2147483648
      %v2915 = vsel %vm2832, %v2914, %v2913
      %v2916 = vsub.s32 4, %v2892
      %v2917 = vsel %vm2832, %v2916, %v2892
      %v2918 = vsel %vm2831, %v419, %v2915
      %v2919 = vsel %vm2831, 0, %v2917
      %v2920 = vcosq.f32.pop %v2918
      %v2921 = vsinq.f32.pop %v2918
      %vm2922 = vweird.f32 %v419
      %v2923 = vadd.s32 %v2919, 3
      %v2924 = vand.u32 %v2923, 3
      %vm2925 = vcmp.lt.s32.totalorder %v2924, 2
      %vm2926 = vcmp.eq.s32.totalorder %v2924, 0
      %v2927 = vxor.u32 %v2921, 2147483648
      %v2928 = vsel %vm2926, %v2920, %v2927
      %vm2929 = vcmp.eq.s32.totalorder %v2924, 2
      %v2930 = vxor.u32 %v2920, 2147483648
      %v2931 = vsel %vm2929, %v2930, %v2921
      %v2932 = vsel %vm2925, %v2928, %v2931
      %v2933 = vsel %vm2922, nan, %v2932
      %v2934 = vand.u32 2147483647, %v424
      %vm2935 = vcmp.le.f32.partialorder %v2934, 0.7853982
      %vm2936 = vcmp.lt.s32.totalorder %v424, 0
      %v2937 = vand.u32 %v424, 2139095040
      %v2938 = vshrl.u32 %v2937, 23
      %v2939 = vsub.s32 %v2938, 127
      %v2940 = vand.u32 2147483647, %v424
      %v2941 = vand.u32 %v2940, 8388607
      %v2942 = vor.u32 %v2941, 8388608
      %v2943 = vsub.s32 0, %v2942
      %v2944 = vadd.s32 %v2939, 1
      %vm2945 = vcmp.gt.s32.totalorder %v2944, 0
      %v2946 = vsel %vm2945, %v2944, 0
      %v2947 = vshrl.u32 %v2946, 5
      %v2948 = vand.u32 %v2946, 31
      %v2949 = vsub.s32 32, %v2948
      %v2950 = vshrl.u32 683565275, %v2949
      %v2951 = vshll.u32 683565275, %v2948
      %v2952 = vshrl.u32 2475754826, %v2949
      %v2953 = vor.u32 %v2951, %v2952
      %v2954 = vshll.u32 2475754826, %v2948
      %v2955 = vshrl.u32 2131351028, %v2949
      %v2956 = vor.u32 %v2954, %v2955
      %v2957 = vshll.u32 2131351028, %v2948
      %v2958 = vshrl.u32 2102212464, %v2949
      %v2959 = vor.u32 %v2957, %v2958
      %v2960 = vshll.u32 2102212464, %v2948
      %v2961 = vshrl.u32 920167782, %v2949
      %v2962 = vor.u32 %v2960, %v2961
      %v2963 = vshll.u32 920167782, %v2948
      %v2964 = vshrl.u32 1326507024, %v2949
      %v2965 = vor.u32 %v2963, %v2964
      %vm2966 = vcmp.lt.s32.totalorder %v2947, 1
      %vm2967 = vcmp.lt.s32.totalorder %v2947, 2
      %vm2968 = vcmp.lt.s32.totalorder %v2947, 3
      %vm2969 = vcmp.lt.s32.totalorder %v2947, 4
      %v2970 = vsel %vm2966, %v2950, %v2953
      %v2971 = vsel %vm2969, %v2959, 2102212464
      %v2972 = vsel %vm2968, %v2956, %v2971
      %v2973 = vsel %vm2967, %v2970, %v2972
      %v2974 = vsel %vm2966, %v2953, %v2956
      %v2975 = vsel %vm2969, %v2962, 920167782
      %v2976 = vsel %vm2968, %v2959, %v2975
      %v2977 = vsel %vm2967, %v2974, %v2976
      %v2978 = vsel %vm2966, %v2956, %v2959
      %v2979 = vsel %vm2969, %v2965, 1326507024
      %v2980 = vsel %vm2968, %v2962, %v2979
      %v2981 = vsel %vm2967, %v2978, %v2980
      %v2982 = vshll.u32 %v2942, 8
      %v2983 = vmul.u32.u64.compose %v2982, %v2981
      %v2984 = vextract.low.u32 %v2983
      %v2985 = vextract.high.u32 %v2983
      %v2986 = vmul.u32.u64.compose %v2982, %v2977
      %v2987 = vextract.low.u32 %v2986
      %v2988 = vextract.high.u32 %v2986
      %v2989 = vmul.u32 %v2982, %v2973
      %v2990 = vadd.s32 %v2985, %v2987
      %vm2991 = vc.u32 %v2985, %v2987
      %v2992 = vadd.s32 %v2988, 1
      %v2993 = vsel %vm2991, %v2992, %v2988
      %v2994 = vadd.s32 %v2989, %v2993
      %v2995 = vadd.s32 %v2994, 536870912
      %v2996 = vshrl.u32 %v2995, 30
      %v2997 = vshll.u32 %v2996, 30
      %v2998 = vsub.s32 %v2994, %v2997
      %vm2999 = vcmp.lt.s32.totalorder %v2998, 0
      %v3000 = vsub.s32 0, %v2998
      %v3001 = vsel %vm2999, %v3000, %v2998
      %v3002 = vclz %v3001
      %v3003 = vsub.s32 %v3002, 2
      %vm3004 = vcmp.gt.s32.totalorder 0, %v3003
      %v3005 = vsel %vm3004, 0, %v3003
      %v3006 = vsub.s32 32, %v3005
      %v3007 = vshll.u32 %v2998, %v3005
      %v3008 = vshrl.u32 %v2990, %v3006
      %v3009 = vor.u32 %v3007, %v3008
      %v3010 = vsub.s32 4294967266, %v3005
      %v3011 = vadd.s32 %v3010, 127
      %v3012 = vshll.u32 %v3011, 23
      %v3013 = vor.u32 4788187, %v3012
      %v3014 = vand.u32 2147483647, %v3013
      %v3016 = vcvt.s32.f32 %v3009
      %v3017 = vmul.f32 %v3016, %v3014
      %v3018 = vxor.u32 %v3017, 2147483648
      %v3019 = vsel %vm2936, %v3018, %v3017
      %v3020 = vsub.s32 4, %v2996
      %v3021 = vsel %vm2936, %v3020, %v2996
      %v3022 = vsel %vm2935, %v424, %v3019
      %v3023 = vsel %vm2935, 0, %v3021
      %v3024 = vcosq.f32.pop %v3022
      %v3025 = vsinq.f32.pop %v3022
      %vm3026 = vweird.f32 %v424
      %v3027 = vadd.s32 %v3023, 3
      %v3028 = vand.u32 %v3027, 3
      %vm3029 = vcmp.lt.s32.totalorder %v3028, 2
      %vm3030 = vcmp.eq.s32.totalorder %v3028, 0
      %v3031 = vxor.u32 %v3025, 2147483648
      %v3032 = vsel %vm3030, %v3024, %v3031
      %vm3033 = vcmp.eq.s32.totalorder %v3028, 2
      %v3034 = vxor.u32 %v3024, 2147483648
      %v3035 = vsel %vm3033, %v3034, %v3025
      %v3036 = vsel %vm3029, %v3032, %v3035
      %v3037 = vsel %vm3026, nan, %v3036
      %v3038 = vand.u32 2147483647, %v427
      %vm3039 = vcmp.le.f32.partialorder %v3038, 0.7853982
      %vm3040 = vcmp.lt.s32.totalorder %v427, 0
      %v3041 = vand.u32 %v427, 2139095040
      %v3042 = vshrl.u32 %v3041, 23
      %v3043 = vsub.s32 %v3042, 127
      %v3044 = vand.u32 2147483647, %v427
      %v3045 = vand.u32 %v3044, 8388607
      %v3046 = vor.u32 %v3045, 8388608
      %v3047 = vsub.s32 0, %v3046
      %v3048 = vadd.s32 %v3043, 1
      %vm3049 = vcmp.gt.s32.totalorder %v3048, 0
      %v3050 = vsel %vm3049, %v3048, 0
      %v3051 = vshrl.u32 %v3050, 5
      %v3052 = vand.u32 %v3050, 31
      %v3053 = vsub.s32 32, %v3052
      %v3054 = vshrl.u32 683565275, %v3053
      %v3055 = vshll.u32 683565275, %v3052
      %v3056 = vshrl.u32 2475754826, %v3053
      %v3057 = vor.u32 %v3055, %v3056
      %v3058 = vshll.u32 2475754826, %v3052
      %v3059 = vshrl.u32 2131351028, %v3053
      %v3060 = vor.u32 %v3058, %v3059
      %v3061 = vshll.u32 2131351028, %v3052
      %v3062 = vshrl.u32 2102212464, %v3053
      %v3063 = vor.u32 %v3061, %v3062
      %v3064 = vshll.u32 2102212464, %v3052
      %v3065 = vshrl.u32 920167782, %v3053
      %v3066 = vor.u32 %v3064, %v3065
      %v3067 = vshll.u32 920167782, %v3052
      %v3068 = vshrl.u32 1326507024, %v3053
      %v3069 = vor.u32 %v3067, %v3068
      %vm3070 = vcmp.lt.s32.totalorder %v3051, 1
      %vm3071 = vcmp.lt.s32.totalorder %v3051, 2
      %vm3072 = vcmp.lt.s32.totalorder %v3051, 3
      %vm3073 = vcmp.lt.s32.totalorder %v3051, 4
      %v3074 = vsel %vm3070, %v3054, %v3057
      %v3075 = vsel %vm3073, %v3063, 2102212464
      %v3076 = vsel %vm3072, %v3060, %v3075
      %v3077 = vsel %vm3071, %v3074, %v3076
      %v3078 = vsel %vm3070, %v3057, %v3060
      %v3079 = vsel %vm3073, %v3066, 920167782
      %v3080 = vsel %vm3072, %v3063, %v3079
      %v3081 = vsel %vm3071, %v3078, %v3080
      %v3082 = vsel %vm3070, %v3060, %v3063
      %v3083 = vsel %vm3073, %v3069, 1326507024
      %v3084 = vsel %vm3072, %v3066, %v3083
      %v3085 = vsel %vm3071, %v3082, %v3084
      %v3086 = vshll.u32 %v3046, 8
      %v3087 = vmul.u32.u64.compose %v3086, %v3085
      %v3088 = vextract.low.u32 %v3087
      %v3089 = vextract.high.u32 %v3087
      %v3090 = vmul.u32.u64.compose %v3086, %v3081
      %v3091 = vextract.low.u32 %v3090
      %v3092 = vextract.high.u32 %v3090
      %v3093 = vmul.u32 %v3086, %v3077
      %v3094 = vadd.s32 %v3089, %v3091
      %vm3095 = vc.u32 %v3089, %v3091
      %v3096 = vadd.s32 %v3092, 1
      %v3097 = vsel %vm3095, %v3096, %v3092
      %v3098 = vadd.s32 %v3093, %v3097
      %v3099 = vadd.s32 %v3098, 536870912
      %v3100 = vshrl.u32 %v3099, 30
      %v3101 = vshll.u32 %v3100, 30
      %v3102 = vsub.s32 %v3098, %v3101
      %vm3103 = vcmp.lt.s32.totalorder %v3102, 0
      %v3104 = vsub.s32 0, %v3102
      %v3105 = vsel %vm3103, %v3104, %v3102
      %v3106 = vclz %v3105
      %v3107 = vsub.s32 %v3106, 2
      %vm3108 = vcmp.gt.s32.totalorder 0, %v3107
      %v3109 = vsel %vm3108, 0, %v3107
      %v3110 = vsub.s32 32, %v3109
      %v3111 = vshll.u32 %v3102, %v3109
      %v3112 = vshrl.u32 %v3094, %v3110
      %v3113 = vor.u32 %v3111, %v3112
      %v3114 = vsub.s32 4294967266, %v3109
      %v3115 = vadd.s32 %v3114, 127
      %v3116 = vshll.u32 %v3115, 23
      %v3117 = vor.u32 4788187, %v3116
      %v3118 = vand.u32 2147483647, %v3117
      %v3120 = vcvt.s32.f32 %v3113
      %v3121 = vmul.f32 %v3120, %v3118
      %v3122 = vxor.u32 %v3121, 2147483648
      %v3123 = vsel %vm3040, %v3122, %v3121
      %v3124 = vsub.s32 4, %v3100
      %v3125 = vsel %vm3040, %v3124, %v3100
      %v3126 = vsel %vm3039, %v427, %v3123
      %v3127 = vsel %vm3039, 0, %v3125
      %v3128 = vcosq.f32.pop %v3126
      %v3129 = vsinq.f32.pop %v3126
      %vm3130 = vweird.f32 %v427
      %v3131 = vadd.s32 %v3127, 3
      %v3132 = vand.u32 %v3131, 3
      %vm3133 = vcmp.lt.s32.totalorder %v3132, 2
      %vm3134 = vcmp.eq.s32.totalorder %v3132, 0
      %v3135 = vxor.u32 %v3129, 2147483648
      %v3136 = vsel %vm3134, %v3128, %v3135
      %vm3137 = vcmp.eq.s32.totalorder %v3132, 2
      %v3138 = vxor.u32 %v3128, 2147483648
      %v3139 = vsel %vm3137, %v3138, %v3129
      %v3140 = vsel %vm3133, %v3136, %v3139
      %v3141 = vsel %vm3130, nan, %v3140
      %v3142 = vand.u32 2147483647, %v432
      %vm3143 = vcmp.le.f32.partialorder %v3142, 0.7853982
      %vm3144 = vcmp.lt.s32.totalorder %v432, 0
      %v3145 = vand.u32 %v432, 2139095040
      %v3146 = vshrl.u32 %v3145, 23
      %v3147 = vsub.s32 %v3146, 127
      %v3148 = vand.u32 2147483647, %v432
      %v3149 = vand.u32 %v3148, 8388607
      %v3150 = vor.u32 %v3149, 8388608
      %v3151 = vsub.s32 0, %v3150
      %v3152 = vadd.s32 %v3147, 1
      %vm3153 = vcmp.gt.s32.totalorder %v3152, 0
      %v3154 = vsel %vm3153, %v3152, 0
      %v3155 = vshrl.u32 %v3154, 5
      %v3156 = vand.u32 %v3154, 31
      %v3157 = vsub.s32 32, %v3156
      %v3158 = vshrl.u32 683565275, %v3157
      %v3159 = vshll.u32 683565275, %v3156
      %v3160 = vshrl.u32 2475754826, %v3157
      %v3161 = vor.u32 %v3159, %v3160
      %v3162 = vshll.u32 2475754826, %v3156
      %v3163 = vshrl.u32 2131351028, %v3157
      %v3164 = vor.u32 %v3162, %v3163
      %v3165 = vshll.u32 2131351028, %v3156
      %v3166 = vshrl.u32 2102212464, %v3157
      %v3167 = vor.u32 %v3165, %v3166
      %v3168 = vshll.u32 2102212464, %v3156
      %v3169 = vshrl.u32 920167782, %v3157
      %v3170 = vor.u32 %v3168, %v3169
      %v3171 = vshll.u32 920167782, %v3156
      %v3172 = vshrl.u32 1326507024, %v3157
      %v3173 = vor.u32 %v3171, %v3172
      %vm3174 = vcmp.lt.s32.totalorder %v3155, 1
      %vm3175 = vcmp.lt.s32.totalorder %v3155, 2
      %vm3176 = vcmp.lt.s32.totalorder %v3155, 3
      %vm3177 = vcmp.lt.s32.totalorder %v3155, 4
      %v3178 = vsel %vm3174, %v3158, %v3161
      %v3179 = vsel %vm3177, %v3167, 2102212464
      %v3180 = vsel %vm3176, %v3164, %v3179
      %v3181 = vsel %vm3175, %v3178, %v3180
      %v3182 = vsel %vm3174, %v3161, %v3164
      %v3183 = vsel %vm3177, %v3170, 920167782
      %v3184 = vsel %vm3176, %v3167, %v3183
      %v3185 = vsel %vm3175, %v3182, %v3184
      %v3186 = vsel %vm3174, %v3164, %v3167
      %v3187 = vsel %vm3177, %v3173, 1326507024
      %v3188 = vsel %vm3176, %v3170, %v3187
      %v3189 = vsel %vm3175, %v3186, %v3188
      %v3190 = vshll.u32 %v3150, 8
      %v3191 = vmul.u32.u64.compose %v3190, %v3189
      %v3192 = vextract.low.u32 %v3191
      %v3193 = vextract.high.u32 %v3191
      %v3194 = vmul.u32.u64.compose %v3190, %v3185
      %v3195 = vextract.low.u32 %v3194
      %v3196 = vextract.high.u32 %v3194
      %v3197 = vmul.u32 %v3190, %v3181
      %v3198 = vadd.s32 %v3193, %v3195
      %vm3199 = vc.u32 %v3193, %v3195
      %v3200 = vadd.s32 %v3196, 1
      %v3201 = vsel %vm3199, %v3200, %v3196
      %v3202 = vadd.s32 %v3197, %v3201
      %v3203 = vadd.s32 %v3202, 536870912
      %v3204 = vshrl.u32 %v3203, 30
      %v3205 = vshll.u32 %v3204, 30
      %v3206 = vsub.s32 %v3202, %v3205
      %vm3207 = vcmp.lt.s32.totalorder %v3206, 0
      %v3208 = vsub.s32 0, %v3206
      %v3209 = vsel %vm3207, %v3208, %v3206
      %v3210 = vclz %v3209
      %v3211 = vsub.s32 %v3210, 2
      %vm3212 = vcmp.gt.s32.totalorder 0, %v3211
      %v3213 = vsel %vm3212, 0, %v3211
      %v3214 = vsub.s32 32, %v3213
      %v3215 = vshll.u32 %v3206, %v3213
      %v3216 = vshrl.u32 %v3198, %v3214
      %v3217 = vor.u32 %v3215, %v3216
      %v3218 = vsub.s32 4294967266, %v3213
      %v3219 = vadd.s32 %v3218, 127
      %v3220 = vshll.u32 %v3219, 23
      %v3221 = vor.u32 4788187, %v3220
      %v3222 = vand.u32 2147483647, %v3221
      %v3224 = vcvt.s32.f32 %v3217
      %v3225 = vmul.f32 %v3224, %v3222
      %v3226 = vxor.u32 %v3225, 2147483648
      %v3227 = vsel %vm3144, %v3226, %v3225
      %v3228 = vsub.s32 4, %v3204
      %v3229 = vsel %vm3144, %v3228, %v3204
      %v3230 = vsel %vm3143, %v432, %v3227
      %v3231 = vsel %vm3143, 0, %v3229
      %v3232 = vcosq.f32.pop %v3230
      %v3233 = vsinq.f32.pop %v3230
      %vm3234 = vweird.f32 %v432
      %v3235 = vadd.s32 %v3231, 3
      %v3236 = vand.u32 %v3235, 3
      %vm3237 = vcmp.lt.s32.totalorder %v3236, 2
      %vm3238 = vcmp.eq.s32.totalorder %v3236, 0
      %v3239 = vxor.u32 %v3233, 2147483648
      %v3240 = vsel %vm3238, %v3232, %v3239
      %vm3241 = vcmp.eq.s32.totalorder %v3236, 2
      %v3242 = vxor.u32 %v3232, 2147483648
      %v3243 = vsel %vm3241, %v3242, %v3233
      %v3244 = vsel %vm3237, %v3240, %v3243
      %v3245 = vsel %vm3234, nan, %v3244
      %v3246 = vand.u32 2147483647, %v435
      %vm3247 = vcmp.le.f32.partialorder %v3246, 0.7853982
      %vm3248 = vcmp.lt.s32.totalorder %v435, 0
      %v3249 = vand.u32 %v435, 2139095040
      %v3250 = vshrl.u32 %v3249, 23
      %v3251 = vsub.s32 %v3250, 127
      %v3252 = vand.u32 2147483647, %v435
      %v3253 = vand.u32 %v3252, 8388607
      %v3254 = vor.u32 %v3253, 8388608
      %v3255 = vsub.s32 0, %v3254
      %v3256 = vadd.s32 %v3251, 1
      %vm3257 = vcmp.gt.s32.totalorder %v3256, 0
      %v3258 = vsel %vm3257, %v3256, 0
      %v3259 = vshrl.u32 %v3258, 5
      %v3260 = vand.u32 %v3258, 31
      %v3261 = vsub.s32 32, %v3260
      %v3262 = vshrl.u32 683565275, %v3261
      %v3263 = vshll.u32 683565275, %v3260
      %v3264 = vshrl.u32 2475754826, %v3261
      %v3265 = vor.u32 %v3263, %v3264
      %v3266 = vshll.u32 2475754826, %v3260
      %v3267 = vshrl.u32 2131351028, %v3261
      %v3268 = vor.u32 %v3266, %v3267
      %v3269 = vshll.u32 2131351028, %v3260
      %v3270 = vshrl.u32 2102212464, %v3261
      %v3271 = vor.u32 %v3269, %v3270
      %v3272 = vshll.u32 2102212464, %v3260
      %v3273 = vshrl.u32 920167782, %v3261
      %v3274 = vor.u32 %v3272, %v3273
      %v3275 = vshll.u32 920167782, %v3260
      %v3276 = vshrl.u32 1326507024, %v3261
      %v3277 = vor.u32 %v3275, %v3276
      %vm3278 = vcmp.lt.s32.totalorder %v3259, 1
      %vm3279 = vcmp.lt.s32.totalorder %v3259, 2
      %vm3280 = vcmp.lt.s32.totalorder %v3259, 3
      %vm3281 = vcmp.lt.s32.totalorder %v3259, 4
      %v3282 = vsel %vm3278, %v3262, %v3265
      %v3283 = vsel %vm3281, %v3271, 2102212464
      %v3284 = vsel %vm3280, %v3268, %v3283
      %v3285 = vsel %vm3279, %v3282, %v3284
      %v3286 = vsel %vm3278, %v3265, %v3268
      %v3287 = vsel %vm3281, %v3274, 920167782
      %v3288 = vsel %vm3280, %v3271, %v3287
      %v3289 = vsel %vm3279, %v3286, %v3288
      %v3290 = vsel %vm3278, %v3268, %v3271
      %v3291 = vsel %vm3281, %v3277, 1326507024
      %v3292 = vsel %vm3280, %v3274, %v3291
      %v3293 = vsel %vm3279, %v3290, %v3292
      %v3294 = vshll.u32 %v3254, 8
      %v3295 = vmul.u32.u64.compose %v3294, %v3293
      %v3296 = vextract.low.u32 %v3295
      %v3297 = vextract.high.u32 %v3295
      %v3298 = vmul.u32.u64.compose %v3294, %v3289
      %v3299 = vextract.low.u32 %v3298
      %v3300 = vextract.high.u32 %v3298
      %v3301 = vmul.u32 %v3294, %v3285
      %v3302 = vadd.s32 %v3297, %v3299
      %vm3303 = vc.u32 %v3297, %v3299
      %v3304 = vadd.s32 %v3300, 1
      %v3305 = vsel %vm3303, %v3304, %v3300
      %v3306 = vadd.s32 %v3301, %v3305
      %v3307 = vadd.s32 %v3306, 536870912
      %v3308 = vshrl.u32 %v3307, 30
      %v3309 = vshll.u32 %v3308, 30
      %v3310 = vsub.s32 %v3306, %v3309
      %vm3311 = vcmp.lt.s32.totalorder %v3310, 0
      %v3312 = vsub.s32 0, %v3310
      %v3313 = vsel %vm3311, %v3312, %v3310
      %v3314 = vclz %v3313
      %v3315 = vsub.s32 %v3314, 2
      %vm3316 = vcmp.gt.s32.totalorder 0, %v3315
      %v3317 = vsel %vm3316, 0, %v3315
      %v3318 = vsub.s32 32, %v3317
      %v3319 = vshll.u32 %v3310, %v3317
      %v3320 = vshrl.u32 %v3302, %v3318
      %v3321 = vor.u32 %v3319, %v3320
      %v3322 = vsub.s32 4294967266, %v3317
      %v3323 = vadd.s32 %v3322, 127
      %v3324 = vshll.u32 %v3323, 23
      %v3325 = vor.u32 4788187, %v3324
      %v3326 = vand.u32 2147483647, %v3325
      %v3328 = vcvt.s32.f32 %v3321
      %v3329 = vmul.f32 %v3328, %v3326
      %v3330 = vxor.u32 %v3329, 2147483648
      %v3331 = vsel %vm3248, %v3330, %v3329
      %v3332 = vsub.s32 4, %v3308
      %v3333 = vsel %vm3248, %v3332, %v3308
      %v3334 = vsel %vm3247, %v435, %v3331
      %v3335 = vsel %vm3247, 0, %v3333
      %v3336 = vcosq.f32.pop %v3334
      %v3337 = vsinq.f32.pop %v3334
      %vm3338 = vweird.f32 %v435
      %v3339 = vadd.s32 %v3335, 3
      %v3340 = vand.u32 %v3339, 3
      %vm3341 = vcmp.lt.s32.totalorder %v3340, 2
      %vm3342 = vcmp.eq.s32.totalorder %v3340, 0
      %v3343 = vxor.u32 %v3337, 2147483648
      %v3344 = vsel %vm3342, %v3336, %v3343
      %vm3345 = vcmp.eq.s32.totalorder %v3340, 2
      %v3346 = vxor.u32 %v3336, 2147483648
      %v3347 = vsel %vm3345, %v3346, %v3337
      %v3348 = vsel %vm3341, %v3344, %v3347
      %v3349 = vsel %vm3338, nan, %v3348
      %v3350 = vand.u32 2147483647, %v440
      %vm3351 = vcmp.le.f32.partialorder %v3350, 0.7853982
      %vm3352 = vcmp.lt.s32.totalorder %v440, 0
      %v3353 = vand.u32 %v440, 2139095040
      %v3354 = vshrl.u32 %v3353, 23
      %v3355 = vsub.s32 %v3354, 127
      %v3356 = vand.u32 2147483647, %v440
      %v3357 = vand.u32 %v3356, 8388607
      %v3358 = vor.u32 %v3357, 8388608
      %v3359 = vsub.s32 0, %v3358
      %v3360 = vadd.s32 %v3355, 1
      %vm3361 = vcmp.gt.s32.totalorder %v3360, 0
      %v3362 = vsel %vm3361, %v3360, 0
      %v3363 = vshrl.u32 %v3362, 5
      %v3364 = vand.u32 %v3362, 31
      %v3365 = vsub.s32 32, %v3364
      %v3366 = vshrl.u32 683565275, %v3365
      %v3367 = vshll.u32 683565275, %v3364
      %v3368 = vshrl.u32 2475754826, %v3365
      %v3369 = vor.u32 %v3367, %v3368
      %v3370 = vshll.u32 2475754826, %v3364
      %v3371 = vshrl.u32 2131351028, %v3365
      %v3372 = vor.u32 %v3370, %v3371
      %v3373 = vshll.u32 2131351028, %v3364
      %v3374 = vshrl.u32 2102212464, %v3365
      %v3375 = vor.u32 %v3373, %v3374
      %v3376 = vshll.u32 2102212464, %v3364
      %v3377 = vshrl.u32 920167782, %v3365
      %v3378 = vor.u32 %v3376, %v3377
      %v3379 = vshll.u32 920167782, %v3364
      %v3380 = vshrl.u32 1326507024, %v3365
      %v3381 = vor.u32 %v3379, %v3380
      %vm3382 = vcmp.lt.s32.totalorder %v3363, 1
      %vm3383 = vcmp.lt.s32.totalorder %v3363, 2
      %vm3384 = vcmp.lt.s32.totalorder %v3363, 3
      %vm3385 = vcmp.lt.s32.totalorder %v3363, 4
      %v3386 = vsel %vm3382, %v3366, %v3369
      %v3387 = vsel %vm3385, %v3375, 2102212464
      %v3388 = vsel %vm3384, %v3372, %v3387
      %v3389 = vsel %vm3383, %v3386, %v3388
      %v3390 = vsel %vm3382, %v3369, %v3372
      %v3391 = vsel %vm3385, %v3378, 920167782
      %v3392 = vsel %vm3384, %v3375, %v3391
      %v3393 = vsel %vm3383, %v3390, %v3392
      %v3394 = vsel %vm3382, %v3372, %v3375
      %v3395 = vsel %vm3385, %v3381, 1326507024
      %v3396 = vsel %vm3384, %v3378, %v3395
      %v3397 = vsel %vm3383, %v3394, %v3396
      %v3398 = vshll.u32 %v3358, 8
      %v3399 = vmul.u32.u64.compose %v3398, %v3397
      %v3400 = vextract.low.u32 %v3399
      %v3401 = vextract.high.u32 %v3399
      %v3402 = vmul.u32.u64.compose %v3398, %v3393
      %v3403 = vextract.low.u32 %v3402
      %v3404 = vextract.high.u32 %v3402
      %v3405 = vmul.u32 %v3398, %v3389
      %v3406 = vadd.s32 %v3401, %v3403
      %vm3407 = vc.u32 %v3401, %v3403
      %v3408 = vadd.s32 %v3404, 1
      %v3409 = vsel %vm3407, %v3408, %v3404
      %v3410 = vadd.s32 %v3405, %v3409
      %v3411 = vadd.s32 %v3410, 536870912
      %v3412 = vshrl.u32 %v3411, 30
      %v3413 = vshll.u32 %v3412, 30
      %v3414 = vsub.s32 %v3410, %v3413
      %vm3415 = vcmp.lt.s32.totalorder %v3414, 0
      %v3416 = vsub.s32 0, %v3414
      %v3417 = vsel %vm3415, %v3416, %v3414
      %v3418 = vclz %v3417
      %v3419 = vsub.s32 %v3418, 2
      %vm3420 = vcmp.gt.s32.totalorder 0, %v3419
      %v3421 = vsel %vm3420, 0, %v3419
      %v3422 = vsub.s32 32, %v3421
      %v3423 = vshll.u32 %v3414, %v3421
      %v3424 = vshrl.u32 %v3406, %v3422
      %v3425 = vor.u32 %v3423, %v3424
      %v3426 = vsub.s32 4294967266, %v3421
      %v3427 = vadd.s32 %v3426, 127
      %v3428 = vshll.u32 %v3427, 23
      %v3429 = vor.u32 4788187, %v3428
      %v3430 = vand.u32 2147483647, %v3429
      %v3432 = vcvt.s32.f32 %v3425
      %v3433 = vmul.f32 %v3432, %v3430
      %v3434 = vxor.u32 %v3433, 2147483648
      %v3435 = vsel %vm3352, %v3434, %v3433
      %v3436 = vsub.s32 4, %v3412
      %v3437 = vsel %vm3352, %v3436, %v3412
      %v3438 = vsel %vm3351, %v440, %v3435
      %v3439 = vsel %vm3351, 0, %v3437
      %v3440 = vcosq.f32.pop %v3438
      %v3441 = vsinq.f32.pop %v3438
      %vm3442 = vweird.f32 %v440
      %v3443 = vadd.s32 %v3439, 3
      %v3444 = vand.u32 %v3443, 3
      %vm3445 = vcmp.lt.s32.totalorder %v3444, 2
      %vm3446 = vcmp.eq.s32.totalorder %v3444, 0
      %v3447 = vxor.u32 %v3441, 2147483648
      %v3448 = vsel %vm3446, %v3440, %v3447
      %vm3449 = vcmp.eq.s32.totalorder %v3444, 2
      %v3450 = vxor.u32 %v3440, 2147483648
      %v3451 = vsel %vm3449, %v3450, %v3441
      %v3452 = vsel %vm3445, %v3448, %v3451
      %v3453 = vsel %vm3442, nan, %v3452
      %v3454 = vand.u32 2147483647, %v443
      %vm3455 = vcmp.le.f32.partialorder %v3454, 0.7853982
      %vm3456 = vcmp.lt.s32.totalorder %v443, 0
      %v3457 = vand.u32 %v443, 2139095040
      %v3458 = vshrl.u32 %v3457, 23
      %v3459 = vsub.s32 %v3458, 127
      %v3460 = vand.u32 2147483647, %v443
      %v3461 = vand.u32 %v3460, 8388607
      %v3462 = vor.u32 %v3461, 8388608
      %v3463 = vsub.s32 0, %v3462
      %v3464 = vadd.s32 %v3459, 1
      %vm3465 = vcmp.gt.s32.totalorder %v3464, 0
      %v3466 = vsel %vm3465, %v3464, 0
      %v3467 = vshrl.u32 %v3466, 5
      %v3468 = vand.u32 %v3466, 31
      %v3469 = vsub.s32 32, %v3468
      %v3470 = vshrl.u32 683565275, %v3469
      %v3471 = vshll.u32 683565275, %v3468
      %v3472 = vshrl.u32 2475754826, %v3469
      %v3473 = vor.u32 %v3471, %v3472
      %v3474 = vshll.u32 2475754826, %v3468
      %v3475 = vshrl.u32 2131351028, %v3469
      %v3476 = vor.u32 %v3474, %v3475
      %v3477 = vshll.u32 2131351028, %v3468
      %v3478 = vshrl.u32 2102212464, %v3469
      %v3479 = vor.u32 %v3477, %v3478
      %v3480 = vshll.u32 2102212464, %v3468
      %v3481 = vshrl.u32 920167782, %v3469
      %v3482 = vor.u32 %v3480, %v3481
      %v3483 = vshll.u32 920167782, %v3468
      %v3484 = vshrl.u32 1326507024, %v3469
      %v3485 = vor.u32 %v3483, %v3484
      %vm3486 = vcmp.lt.s32.totalorder %v3467, 1
      %vm3487 = vcmp.lt.s32.totalorder %v3467, 2
      %vm3488 = vcmp.lt.s32.totalorder %v3467, 3
      %vm3489 = vcmp.lt.s32.totalorder %v3467, 4
      %v3490 = vsel %vm3486, %v3470, %v3473
      %v3491 = vsel %vm3489, %v3479, 2102212464
      %v3492 = vsel %vm3488, %v3476, %v3491
      %v3493 = vsel %vm3487, %v3490, %v3492
      %v3494 = vsel %vm3486, %v3473, %v3476
      %v3495 = vsel %vm3489, %v3482, 920167782
      %v3496 = vsel %vm3488, %v3479, %v3495
      %v3497 = vsel %vm3487, %v3494, %v3496
      %v3498 = vsel %vm3486, %v3476, %v3479
      %v3499 = vsel %vm3489, %v3485, 1326507024
      %v3500 = vsel %vm3488, %v3482, %v3499
      %v3501 = vsel %vm3487, %v3498, %v3500
      %v3502 = vshll.u32 %v3462, 8
      %v3503 = vmul.u32.u64.compose %v3502, %v3501
      %v3504 = vextract.low.u32 %v3503
      %v3505 = vextract.high.u32 %v3503
      %v3506 = vmul.u32.u64.compose %v3502, %v3497
      %v3507 = vextract.low.u32 %v3506
      %v3508 = vextract.high.u32 %v3506
      %v3509 = vmul.u32 %v3502, %v3493
      %v3510 = vadd.s32 %v3505, %v3507
      %vm3511 = vc.u32 %v3505, %v3507
      %v3512 = vadd.s32 %v3508, 1
      %v3513 = vsel %vm3511, %v3512, %v3508
      %v3514 = vadd.s32 %v3509, %v3513
      %v3515 = vadd.s32 %v3514, 536870912
      %v3516 = vshrl.u32 %v3515, 30
      %v3517 = vshll.u32 %v3516, 30
      %v3518 = vsub.s32 %v3514, %v3517
      %vm3519 = vcmp.lt.s32.totalorder %v3518, 0
      %v3520 = vsub.s32 0, %v3518
      %v3521 = vsel %vm3519, %v3520, %v3518
      %v3522 = vclz %v3521
      %v3523 = vsub.s32 %v3522, 2
      %vm3524 = vcmp.gt.s32.totalorder 0, %v3523
      %v3525 = vsel %vm3524, 0, %v3523
      %v3526 = vsub.s32 32, %v3525
      %v3527 = vshll.u32 %v3518, %v3525
      %v3528 = vshrl.u32 %v3510, %v3526
      %v3529 = vor.u32 %v3527, %v3528
      %v3530 = vsub.s32 4294967266, %v3525
      %v3531 = vadd.s32 %v3530, 127
      %v3532 = vshll.u32 %v3531, 23
      %v3533 = vor.u32 4788187, %v3532
      %v3534 = vand.u32 2147483647, %v3533
      %v3536 = vcvt.s32.f32 %v3529
      %v3537 = vmul.f32 %v3536, %v3534
      %v3538 = vxor.u32 %v3537, 2147483648
      %v3539 = vsel %vm3456, %v3538, %v3537
      %v3540 = vsub.s32 4, %v3516
      %v3541 = vsel %vm3456, %v3540, %v3516
      %v3542 = vsel %vm3455, %v443, %v3539
      %v3543 = vsel %vm3455, 0, %v3541
      %v3544 = vcosq.f32.pop %v3542
      %v3545 = vsinq.f32.pop %v3542
      %vm3546 = vweird.f32 %v443
      %v3547 = vadd.s32 %v3543, 3
      %v3548 = vand.u32 %v3547, 3
      %vm3549 = vcmp.lt.s32.totalorder %v3548, 2
      %vm3550 = vcmp.eq.s32.totalorder %v3548, 0
      %v3551 = vxor.u32 %v3545, 2147483648
      %v3552 = vsel %vm3550, %v3544, %v3551
      %vm3553 = vcmp.eq.s32.totalorder %v3548, 2
      %v3554 = vxor.u32 %v3544, 2147483648
      %v3555 = vsel %vm3553, %v3554, %v3545
      %v3556 = vsel %vm3549, %v3552, %v3555
      %v3557 = vsel %vm3546, nan, %v3556
      %v3558 = vand.u32 2147483647, %v448
      %vm3559 = vcmp.le.f32.partialorder %v3558, 0.7853982
      %vm3560 = vcmp.lt.s32.totalorder %v448, 0
      %v3561 = vand.u32 %v448, 2139095040
      %v3562 = vshrl.u32 %v3561, 23
      %v3563 = vsub.s32 %v3562, 127
      %v3564 = vand.u32 2147483647, %v448
      %v3565 = vand.u32 %v3564, 8388607
      %v3566 = vor.u32 %v3565, 8388608
      %v3567 = vsub.s32 0, %v3566
      %v3568 = vadd.s32 %v3563, 1
      %vm3569 = vcmp.gt.s32.totalorder %v3568, 0
      %v3570 = vsel %vm3569, %v3568, 0
      %v3571 = vshrl.u32 %v3570, 5
      %v3572 = vand.u32 %v3570, 31
      %v3573 = vsub.s32 32, %v3572
      %v3574 = vshrl.u32 683565275, %v3573
      %v3575 = vshll.u32 683565275, %v3572
      %v3576 = vshrl.u32 2475754826, %v3573
      %v3577 = vor.u32 %v3575, %v3576
      %v3578 = vshll.u32 2475754826, %v3572
      %v3579 = vshrl.u32 2131351028, %v3573
      %v3580 = vor.u32 %v3578, %v3579
      %v3581 = vshll.u32 2131351028, %v3572
      %v3582 = vshrl.u32 2102212464, %v3573
      %v3583 = vor.u32 %v3581, %v3582
      %v3584 = vshll.u32 2102212464, %v3572
      %v3585 = vshrl.u32 920167782, %v3573
      %v3586 = vor.u32 %v3584, %v3585
      %v3587 = vshll.u32 920167782, %v3572
      %v3588 = vshrl.u32 1326507024, %v3573
      %v3589 = vor.u32 %v3587, %v3588
      %vm3590 = vcmp.lt.s32.totalorder %v3571, 1
      %vm3591 = vcmp.lt.s32.totalorder %v3571, 2
      %vm3592 = vcmp.lt.s32.totalorder %v3571, 3
      %vm3593 = vcmp.lt.s32.totalorder %v3571, 4
      %v3594 = vsel %vm3590, %v3574, %v3577
      %v3595 = vsel %vm3593, %v3583, 2102212464
      %v3596 = vsel %vm3592, %v3580, %v3595
      %v3597 = vsel %vm3591, %v3594, %v3596
      %v3598 = vsel %vm3590, %v3577, %v3580
      %v3599 = vsel %vm3593, %v3586, 920167782
      %v3600 = vsel %vm3592, %v3583, %v3599
      %v3601 = vsel %vm3591, %v3598, %v3600
      %v3602 = vsel %vm3590, %v3580, %v3583
      %v3603 = vsel %vm3593, %v3589, 1326507024
      %v3604 = vsel %vm3592, %v3586, %v3603
      %v3605 = vsel %vm3591, %v3602, %v3604
      %v3606 = vshll.u32 %v3566, 8
      %v3607 = vmul.u32.u64.compose %v3606, %v3605
      %v3608 = vextract.low.u32 %v3607
      %v3609 = vextract.high.u32 %v3607
      %v3610 = vmul.u32.u64.compose %v3606, %v3601
      %v3611 = vextract.low.u32 %v3610
      %v3612 = vextract.high.u32 %v3610
      %v3613 = vmul.u32 %v3606, %v3597
      %v3614 = vadd.s32 %v3609, %v3611
      %vm3615 = vc.u32 %v3609, %v3611
      %v3616 = vadd.s32 %v3612, 1
      %v3617 = vsel %vm3615, %v3616, %v3612
      %v3618 = vadd.s32 %v3613, %v3617
      %v3619 = vadd.s32 %v3618, 536870912
      %v3620 = vshrl.u32 %v3619, 30
      %v3621 = vshll.u32 %v3620, 30
      %v3622 = vsub.s32 %v3618, %v3621
      %vm3623 = vcmp.lt.s32.totalorder %v3622, 0
      %v3624 = vsub.s32 0, %v3622
      %v3625 = vsel %vm3623, %v3624, %v3622
      %v3626 = vclz %v3625
      %v3627 = vsub.s32 %v3626, 2
      %vm3628 = vcmp.gt.s32.totalorder 0, %v3627
      %v3629 = vsel %vm3628, 0, %v3627
      %v3630 = vsub.s32 32, %v3629
      %v3631 = vshll.u32 %v3622, %v3629
      %v3632 = vshrl.u32 %v3614, %v3630
      %v3633 = vor.u32 %v3631, %v3632
      %v3634 = vsub.s32 4294967266, %v3629
      %v3635 = vadd.s32 %v3634, 127
      %v3636 = vshll.u32 %v3635, 23
      %v3637 = vor.u32 4788187, %v3636
      %v3638 = vand.u32 2147483647, %v3637
      %v3640 = vcvt.s32.f32 %v3633
      %v3641 = vmul.f32 %v3640, %v3638
      %v3642 = vxor.u32 %v3641, 2147483648
      %v3643 = vsel %vm3560, %v3642, %v3641
      %v3644 = vsub.s32 4, %v3620
      %v3645 = vsel %vm3560, %v3644, %v3620
      %v3646 = vsel %vm3559, %v448, %v3643
      %v3647 = vsel %vm3559, 0, %v3645
      %v3648 = vcosq.f32.pop %v3646
      %v3649 = vsinq.f32.pop %v3646
      %vm3650 = vweird.f32 %v448
      %v3651 = vadd.s32 %v3647, 3
      %v3652 = vand.u32 %v3651, 3
      %vm3653 = vcmp.lt.s32.totalorder %v3652, 2
      %vm3654 = vcmp.eq.s32.totalorder %v3652, 0
      %v3655 = vxor.u32 %v3649, 2147483648
      %v3656 = vsel %vm3654, %v3648, %v3655
      %vm3657 = vcmp.eq.s32.totalorder %v3652, 2
      %v3658 = vxor.u32 %v3648, 2147483648
      %v3659 = vsel %vm3657, %v3658, %v3649
      %v3660 = vsel %vm3653, %v3656, %v3659
      %v3661 = vsel %vm3650, nan, %v3660
      %v3662 = vand.u32 2147483647, %v451
      %vm3663 = vcmp.le.f32.partialorder %v3662, 0.7853982
      %vm3664 = vcmp.lt.s32.totalorder %v451, 0
      %v3665 = vand.u32 %v451, 2139095040
      %v3666 = vshrl.u32 %v3665, 23
      %v3667 = vsub.s32 %v3666, 127
      %v3668 = vand.u32 2147483647, %v451
      %v3669 = vand.u32 %v3668, 8388607
      %v3670 = vor.u32 %v3669, 8388608
      %v3671 = vsub.s32 0, %v3670
      %v3672 = vadd.s32 %v3667, 1
      %vm3673 = vcmp.gt.s32.totalorder %v3672, 0
      %v3674 = vsel %vm3673, %v3672, 0
      %v3675 = vshrl.u32 %v3674, 5
      %v3676 = vand.u32 %v3674, 31
      %v3677 = vsub.s32 32, %v3676
      %v3678 = vshrl.u32 683565275, %v3677
      %v3679 = vshll.u32 683565275, %v3676
      %v3680 = vshrl.u32 2475754826, %v3677
      %v3681 = vor.u32 %v3679, %v3680
      %v3682 = vshll.u32 2475754826, %v3676
      %v3683 = vshrl.u32 2131351028, %v3677
      %v3684 = vor.u32 %v3682, %v3683
      %v3685 = vshll.u32 2131351028, %v3676
      %v3686 = vshrl.u32 2102212464, %v3677
      %v3687 = vor.u32 %v3685, %v3686
      %v3688 = vshll.u32 2102212464, %v3676
      %v3689 = vshrl.u32 920167782, %v3677
      %v3690 = vor.u32 %v3688, %v3689
      %v3691 = vshll.u32 920167782, %v3676
      %v3692 = vshrl.u32 1326507024, %v3677
      %v3693 = vor.u32 %v3691, %v3692
      %vm3694 = vcmp.lt.s32.totalorder %v3675, 1
      %vm3695 = vcmp.lt.s32.totalorder %v3675, 2
      %vm3696 = vcmp.lt.s32.totalorder %v3675, 3
      %vm3697 = vcmp.lt.s32.totalorder %v3675, 4
      %v3698 = vsel %vm3694, %v3678, %v3681
      %v3699 = vsel %vm3697, %v3687, 2102212464
      %v3700 = vsel %vm3696, %v3684, %v3699
      %v3701 = vsel %vm3695, %v3698, %v3700
      %v3702 = vsel %vm3694, %v3681, %v3684
      %v3703 = vsel %vm3697, %v3690, 920167782
      %v3704 = vsel %vm3696, %v3687, %v3703
      %v3705 = vsel %vm3695, %v3702, %v3704
      %v3706 = vsel %vm3694, %v3684, %v3687
      %v3707 = vsel %vm3697, %v3693, 1326507024
      %v3708 = vsel %vm3696, %v3690, %v3707
      %v3709 = vsel %vm3695, %v3706, %v3708
      %v3710 = vshll.u32 %v3670, 8
      %v3711 = vmul.u32.u64.compose %v3710, %v3709
      %v3712 = vextract.low.u32 %v3711
      %v3713 = vextract.high.u32 %v3711
      %v3714 = vmul.u32.u64.compose %v3710, %v3705
      %v3715 = vextract.low.u32 %v3714
      %v3716 = vextract.high.u32 %v3714
      %v3717 = vmul.u32 %v3710, %v3701
      %v3718 = vadd.s32 %v3713, %v3715
      %vm3719 = vc.u32 %v3713, %v3715
      %v3720 = vadd.s32 %v3716, 1
      %v3721 = vsel %vm3719, %v3720, %v3716
      %v3722 = vadd.s32 %v3717, %v3721
      %v3723 = vadd.s32 %v3722, 536870912
      %v3724 = vshrl.u32 %v3723, 30
      %v3725 = vshll.u32 %v3724, 30
      %v3726 = vsub.s32 %v3722, %v3725
      %vm3727 = vcmp.lt.s32.totalorder %v3726, 0
      %v3728 = vsub.s32 0, %v3726
      %v3729 = vsel %vm3727, %v3728, %v3726
      %v3730 = vclz %v3729
      %v3731 = vsub.s32 %v3730, 2
      %vm3732 = vcmp.gt.s32.totalorder 0, %v3731
      %v3733 = vsel %vm3732, 0, %v3731
      %v3734 = vsub.s32 32, %v3733
      %v3735 = vshll.u32 %v3726, %v3733
      %v3736 = vshrl.u32 %v3718, %v3734
      %v3737 = vor.u32 %v3735, %v3736
      %v3738 = vsub.s32 4294967266, %v3733
      %v3739 = vadd.s32 %v3738, 127
      %v3740 = vshll.u32 %v3739, 23
      %v3741 = vor.u32 4788187, %v3740
      %v3742 = vand.u32 2147483647, %v3741
      %v3744 = vcvt.s32.f32 %v3737
      %v3745 = vmul.f32 %v3744, %v3742
      %v3746 = vxor.u32 %v3745, 2147483648
      %v3747 = vsel %vm3664, %v3746, %v3745
      %v3748 = vsub.s32 4, %v3724
      %v3749 = vsel %vm3664, %v3748, %v3724
      %v3750 = vsel %vm3663, %v451, %v3747
      %v3751 = vsel %vm3663, 0, %v3749
      %v3752 = vcosq.f32.pop %v3750
      %v3753 = vsinq.f32.pop %v3750
      %vm3754 = vweird.f32 %v451
      %v3755 = vadd.s32 %v3751, 3
      %v3756 = vand.u32 %v3755, 3
      %vm3757 = vcmp.lt.s32.totalorder %v3756, 2
      %vm3758 = vcmp.eq.s32.totalorder %v3756, 0
      %v3759 = vxor.u32 %v3753, 2147483648
      %v3760 = vsel %vm3758, %v3752, %v3759
      %vm3761 = vcmp.eq.s32.totalorder %v3756, 2
      %v3762 = vxor.u32 %v3752, 2147483648
      %v3763 = vsel %vm3761, %v3762, %v3753
      %v3764 = vsel %vm3757, %v3760, %v3763
      %v3765 = vsel %vm3754, nan, %v3764
      %v3766 = vand.u32 2147483647, %v392
      %v3767 = vand.u32 2147483647, %v395
      %v3768 = vand.u32 2147483647, %v400
      %v3769 = vand.u32 2147483647, %v403
      %v3770 = vand.u32 2147483647, %v408
      %v3771 = vand.u32 2147483647, %v411
      %v3772 = vand.u32 2147483647, %v416
      %v3773 = vand.u32 2147483647, %v419
      %v3774 = vand.u32 2147483647, %v424
      %v3775 = vand.u32 2147483647, %v427
      %v3776 = vand.u32 2147483647, %v432
      %v3777 = vand.u32 2147483647, %v435
      %v3778 = vand.u32 2147483647, %v440
      %v3779 = vand.u32 2147483647, %v443
      %v3780 = vand.u32 2147483647, %v448
      %v3781 = vand.u32 2147483647, %v451
      %v3782 = vsub.f32 0.0, %v3766
      %v3783 = vsub.f32 0.0, %v3767
      %v3784 = vsub.f32 0.0, %v3768
      %v3785 = vsub.f32 0.0, %v3769
      %v3786 = vsub.f32 0.0, %v3770
      %v3787 = vsub.f32 0.0, %v3771
      %v3788 = vsub.f32 0.0, %v3772
      %v3789 = vsub.f32 0.0, %v3773
      %v3790 = vsub.f32 0.0, %v3774
      %v3791 = vsub.f32 0.0, %v3775
      %v3792 = vsub.f32 0.0, %v3776
      %v3793 = vsub.f32 0.0, %v3777
      %v3794 = vsub.f32 0.0, %v3778
      %v3795 = vsub.f32 0.0, %v3779
      %v3796 = vsub.f32 0.0, %v3780
      %v3797 = vsub.f32 0.0, %v3781
      %v3798 = vmul.f32 %v3782, 1.442695
      %v3799 = vpow.pop %v3798
      %v3800 = vmul.f32 %v3783, 1.442695
      %v3801 = vpow.pop %v3800
      %v3802 = vmul.f32 %v3784, 1.442695
      %v3803 = vpow.pop %v3802
      %v3804 = vmul.f32 %v3785, 1.442695
      %v3805 = vpow.pop %v3804
      %v3806 = vmul.f32 %v3786, 1.442695
      %v3807 = vpow.pop %v3806
      %v3808 = vmul.f32 %v3787, 1.442695
      %v3809 = vpow.pop %v3808
      %v3810 = vmul.f32 %v3788, 1.442695
      %v3811 = vpow.pop %v3810
      %v3812 = vmul.f32 %v3789, 1.442695
      %v3813 = vpow.pop %v3812
      %v3814 = vmul.f32 %v3790, 1.442695
      %v3815 = vpow.pop %v3814
      %v3816 = vmul.f32 %v3791, 1.442695
      %v3817 = vpow.pop %v3816
      %v3818 = vmul.f32 %v3792, 1.442695
      %v3819 = vpow.pop %v3818
      %v3820 = vmul.f32 %v3793, 1.442695
      %v3821 = vpow.pop %v3820
      %v3822 = vmul.f32 %v3794, 1.442695
      %v3823 = vpow.pop %v3822
      %v3824 = vmul.f32 %v3795, 1.442695
      %v3825 = vpow.pop %v3824
      %v3826 = vmul.f32 %v3796, 1.442695
      %v3827 = vpow.pop %v3826
      %v3828 = vmul.f32 %v3797, 1.442695
      %v3829 = vpow.pop %v3828
      %vm3830 = vcmp.ge.f32.partialorder %v392, 0.0
      %vm3831 = vcmp.ge.f32.partialorder %v395, 0.0
      %vm3832 = vcmp.ge.f32.partialorder %v400, 0.0
      %vm3833 = vcmp.ge.f32.partialorder %v403, 0.0
      %vm3834 = vcmp.ge.f32.partialorder %v408, 0.0
      %vm3835 = vcmp.ge.f32.partialorder %v411, 0.0
      %vm3836 = vcmp.ge.f32.partialorder %v416, 0.0
      %vm3837 = vcmp.ge.f32.partialorder %v419, 0.0
      %vm3838 = vcmp.ge.f32.partialorder %v424, 0.0
      %vm3839 = vcmp.ge.f32.partialorder %v427, 0.0
      %vm3840 = vcmp.ge.f32.partialorder %v432, 0.0
      %vm3841 = vcmp.ge.f32.partialorder %v435, 0.0
      %vm3842 = vcmp.ge.f32.partialorder %v440, 0.0
      %vm3843 = vcmp.ge.f32.partialorder %v443, 0.0
      %vm3844 = vcmp.ge.f32.partialorder %v448, 0.0
      %vm3845 = vcmp.ge.f32.partialorder %v451, 0.0
      %3862 = vrot.lane.b32.xlu0 %v556, 64
      %v3863 = vpop.permute.xlu0 %3862
      %3864 = vrot.lane.b32.xlu0 %v659, 64
      %v3865 = vpop.permute.xlu0 %3864
      %3866 = vrot.lane.b32.xlu0 %v762, 64
      %v3867 = vpop.permute.xlu0 %3866
      %3868 = vrot.lane.b32.xlu0 %v865, 64
      %v3869 = vpop.permute.xlu0 %3868
      %3870 = vrot.lane.b32.xlu0 %v968, 64
      %v3871 = vpop.permute.xlu0 %3870
      %3872 = vrot.lane.b32.xlu0 %v1071, 64
      %v3873 = vpop.permute.xlu0 %3872
      %3874 = vrot.lane.b32.xlu0 %v1174, 64
      %v3875 = vpop.permute.xlu0 %3874
      %3876 = vrot.lane.b32.xlu0 %v1277, 64
      %v3877 = vpop.permute.xlu0 %3876
      %3878 = vrot.lane.b32.xlu0 %v1380, 64
      %v3879 = vpop.permute.xlu0 %3878
      %3880 = vrot.lane.b32.xlu0 %v1483, 64
      %v3881 = vpop.permute.xlu0 %3880
      %3882 = vrot.lane.b32.xlu0 %v1586, 64
      %v3883 = vpop.permute.xlu0 %3882
      %3884 = vrot.lane.b32.xlu0 %v1689, 64
      %v3885 = vpop.permute.xlu0 %3884
      %3886 = vrot.lane.b32.xlu0 %v1792, 64
      %v3887 = vpop.permute.xlu0 %3886
      %3888 = vrot.lane.b32.xlu0 %v1895, 64
      %v3889 = vpop.permute.xlu0 %3888
      %3890 = vrot.lane.b32.xlu0 %v1998, 64
      %v3891 = vpop.permute.xlu0 %3890
      %3892 = vrot.lane.b32.xlu0 %v2101, 64
      %v3893 = vpop.permute.xlu0 %3892
      %v3910 = vmul.f32 %v3799, %v3863
      %v3911 = vmul.f32 %v3801, %v3865
      %v3912 = vmul.f32 %v3803, %v3867
      %v3913 = vmul.f32 %v3805, %v3869
      %v3914 = vmul.f32 %v3807, %v3871
      %v3915 = vmul.f32 %v3809, %v3873
      %v3916 = vmul.f32 %v3811, %v3875
      %v3917 = vmul.f32 %v3813, %v3877
      %v3918 = vmul.f32 %v3815, %v3879
      %v3919 = vmul.f32 %v3817, %v3881
      %v3920 = vmul.f32 %v3819, %v3883
      %v3921 = vmul.f32 %v3821, %v3885
      %v3922 = vmul.f32 %v3823, %v3887
      %v3923 = vmul.f32 %v3825, %v3889
      %v3924 = vmul.f32 %v3827, %v3891
      %v3925 = vmul.f32 %v3829, %v3893
      %v3926 = vadd.f32 %v3910, 1.0
      %v3927 = vadd.f32 %v3911, 1.0
      %v3928 = vadd.f32 %v3912, 1.0
      %v3929 = vadd.f32 %v3913, 1.0
      %v3930 = vadd.f32 %v3914, 1.0
      %v3931 = vadd.f32 %v3915, 1.0
      %v3932 = vadd.f32 %v3916, 1.0
      %v3933 = vadd.f32 %v3917, 1.0
      %v3934 = vadd.f32 %v3918, 1.0
      %v3935 = vadd.f32 %v3919, 1.0
      %v3936 = vadd.f32 %v3920, 1.0
      %v3937 = vadd.f32 %v3921, 1.0
      %v3938 = vadd.f32 %v3922, 1.0
      %v3939 = vadd.f32 %v3923, 1.0
      %v3940 = vadd.f32 %v3924, 1.0
      %v3941 = vadd.f32 %v3925, 1.0
      %v3942 = vsub.f32 0.0, %v3799
      %v3943 = vsub.f32 0.0, %v3801
      %v3944 = vsub.f32 0.0, %v3803
      %v3945 = vsub.f32 0.0, %v3805
      %v3946 = vsub.f32 0.0, %v3807
      %v3947 = vsub.f32 0.0, %v3809
      %v3948 = vsub.f32 0.0, %v3811
      %v3949 = vsub.f32 0.0, %v3813
      %v3950 = vsub.f32 0.0, %v3815
      %v3951 = vsub.f32 0.0, %v3817
      %v3952 = vsub.f32 0.0, %v3819
      %v3953 = vsub.f32 0.0, %v3821
      %v3954 = vsub.f32 0.0, %v3823
      %v3955 = vsub.f32 0.0, %v3825
      %v3956 = vsub.f32 0.0, %v3827
      %v3957 = vsub.f32 0.0, %v3829
      %3974 = vrot.lane.b32.xlu0 %v2205, 64
      %v3975 = vpop.permute.xlu0 %3974
      %3976 = vrot.lane.b32.xlu0 %v2309, 64
      %v3977 = vpop.permute.xlu0 %3976
      %3978 = vrot.lane.b32.xlu0 %v2413, 64
      %v3979 = vpop.permute.xlu0 %3978
      %3980 = vrot.lane.b32.xlu0 %v2517, 64
      %v3981 = vpop.permute.xlu0 %3980
      %3982 = vrot.lane.b32.xlu0 %v2621, 64
      %v3983 = vpop.permute.xlu0 %3982
      %3984 = vrot.lane.b32.xlu0 %v2725, 64
      %v3985 = vpop.permute.xlu0 %3984
      %3986 = vrot.lane.b32.xlu0 %v2829, 64
      %v3987 = vpop.permute.xlu0 %3986
      %3988 = vrot.lane.b32.xlu0 %v2933, 64
      %v3989 = vpop.permute.xlu0 %3988
      %3990 = vrot.lane.b32.xlu0 %v3037, 64
      %v3991 = vpop.permute.xlu0 %3990
      %3992 = vrot.lane.b32.xlu0 %v3141, 64
      %v3993 = vpop.permute.xlu0 %3992
      %3994 = vrot.lane.b32.xlu0 %v3245, 64
      %v3995 = vpop.permute.xlu0 %3994
      %3996 = vrot.lane.b32.xlu0 %v3349, 64
      %v3997 = vpop.permute.xlu0 %3996
      %3998 = vrot.lane.b32.xlu0 %v3453, 64
      %v3999 = vpop.permute.xlu0 %3998
      %4000 = vrot.lane.b32.xlu0 %v3557, 64
      %v4001 = vpop.permute.xlu0 %4000
      %4002 = vrot.lane.b32.xlu0 %v3661, 64
      %v4003 = vpop.permute.xlu0 %4002
      %4004 = vrot.lane.b32.xlu0 %v3765, 64
      %v4005 = vpop.permute.xlu0 %4004
      %v4022 = vmul.f32 %v3942, %v3975
      %v4023 = vmul.f32 %v3943, %v3977
      %v4024 = vmul.f32 %v3944, %v3979
      %v4025 = vmul.f32 %v3945, %v3981
      %v4026 = vmul.f32 %v3946, %v3983
      %v4027 = vmul.f32 %v3947, %v3985
      %v4028 = vmul.f32 %v3948, %v3987
      %v4029 = vmul.f32 %v3949, %v3989
      %v4030 = vmul.f32 %v3950, %v3991
      %v4031 = vmul.f32 %v3951, %v3993
      %v4032 = vmul.f32 %v3952, %v3995
      %v4033 = vmul.f32 %v3953, %v3997
      %v4034 = vmul.f32 %v3954, %v3999
      %v4035 = vmul.f32 %v3955, %v4001
      %v4036 = vmul.f32 %v3956, %v4003
      %v4037 = vmul.f32 %v3957, %v4005
      %v4038 = vmul.f32 %v3799, %v3975
      %v4039 = vmul.f32 %v3801, %v3977
      %v4040 = vmul.f32 %v3803, %v3979
      %v4041 = vmul.f32 %v3805, %v3981
      %v4042 = vmul.f32 %v3807, %v3983
      %v4043 = vmul.f32 %v3809, %v3985
      %v4044 = vmul.f32 %v3811, %v3987
      %v4045 = vmul.f32 %v3813, %v3989
      %v4046 = vmul.f32 %v3815, %v3991
      %v4047 = vmul.f32 %v3817, %v3993
      %v4048 = vmul.f32 %v3819, %v3995
      %v4049 = vmul.f32 %v3821, %v3997
      %v4050 = vmul.f32 %v3823, %v3999
      %v4051 = vmul.f32 %v3825, %v4001
      %v4052 = vmul.f32 %v3827, %v4003
      %v4053 = vmul.f32 %v3829, %v4005
      %v4054 = vsel %vm3830, %v4022, %v4038
      %v4055 = vsel %vm3831, %v4023, %v4039
      %v4056 = vsel %vm3832, %v4024, %v4040
      %v4057 = vsel %vm3833, %v4025, %v4041
      %v4058 = vsel %vm3834, %v4026, %v4042
      %v4059 = vsel %vm3835, %v4027, %v4043
      %v4060 = vsel %vm3836, %v4028, %v4044
      %v4061 = vsel %vm3837, %v4029, %v4045
      %v4062 = vsel %vm3838, %v4030, %v4046
      %v4063 = vsel %vm3839, %v4031, %v4047
      %v4064 = vsel %vm3840, %v4032, %v4048
      %v4065 = vsel %vm3841, %v4033, %v4049
      %v4066 = vsel %vm3842, %v4034, %v4050
      %v4067 = vsel %vm3843, %v4035, %v4051
      %v4068 = vsel %vm3844, %v4036, %v4052
      %v4069 = vsel %vm3845, %v4037, %v4053
      %v4070 = vsel %vm3830, 1.0, %v3910
      %v4071 = vsel %vm3831, 1.0, %v3911
      %v4072 = vsel %vm3832, 1.0, %v3912
      %v4073 = vsel %vm3833, 1.0, %v3913
      %v4074 = vsel %vm3834, 1.0, %v3914
      %v4075 = vsel %vm3835, 1.0, %v3915
      %v4076 = vsel %vm3836, 1.0, %v3916
      %v4077 = vsel %vm3837, 1.0, %v3917
      %v4078 = vsel %vm3838, 1.0, %v3918
      %v4079 = vsel %vm3839, 1.0, %v3919
      %v4080 = vsel %vm3840, 1.0, %v3920
      %v4081 = vsel %vm3841, 1.0, %v3921
      %v4082 = vsel %vm3842, 1.0, %v3922
      %v4083 = vsel %vm3843, 1.0, %v3923
      %v4084 = vsel %vm3844, 1.0, %v3924
      %v4085 = vsel %vm3845, 1.0, %v3925
      %v4086 = vsel %vm3830, 0.0, %v4038
      %v4087 = vsel %vm3831, 0.0, %v4039
      %v4088 = vsel %vm3832, 0.0, %v4040
      %v4089 = vsel %vm3833, 0.0, %v4041
      %v4090 = vsel %vm3834, 0.0, %v4042
      %v4091 = vsel %vm3835, 0.0, %v4043
      %v4092 = vsel %vm3836, 0.0, %v4044
      %v4093 = vsel %vm3837, 0.0, %v4045
      %v4094 = vsel %vm3838, 0.0, %v4046
      %v4095 = vsel %vm3839, 0.0, %v4047
      %v4096 = vsel %vm3840, 0.0, %v4048
      %v4097 = vsel %vm3841, 0.0, %v4049
      %v4098 = vsel %vm3842, 0.0, %v4050
      %v4099 = vsel %vm3843, 0.0, %v4051
      %v4100 = vsel %vm3844, 0.0, %v4052
      %v4101 = vsel %vm3845, 0.0, %v4053
      %v4102 = vmul.f32 %v3926, %v3926
      %v4103 = vmul.f32 %v3927, %v3927
      %v4104 = vmul.f32 %v3928, %v3928
      %v4105 = vmul.f32 %v3929, %v3929
      %v4106 = vmul.f32 %v3930, %v3930
      %v4107 = vmul.f32 %v3931, %v3931
      %v4108 = vmul.f32 %v3932, %v3932
      %v4109 = vmul.f32 %v3933, %v3933
      %v4110 = vmul.f32 %v3934, %v3934
      %v4111 = vmul.f32 %v3935, %v3935
      %v4112 = vmul.f32 %v3936, %v3936
      %v4113 = vmul.f32 %v3937, %v3937
      %v4114 = vmul.f32 %v3938, %v3938
      %v4115 = vmul.f32 %v3939, %v3939
      %v4116 = vmul.f32 %v3940, %v3940
      %v4117 = vmul.f32 %v3941, %v3941
      %v4118 = vmul.f32 %v4054, %v4054
      %v4119 = vmul.f32 %v4055, %v4055
      %v4120 = vmul.f32 %v4056, %v4056
      %v4121 = vmul.f32 %v4057, %v4057
      %v4122 = vmul.f32 %v4058, %v4058
      %v4123 = vmul.f32 %v4059, %v4059
      %v4124 = vmul.f32 %v4060, %v4060
      %v4125 = vmul.f32 %v4061, %v4061
      %v4126 = vmul.f32 %v4062, %v4062
      %v4127 = vmul.f32 %v4063, %v4063
      %v4128 = vmul.f32 %v4064, %v4064
      %v4129 = vmul.f32 %v4065, %v4065
      %v4130 = vmul.f32 %v4066, %v4066
      %v4131 = vmul.f32 %v4067, %v4067
      %v4132 = vmul.f32 %v4068, %v4068
      %v4133 = vmul.f32 %v4069, %v4069
      %v4134 = vadd.f32 %v4102, %v4118
      %v4135 = vadd.f32 %v4103, %v4119
      %v4136 = vadd.f32 %v4104, %v4120
      %v4137 = vadd.f32 %v4105, %v4121
      %v4138 = vadd.f32 %v4106, %v4122
      %v4139 = vadd.f32 %v4107, %v4123
      %v4140 = vadd.f32 %v4108, %v4124
      %v4141 = vadd.f32 %v4109, %v4125
      %v4142 = vadd.f32 %v4110, %v4126
      %v4143 = vadd.f32 %v4111, %v4127
      %v4144 = vadd.f32 %v4112, %v4128
      %v4145 = vadd.f32 %v4113, %v4129
      %v4146 = vadd.f32 %v4114, %v4130
      %v4147 = vadd.f32 %v4115, %v4131
      %v4148 = vadd.f32 %v4116, %v4132
      %v4149 = vadd.f32 %v4117, %v4133
      %v4150 = vrcp.pop %v4134
      %v4151 = vrcp.pop %v4135
      %v4152 = vrcp.pop %v4136
      %v4153 = vrcp.pop %v4137
      %v4154 = vrcp.pop %v4138
      %v4155 = vrcp.pop %v4139
      %v4156 = vrcp.pop %v4140
      %v4157 = vrcp.pop %v4141
      %v4158 = vrcp.pop %v4142
      %v4159 = vrcp.pop %v4143
      %v4160 = vrcp.pop %v4144
      %v4161 = vrcp.pop %v4145
      %v4162 = vrcp.pop %v4146
      %v4163 = vrcp.pop %v4147
      %v4164 = vrcp.pop %v4148
      %v4165 = vrcp.pop %v4149
      %v4166 = vmul.f32 %v4070, %v3926
      %v4167 = vmul.f32 %v4071, %v3927
      %v4168 = vmul.f32 %v4072, %v3928
      %v4169 = vmul.f32 %v4073, %v3929
      %v4170 = vmul.f32 %v4074, %v3930
      %v4171 = vmul.f32 %v4075, %v3931
      %v4172 = vmul.f32 %v4076, %v3932
      %v4173 = vmul.f32 %v4077, %v3933
      %v4174 = vmul.f32 %v4078, %v3934
      %v4175 = vmul.f32 %v4079, %v3935
      %v4176 = vmul.f32 %v4080, %v3936
      %v4177 = vmul.f32 %v4081, %v3937
      %v4178 = vmul.f32 %v4082, %v3938
      %v4179 = vmul.f32 %v4083, %v3939
      %v4180 = vmul.f32 %v4084, %v3940
      %v4181 = vmul.f32 %v4085, %v3941
      %v4182 = vmul.f32 %v4086, %v4054
      %v4183 = vmul.f32 %v4087, %v4055
      %v4184 = vmul.f32 %v4088, %v4056
      %v4185 = vmul.f32 %v4089, %v4057
      %v4186 = vmul.f32 %v4090, %v4058
      %v4187 = vmul.f32 %v4091, %v4059
      %v4188 = vmul.f32 %v4092, %v4060
      %v4189 = vmul.f32 %v4093, %v4061
      %v4190 = vmul.f32 %v4094, %v4062
      %v4191 = vmul.f32 %v4095, %v4063
      %v4192 = vmul.f32 %v4096, %v4064
      %v4193 = vmul.f32 %v4097, %v4065
      %v4194 = vmul.f32 %v4098, %v4066
      %v4195 = vmul.f32 %v4099, %v4067
      %v4196 = vmul.f32 %v4100, %v4068
      %v4197 = vmul.f32 %v4101, %v4069
      %v4198 = vadd.f32 %v4166, %v4182
      %v4199 = vadd.f32 %v4167, %v4183
      %v4200 = vadd.f32 %v4168, %v4184
      %v4201 = vadd.f32 %v4169, %v4185
      %v4202 = vadd.f32 %v4170, %v4186
      %v4203 = vadd.f32 %v4171, %v4187
      %v4204 = vadd.f32 %v4172, %v4188
      %v4205 = vadd.f32 %v4173, %v4189
      %v4206 = vadd.f32 %v4174, %v4190
      %v4207 = vadd.f32 %v4175, %v4191
      %v4208 = vadd.f32 %v4176, %v4192
      %v4209 = vadd.f32 %v4177, %v4193
      %v4210 = vadd.f32 %v4178, %v4194
      %v4211 = vadd.f32 %v4179, %v4195
      %v4212 = vadd.f32 %v4180, %v4196
      %v4213 = vadd.f32 %v4181, %v4197
      %v4214 = vmul.f32 %v4198, %v4150
      %v4215 = vmul.f32 %v4199, %v4151
      %v4216 = vmul.f32 %v4200, %v4152
      %v4217 = vmul.f32 %v4201, %v4153
      %v4218 = vmul.f32 %v4202, %v4154
      %v4219 = vmul.f32 %v4203, %v4155
      %v4220 = vmul.f32 %v4204, %v4156
      %v4221 = vmul.f32 %v4205, %v4157
      %v4222 = vmul.f32 %v4206, %v4158
      %v4223 = vmul.f32 %v4207, %v4159
      %v4224 = vmul.f32 %v4208, %v4160
      %v4225 = vmul.f32 %v4209, %v4161
      %v4226 = vmul.f32 %v4210, %v4162
      %v4227 = vmul.f32 %v4211, %v4163
      %v4228 = vmul.f32 %v4212, %v4164
      %v4229 = vmul.f32 %v4213, %v4165
      %v4230 = vmul.f32 %v4086, %v3926
      %v4231 = vmul.f32 %v4087, %v3927
      %v4232 = vmul.f32 %v4088, %v3928
      %v4233 = vmul.f32 %v4089, %v3929
      %v4234 = vmul.f32 %v4090, %v3930
      %v4235 = vmul.f32 %v4091, %v3931
      %v4236 = vmul.f32 %v4092, %v3932
      %v4237 = vmul.f32 %v4093, %v3933
      %v4238 = vmul.f32 %v4094, %v3934
      %v4239 = vmul.f32 %v4095, %v3935
      %v4240 = vmul.f32 %v4096, %v3936
      %v4241 = vmul.f32 %v4097, %v3937
      %v4242 = vmul.f32 %v4098, %v3938
      %v4243 = vmul.f32 %v4099, %v3939
      %v4244 = vmul.f32 %v4100, %v3940
      %v4245 = vmul.f32 %v4101, %v3941
      %v4246 = vmul.f32 %v4070, %v4054
      %v4247 = vmul.f32 %v4071, %v4055
      %v4248 = vmul.f32 %v4072, %v4056
      %v4249 = vmul.f32 %v4073, %v4057
      %v4250 = vmul.f32 %v4074, %v4058
      %v4251 = vmul.f32 %v4075, %v4059
      %v4252 = vmul.f32 %v4076, %v4060
      %v4253 = vmul.f32 %v4077, %v4061
      %v4254 = vmul.f32 %v4078, %v4062
      %v4255 = vmul.f32 %v4079, %v4063
      %v4256 = vmul.f32 %v4080, %v4064
      %v4257 = vmul.f32 %v4081, %v4065
      %v4258 = vmul.f32 %v4082, %v4066
      %v4259 = vmul.f32 %v4083, %v4067
      %v4260 = vmul.f32 %v4084, %v4068
      %v4261 = vmul.f32 %v4085, %v4069
      %v4262 = vsub.f32 %v4230, %v4246
      %v4263 = vsub.f32 %v4231, %v4247
      %v4264 = vsub.f32 %v4232, %v4248
      %v4265 = vsub.f32 %v4233, %v4249
      %v4266 = vsub.f32 %v4234, %v4250
      %v4267 = vsub.f32 %v4235, %v4251
      %v4268 = vsub.f32 %v4236, %v4252
      %v4269 = vsub.f32 %v4237, %v4253
      %v4270 = vsub.f32 %v4238, %v4254
      %v4271 = vsub.f32 %v4239, %v4255
      %v4272 = vsub.f32 %v4240, %v4256
      %v4273 = vsub.f32 %v4241, %v4257
      %v4274 = vsub.f32 %v4242, %v4258
      %v4275 = vsub.f32 %v4243, %v4259
      %v4276 = vsub.f32 %v4244, %v4260
      %v4277 = vsub.f32 %v4245, %v4261
      %v4278 = vmul.f32 %v4262, %v4150
      %v4279 = vmul.f32 %v4263, %v4151
      %v4280 = vmul.f32 %v4264, %v4152
      %v4281 = vmul.f32 %v4265, %v4153
      %v4282 = vmul.f32 %v4266, %v4154
      %v4283 = vmul.f32 %v4267, %v4155
      %v4284 = vmul.f32 %v4268, %v4156
      %v4285 = vmul.f32 %v4269, %v4157
      %v4286 = vmul.f32 %v4270, %v4158
      %v4287 = vmul.f32 %v4271, %v4159
      %v4288 = vmul.f32 %v4272, %v4160
      %v4289 = vmul.f32 %v4273, %v4161
      %v4290 = vmul.f32 %v4274, %v4162
      %v4291 = vmul.f32 %v4275, %v4163
      %v4292 = vmul.f32 %v4276, %v4164
      %v4293 = vmul.f32 %v4277, %v4165
      %v4294 = vmul.f32 %v392, %v4214
      %v4295 = vmul.f32 %v395, %v4215
      %v4296 = vmul.f32 %v400, %v4216
      %v4297 = vmul.f32 %v403, %v4217
      %v4298 = vmul.f32 %v408, %v4218
      %v4299 = vmul.f32 %v411, %v4219
      %v4300 = vmul.f32 %v416, %v4220
      %v4301 = vmul.f32 %v419, %v4221
      %v4302 = vmul.f32 %v424, %v4222
      %v4303 = vmul.f32 %v427, %v4223
      %v4304 = vmul.f32 %v432, %v4224
      %v4305 = vmul.f32 %v435, %v4225
      %v4306 = vmul.f32 %v440, %v4226
      %v4307 = vmul.f32 %v443, %v4227
      %v4308 = vmul.f32 %v448, %v4228
      %v4309 = vmul.f32 %v451, %v4229
      %4326 = vrot.lane.b32.xlu0 %v4278, 64
      %v4327 = vpop.permute.xlu0 %4326
      %4328 = vrot.lane.b32.xlu0 %v4279, 64
      %v4329 = vpop.permute.xlu0 %4328
      %4330 = vrot.lane.b32.xlu0 %v4280, 64
      %v4331 = vpop.permute.xlu0 %4330
      %4332 = vrot.lane.b32.xlu0 %v4281, 64
      %v4333 = vpop.permute.xlu0 %4332
      %4334 = vrot.lane.b32.xlu0 %v4282, 64
      %v4335 = vpop.permute.xlu0 %4334
      %4336 = vrot.lane.b32.xlu0 %v4283, 64
      %v4337 = vpop.permute.xlu0 %4336
      %4338 = vrot.lane.b32.xlu0 %v4284, 64
      %v4339 = vpop.permute.xlu0 %4338
      %4340 = vrot.lane.b32.xlu0 %v4285, 64
      %v4341 = vpop.permute.xlu0 %4340
      %4342 = vrot.lane.b32.xlu0 %v4286, 64
      %v4343 = vpop.permute.xlu0 %4342
      %4344 = vrot.lane.b32.xlu0 %v4287, 64
      %v4345 = vpop.permute.xlu0 %4344
      %4346 = vrot.lane.b32.xlu0 %v4288, 64
      %v4347 = vpop.permute.xlu0 %4346
      %4348 = vrot.lane.b32.xlu0 %v4289, 64
      %v4349 = vpop.permute.xlu0 %4348
      %4350 = vrot.lane.b32.xlu0 %v4290, 64
      %v4351 = vpop.permute.xlu0 %4350
      %4352 = vrot.lane.b32.xlu0 %v4291, 64
      %v4353 = vpop.permute.xlu0 %4352
      %4354 = vrot.lane.b32.xlu0 %v4292, 64
      %v4355 = vpop.permute.xlu0 %4354
      %4356 = vrot.lane.b32.xlu0 %v4293, 64
      %v4357 = vpop.permute.xlu0 %4356
      %v4374 = vmul.f32 %v392, %v4327
      %v4375 = vmul.f32 %v395, %v4329
      %v4376 = vmul.f32 %v400, %v4331
      %v4377 = vmul.f32 %v403, %v4333
      %v4378 = vmul.f32 %v408, %v4335
      %v4379 = vmul.f32 %v411, %v4337
      %v4380 = vmul.f32 %v416, %v4339
      %v4381 = vmul.f32 %v419, %v4341
      %v4382 = vmul.f32 %v424, %v4343
      %v4383 = vmul.f32 %v427, %v4345
      %v4384 = vmul.f32 %v432, %v4347
      %v4385 = vmul.f32 %v435, %v4349
      %v4386 = vmul.f32 %v440, %v4351
      %v4387 = vmul.f32 %v443, %v4353
      %v4388 = vmul.f32 %v448, %v4355
      %v4389 = vmul.f32 %v451, %v4357
      %4406 = vrot.lane.b32.xlu0 %v4374, 64
      %v4407 = vpop.permute.xlu0 %4406
      %4408 = vrot.lane.b32.xlu0 %v4375, 64
      %v4409 = vpop.permute.xlu0 %4408
      %4410 = vrot.lane.b32.xlu0 %v4376, 64
      %v4411 = vpop.permute.xlu0 %4410
      %4412 = vrot.lane.b32.xlu0 %v4377, 64
      %v4413 = vpop.permute.xlu0 %4412
      %4414 = vrot.lane.b32.xlu0 %v4378, 64
      %v4415 = vpop.permute.xlu0 %4414
      %4416 = vrot.lane.b32.xlu0 %v4379, 64
      %v4417 = vpop.permute.xlu0 %4416
      %4418 = vrot.lane.b32.xlu0 %v4380, 64
      %v4419 = vpop.permute.xlu0 %4418
      %4420 = vrot.lane.b32.xlu0 %v4381, 64
      %v4421 = vpop.permute.xlu0 %4420
      %4422 = vrot.lane.b32.xlu0 %v4382, 64
      %v4423 = vpop.permute.xlu0 %4422
      %4424 = vrot.lane.b32.xlu0 %v4383, 64
      %v4425 = vpop.permute.xlu0 %4424
      %4426 = vrot.lane.b32.xlu0 %v4384, 64
      %v4427 = vpop.permute.xlu0 %4426
      %4428 = vrot.lane.b32.xlu0 %v4385, 64
      %v4429 = vpop.permute.xlu0 %4428
      %4430 = vrot.lane.b32.xlu0 %v4386, 64
      %v4431 = vpop.permute.xlu0 %4430
      %4432 = vrot.lane.b32.xlu0 %v4387, 64
      %v4433 = vpop.permute.xlu0 %4432
      %4434 = vrot.lane.b32.xlu0 %v4388, 64
      %v4435 = vpop.permute.xlu0 %4434
      %4436 = vrot.lane.b32.xlu0 %v4389, 64
      %v4437 = vpop.permute.xlu0 %4436
      %v4454 = vsub.f32 %v4294, %v4407
      %v4455 = vsub.f32 %v4295, %v4409
      %v4456 = vsub.f32 %v4296, %v4411
      %v4457 = vsub.f32 %v4297, %v4413
      %v4458 = vsub.f32 %v4298, %v4415
      %v4459 = vsub.f32 %v4299, %v4417
      %v4460 = vsub.f32 %v4300, %v4419
      %v4461 = vsub.f32 %v4301, %v4421
      %v4462 = vsub.f32 %v4302, %v4423
      %v4463 = vsub.f32 %v4303, %v4425
      %v4464 = vsub.f32 %v4304, %v4427
      %v4465 = vsub.f32 %v4305, %v4429
      %v4466 = vsub.f32 %v4306, %v4431
      %v4467 = vsub.f32 %v4307, %v4433
      %v4468 = vsub.f32 %v4308, %v4435
      %v4469 = vsub.f32 %v4309, %v4437
      %v4470 = vmul.f32 %v392, %v4278
      %v4471 = vmul.f32 %v395, %v4279
      %v4472 = vmul.f32 %v400, %v4280
      %v4473 = vmul.f32 %v403, %v4281
      %v4474 = vmul.f32 %v408, %v4282
      %v4475 = vmul.f32 %v411, %v4283
      %v4476 = vmul.f32 %v416, %v4284
      %v4477 = vmul.f32 %v419, %v4285
      %v4478 = vmul.f32 %v424, %v4286
      %v4479 = vmul.f32 %v427, %v4287
      %v4480 = vmul.f32 %v432, %v4288
      %v4481 = vmul.f32 %v435, %v4289
      %v4482 = vmul.f32 %v440, %v4290
      %v4483 = vmul.f32 %v443, %v4291
      %v4484 = vmul.f32 %v448, %v4292
      %v4485 = vmul.f32 %v451, %v4293
      %4502 = vrot.lane.b32.xlu0 %v4214, 64
      %v4503 = vpop.permute.xlu0 %4502
      %4504 = vrot.lane.b32.xlu0 %v4215, 64
      %v4505 = vpop.permute.xlu0 %4504
      %4506 = vrot.lane.b32.xlu0 %v4216, 64
      %v4507 = vpop.permute.xlu0 %4506
      %4508 = vrot.lane.b32.xlu0 %v4217, 64
      %v4509 = vpop.permute.xlu0 %4508
      %4510 = vrot.lane.b32.xlu0 %v4218, 64
      %v4511 = vpop.permute.xlu0 %4510
      %4512 = vrot.lane.b32.xlu0 %v4219, 64
      %v4513 = vpop.permute.xlu0 %4512
      %4514 = vrot.lane.b32.xlu0 %v4220, 64
      %v4515 = vpop.permute.xlu0 %4514
      %4516 = vrot.lane.b32.xlu0 %v4221, 64
      %v4517 = vpop.permute.xlu0 %4516
      %4518 = vrot.lane.b32.xlu0 %v4222, 64
      %v4519 = vpop.permute.xlu0 %4518
      %4520 = vrot.lane.b32.xlu0 %v4223, 64
      %v4521 = vpop.permute.xlu0 %4520
      %4522 = vrot.lane.b32.xlu0 %v4224, 64
      %v4523 = vpop.permute.xlu0 %4522
      %4524 = vrot.lane.b32.xlu0 %v4225, 64
      %v4525 = vpop.permute.xlu0 %4524
      %4526 = vrot.lane.b32.xlu0 %v4226, 64
      %v4527 = vpop.permute.xlu0 %4526
      %4528 = vrot.lane.b32.xlu0 %v4227, 64
      %v4529 = vpop.permute.xlu0 %4528
      %4530 = vrot.lane.b32.xlu0 %v4228, 64
      %v4531 = vpop.permute.xlu0 %4530
      %4532 = vrot.lane.b32.xlu0 %v4229, 64
      %v4533 = vpop.permute.xlu0 %4532
      %v4550 = vmul.f32 %v392, %v4503
      %v4551 = vmul.f32 %v395, %v4505
      %v4552 = vmul.f32 %v400, %v4507
      %v4553 = vmul.f32 %v403, %v4509
      %v4554 = vmul.f32 %v408, %v4511
      %v4555 = vmul.f32 %v411, %v4513
      %v4556 = vmul.f32 %v416, %v4515
      %v4557 = vmul.f32 %v419, %v4517
      %v4558 = vmul.f32 %v424, %v4519
      %v4559 = vmul.f32 %v427, %v4521
      %v4560 = vmul.f32 %v432, %v4523
      %v4561 = vmul.f32 %v435, %v4525
      %v4562 = vmul.f32 %v440, %v4527
      %v4563 = vmul.f32 %v443, %v4529
      %v4564 = vmul.f32 %v448, %v4531
      %v4565 = vmul.f32 %v451, %v4533
      %4582 = vrot.lane.b32.xlu0 %v4550, 64
      %v4583 = vpop.permute.xlu0 %4582
      %4584 = vrot.lane.b32.xlu0 %v4551, 64
      %v4585 = vpop.permute.xlu0 %4584
      %4586 = vrot.lane.b32.xlu0 %v4552, 64
      %v4587 = vpop.permute.xlu0 %4586
      %4588 = vrot.lane.b32.xlu0 %v4553, 64
      %v4589 = vpop.permute.xlu0 %4588
      %4590 = vrot.lane.b32.xlu0 %v4554, 64
      %v4591 = vpop.permute.xlu0 %4590
      %4592 = vrot.lane.b32.xlu0 %v4555, 64
      %v4593 = vpop.permute.xlu0 %4592
      %4594 = vrot.lane.b32.xlu0 %v4556, 64
      %v4595 = vpop.permute.xlu0 %4594
      %4596 = vrot.lane.b32.xlu0 %v4557, 64
      %v4597 = vpop.permute.xlu0 %4596
      %4598 = vrot.lane.b32.xlu0 %v4558, 64
      %v4599 = vpop.permute.xlu0 %4598
      %4600 = vrot.lane.b32.xlu0 %v4559, 64
      %v4601 = vpop.permute.xlu0 %4600
      %4602 = vrot.lane.b32.xlu0 %v4560, 64
      %v4603 = vpop.permute.xlu0 %4602
      %4604 = vrot.lane.b32.xlu0 %v4561, 64
      %v4605 = vpop.permute.xlu0 %4604
      %4606 = vrot.lane.b32.xlu0 %v4562, 64
      %v4607 = vpop.permute.xlu0 %4606
      %4608 = vrot.lane.b32.xlu0 %v4563, 64
      %v4609 = vpop.permute.xlu0 %4608
      %4610 = vrot.lane.b32.xlu0 %v4564, 64
      %v4611 = vpop.permute.xlu0 %4610
      %4612 = vrot.lane.b32.xlu0 %v4565, 64
      %v4613 = vpop.permute.xlu0 %4612
      %v4630 = vadd.f32 %v4470, %v4583
      %v4631 = vadd.f32 %v4471, %v4585
      %v4632 = vadd.f32 %v4472, %v4587
      %v4633 = vadd.f32 %v4473, %v4589
      %v4634 = vadd.f32 %v4474, %v4591
      %v4635 = vadd.f32 %v4475, %v4593
      %v4636 = vadd.f32 %v4476, %v4595
      %v4637 = vadd.f32 %v4477, %v4597
      %v4638 = vadd.f32 %v4478, %v4599
      %v4639 = vadd.f32 %v4479, %v4601
      %v4640 = vadd.f32 %v4480, %v4603
      %v4641 = vadd.f32 %v4481, %v4605
      %v4642 = vadd.f32 %v4482, %v4607
      %v4643 = vadd.f32 %v4483, %v4609
      %v4644 = vadd.f32 %v4484, %v4611
      %v4645 = vadd.f32 %v4485, %v4613
      %4662 = vrot.lane.b32.xlu0 %v4630, 64
      %v4663 = vpop.permute.xlu0 %4662
      %4664 = vrot.lane.b32.xlu0 %v4631, 64
      %v4665 = vpop.permute.xlu0 %4664
      %4666 = vrot.lane.b32.xlu0 %v4632, 64
      %v4667 = vpop.permute.xlu0 %4666
      %4668 = vrot.lane.b32.xlu0 %v4633, 64
      %v4669 = vpop.permute.xlu0 %4668
      %4670 = vrot.lane.b32.xlu0 %v4634, 64
      %v4671 = vpop.permute.xlu0 %4670
      %4672 = vrot.lane.b32.xlu0 %v4635, 64
      %v4673 = vpop.permute.xlu0 %4672
      %4674 = vrot.lane.b32.xlu0 %v4636, 64
      %v4675 = vpop.permute.xlu0 %4674
      %4676 = vrot.lane.b32.xlu0 %v4637, 64
      %v4677 = vpop.permute.xlu0 %4676
      %4678 = vrot.lane.b32.xlu0 %v4638, 64
      %v4679 = vpop.permute.xlu0 %4678
      %4680 = vrot.lane.b32.xlu0 %v4639, 64
      %v4681 = vpop.permute.xlu0 %4680
      %4682 = vrot.lane.b32.xlu0 %v4640, 64
      %v4683 = vpop.permute.xlu0 %4682
      %4684 = vrot.lane.b32.xlu0 %v4641, 64
      %v4685 = vpop.permute.xlu0 %4684
      %4686 = vrot.lane.b32.xlu0 %v4642, 64
      %v4687 = vpop.permute.xlu0 %4686
      %4688 = vrot.lane.b32.xlu0 %v4643, 64
      %v4689 = vpop.permute.xlu0 %4688
      %4690 = vrot.lane.b32.xlu0 %v4644, 64
      %v4691 = vpop.permute.xlu0 %4690
      %4692 = vrot.lane.b32.xlu0 %v4645, 64
      %v4693 = vpop.permute.xlu0 %4692
      %vm4710 = vcmask 523264
      %v4711 = vsel %vm4710, %v4454, %v4663
      %v4712 = vsel %vm4710, %v4455, %v4665
      %v4713 = vsel %vm4710, %v4456, %v4667
      %v4714 = vsel %vm4710, %v4457, %v4669
      %v4715 = vsel %vm4710, %v4458, %v4671
      %v4716 = vsel %vm4710, %v4459, %v4673
      %v4717 = vsel %vm4710, %v4460, %v4675
      %v4718 = vsel %vm4710, %v4461, %v4677
      %v4719 = vsel %vm4710, %v4462, %v4679
      %v4720 = vsel %vm4710, %v4463, %v4681
      %v4721 = vsel %vm4710, %v4464, %v4683
      %v4722 = vsel %vm4710, %v4465, %v4685
      %v4723 = vsel %vm4710, %v4466, %v4687
      %v4724 = vsel %vm4710, %v4467, %v4689
      %v4725 = vsel %vm4710, %v4468, %v4691
      %v4726 = vsel %vm4710, %v4469, %v4693
      %v4727 = vpack.c.bf16 %v4712, %v4711
      %v4728 = vpack.c.bf16 %v4714, %v4713
      %v4729 = vpack.c.bf16 %v4716, %v4715
      %v4730 = vpack.c.bf16 %v4718, %v4717
      %v4731 = vpack.c.bf16 %v4720, %v4719
      %v4732 = vpack.c.bf16 %v4722, %v4721
      %v4733 = vpack.c.bf16 %v4724, %v4723
      %v4734 = vpack.c.bf16 %v4726, %v4725
      %v4735 = vld [vmem:[%s2] sm:$0xf]
      %v4736 = vld [vmem:[%s2 + $0x4] sm:$0xf]
      %v4737 = vld [vmem:[%s2 + $0x8] sm:$0xf]
      %v4738 = vld [vmem:[%s2 + $0xc] sm:$0xf]
      %v4739 = vld [vmem:[%s2 + $0x10] sm:$0xf]
      %v4740 = vld [vmem:[%s2 + $0x14] sm:$0xf]
      %v4741 = vld [vmem:[%s2 + $0x18] sm:$0xf]
      %v4742 = vld [vmem:[%s2 + $0x1c] sm:$0xf]
      %v4743 = vld [vmem:[%s2 + $0x20] sm:$0xf]
      %v4744 = vld [vmem:[%s2 + $0x24] sm:$0xf]
      %v4745 = vld [vmem:[%s2 + $0x28] sm:$0xf]
      %v4746 = vld [vmem:[%s2 + $0x2c] sm:$0xf]
      %v4747 = vld [vmem:[%s2 + $0x30] sm:$0xf]
      %v4748 = vld [vmem:[%s2 + $0x34] sm:$0xf]
      %v4749 = vld [vmem:[%s2 + $0x38] sm:$0xf]
      %v4750 = vld [vmem:[%s2 + $0x3c] sm:$0xf]
      %v4751 = vld [vmem:[%s3] sm:$0x1]
      %v4753 = vlaneseq
      %v4754 = vshrl.u32 %v4753, 7
      %v4755 = vsub.s32 0, %v4754
      %v4756 = vrot.slane %v4751, %v4755
      %v4774 = vunpack.c.l.b16 %v4735
      %v4775 = vunpack.c.l.b16 %v4736
      %v4776 = vunpack.c.l.b16 %v4737
      %v4777 = vunpack.c.l.b16 %v4738
      %v4778 = vunpack.c.l.b16 %v4739
      %v4779 = vunpack.c.l.b16 %v4740
      %v4780 = vunpack.c.l.b16 %v4741
      %v4781 = vunpack.c.l.b16 %v4742
      %v4782 = vunpack.c.l.b16 %v4743
      %v4783 = vunpack.c.l.b16 %v4744
      %v4784 = vunpack.c.l.b16 %v4745
      %v4785 = vunpack.c.l.b16 %v4746
      %v4786 = vunpack.c.l.b16 %v4747
      %v4787 = vunpack.c.l.b16 %v4748
      %v4788 = vunpack.c.l.b16 %v4749
      %v4789 = vunpack.c.l.b16 %v4750
      %v4790 = vpack.c.b16 %v4775, %v4774
      %v4791 = vpack.c.b16 %v4777, %v4776
      %v4792 = vpack.c.b16 %v4779, %v4778
      %v4793 = vpack.c.b16 %v4781, %v4780
      %v4794 = vpack.c.b16 %v4783, %v4782
      %v4795 = vpack.c.b16 %v4785, %v4784
      %v4796 = vpack.c.b16 %v4787, %v4786
      %v4797 = vpack.c.b16 %v4789, %v4788
      %4806 = vmatprep.subr.bf16.mxu0 0
      %4807 = vmatpush1.bf16.msra.mxu0 %v4797
      %4808 = vmatprep.subr.bf16.mxu0 0
      %4809 = vmatpush1.bf16.msra.mxu0 %v4796
      %4810 = vmatprep.subr.bf16.mxu0 0
      %4811 = vmatpush1.bf16.msra.mxu0 %v4795
      %4812 = vmatprep.subr.bf16.mxu0 0
      %4813 = vmatpush1.bf16.msra.mxu0 %v4794
      %4814 = vmatprep.subr.bf16.mxu0 0
      %4815 = vmatpush1.bf16.msra.mxu0 %v4793
      %4816 = vmatprep.subr.bf16.mxu0 0
      %4817 = vmatpush1.bf16.msra.mxu0 %v4792
      %4818 = vmatprep.subr.bf16.mxu0 0
      %4819 = vmatpush1.bf16.msra.mxu0 %v4791
      %4820 = vmatprep.subr.bf16.mxu0 0
      %4821 = vmatpush1.bf16.msra.mxu0 %v4790
      %4822 = vmatprep.subr.bf16.mxu0 0
      %4823 = vmatpush2.bf16.msra.mxu0 0
      %4824 = vmatprep.subr.bf16.mxu0 0
      %4825 = vmatpush2.bf16.msra.mxu0 0
      %4826 = vmatprep.subr.bf16.mxu0 0
      %4827 = vmatpush2.bf16.msra.mxu0 0
      %4828 = vmatprep.subr.bf16.mxu0 0
      %4829 = vmatpush2.bf16.msra.mxu0 0
      %4830 = vmatprep.subr.bf16.mxu0 0
      %4831 = vmatpush2.bf16.msra.mxu0 0
      %4832 = vmatprep.subr.bf16.mxu0 0
      %4833 = vmatpush2.bf16.msra.mxu0 0
      %4834 = vmatprep.subr.bf16.mxu0 0
      %4835 = vmatpush2.bf16.msra.mxu0 0
      %4836 = vmatprep.subr.bf16.mxu0 0
      %4837 = vmatpush2.bf16.msra.mxu0 0
      %4838 = vmatprep.mubr.bf16.mxu0 0
      %4839 = vmatmul.mubr.bf16.gmra.mxu0 %v4727
      %v4840 = vpop.f32.mrf.mxu0
      %v4841 = vadd.f32 %v4756, %v4840
      %v4842 = vpop.f32.mrf.mxu0
      %v4843 = vpop.f32.mrf.mxu0
      %v4844 = vadd.f32 %v4756, %v4843
      %v4845 = vpop.f32.mrf.mxu0
      %4846 = vmatprep.mubr.bf16.mxu0 0
      %4847 = vmatmul.mubr.bf16.gmra.mxu0 %v4728
      %v4848 = vpop.f32.mrf.mxu0
      %v4849 = vadd.f32 %v4756, %v4848
      %v4850 = vpop.f32.mrf.mxu0
      %v4851 = vpop.f32.mrf.mxu0
      %v4852 = vadd.f32 %v4756, %v4851
      %v4853 = vpop.f32.mrf.mxu0
      %4854 = vmatprep.mubr.bf16.mxu0 0
      %4855 = vmatmul.mubr.bf16.gmra.mxu0 %v4729
      %v4856 = vpop.f32.mrf.mxu0
      %v4857 = vadd.f32 %v4756, %v4856
      %v4858 = vpop.f32.mrf.mxu0
      %v4859 = vpop.f32.mrf.mxu0
      %v4860 = vadd.f32 %v4756, %v4859
      %v4861 = vpop.f32.mrf.mxu0
      %4862 = vmatprep.mubr.bf16.mxu0 0
      %4863 = vmatmul.mubr.bf16.gmra.mxu0 %v4730
      %v4864 = vpop.f32.mrf.mxu0
      %v4865 = vadd.f32 %v4756, %v4864
      %v4866 = vpop.f32.mrf.mxu0
      %v4867 = vpop.f32.mrf.mxu0
      %v4868 = vadd.f32 %v4756, %v4867
      %v4869 = vpop.f32.mrf.mxu0
      %4870 = vmatprep.mubr.bf16.mxu0 0
      %4871 = vmatmul.mubr.bf16.gmra.mxu0 %v4731
      %v4872 = vpop.f32.mrf.mxu0
      %v4873 = vadd.f32 %v4756, %v4872
      %v4874 = vpop.f32.mrf.mxu0
      %v4875 = vpop.f32.mrf.mxu0
      %v4876 = vadd.f32 %v4756, %v4875
      %v4877 = vpop.f32.mrf.mxu0
      %4878 = vmatprep.mubr.bf16.mxu0 0
      %4879 = vmatmul.mubr.bf16.gmra.mxu0 %v4732
      %v4880 = vpop.f32.mrf.mxu0
      %v4881 = vadd.f32 %v4756, %v4880
      %v4882 = vpop.f32.mrf.mxu0
      %v4883 = vpop.f32.mrf.mxu0
      %v4884 = vadd.f32 %v4756, %v4883
      %v4885 = vpop.f32.mrf.mxu0
      %4886 = vmatprep.mubr.bf16.mxu0 0
      %4887 = vmatmul.mubr.bf16.gmra.mxu0 %v4733
      %v4888 = vpop.f32.mrf.mxu0
      %v4889 = vadd.f32 %v4756, %v4888
      %v4890 = vpop.f32.mrf.mxu0
      %v4891 = vpop.f32.mrf.mxu0
      %v4892 = vadd.f32 %v4756, %v4891
      %v4893 = vpop.f32.mrf.mxu0
      %4894 = vmatprep.mubr.bf16.mxu0 0
      %4895 = vmatmul.mubr.bf16.gmra.mxu0 %v4734
      %v4896 = vpop.f32.mrf.mxu0
      %v4897 = vadd.f32 %v4756, %v4896
      %v4898 = vpop.f32.mrf.mxu0
      %v4899 = vpop.f32.mrf.mxu0
      %v4900 = vadd.f32 %v4756, %v4899
      %v4901 = vpop.f32.mrf.mxu0
      %4902 = vdwg.mxu0
      %4919 = vrot.lane.b32.xlu0 %v202, 64
      %v4920 = vpop.permute.xlu0 %4919
      %4921 = vrot.lane.b32.xlu0 %v204, 64
      %v4922 = vpop.permute.xlu0 %4921
      %4923 = vrot.lane.b32.xlu0 %v206, 64
      %v4924 = vpop.permute.xlu0 %4923
      %4925 = vrot.lane.b32.xlu0 %v208, 64
      %v4926 = vpop.permute.xlu0 %4925
      %4927 = vrot.lane.b32.xlu0 %v210, 64
      %v4928 = vpop.permute.xlu0 %4927
      %4929 = vrot.lane.b32.xlu0 %v212, 64
      %v4930 = vpop.permute.xlu0 %4929
      %4931 = vrot.lane.b32.xlu0 %v214, 64
      %v4932 = vpop.permute.xlu0 %4931
      %4933 = vrot.lane.b32.xlu0 %v216, 64
      %v4934 = vpop.permute.xlu0 %4933
      %4935 = vrot.lane.b32.xlu0 %v218, 64
      %v4936 = vpop.permute.xlu0 %4935
      %4937 = vrot.lane.b32.xlu0 %v220, 64
      %v4938 = vpop.permute.xlu0 %4937
      %4939 = vrot.lane.b32.xlu0 %v222, 64
      %v4940 = vpop.permute.xlu0 %4939
      %4941 = vrot.lane.b32.xlu0 %v224, 64
      %v4942 = vpop.permute.xlu0 %4941
      %4943 = vrot.lane.b32.xlu0 %v226, 64
      %v4944 = vpop.permute.xlu0 %4943
      %4945 = vrot.lane.b32.xlu0 %v228, 64
      %v4946 = vpop.permute.xlu0 %4945
      %4947 = vrot.lane.b32.xlu0 %v230, 64
      %v4948 = vpop.permute.xlu0 %4947
      %4949 = vrot.lane.b32.xlu0 %v232, 64
      %v4950 = vpop.permute.xlu0 %4949
      %v4967 = vsub.f32 %v4841, %v4920
      %v4968 = vsub.f32 %v4844, %v4922
      %v4969 = vsub.f32 %v4849, %v4924
      %v4970 = vsub.f32 %v4852, %v4926
      %v4971 = vsub.f32 %v4857, %v4928
      %v4972 = vsub.f32 %v4860, %v4930
      %v4973 = vsub.f32 %v4865, %v4932
      %v4974 = vsub.f32 %v4868, %v4934
      %v4975 = vsub.f32 %v4873, %v4936
      %v4976 = vsub.f32 %v4876, %v4938
      %v4977 = vsub.f32 %v4881, %v4940
      %v4978 = vsub.f32 %v4884, %v4942
      %v4979 = vsub.f32 %v4889, %v4944
      %v4980 = vsub.f32 %v4892, %v4946
      %v4981 = vsub.f32 %v4897, %v4948
      %v4982 = vsub.f32 %v4900, %v4950
      %4983 = vrot.lane.b32.xlu0 %v202, 96
      %v4984 = vpop.permute.xlu0 %4983
      %4985 = vrot.lane.b32.xlu0 %v204, 96
      %v4986 = vpop.permute.xlu0 %4985
      %4987 = vrot.lane.b32.xlu0 %v206, 96
      %v4988 = vpop.permute.xlu0 %4987
      %4989 = vrot.lane.b32.xlu0 %v208, 96
      %v4990 = vpop.permute.xlu0 %4989
      %4991 = vrot.lane.b32.xlu0 %v210, 96
      %v4992 = vpop.permute.xlu0 %4991
      %4993 = vrot.lane.b32.xlu0 %v212, 96
      %v4994 = vpop.permute.xlu0 %4993
      %4995 = vrot.lane.b32.xlu0 %v214, 96
      %v4996 = vpop.permute.xlu0 %4995
      %4997 = vrot.lane.b32.xlu0 %v216, 96
      %v4998 = vpop.permute.xlu0 %4997
      %4999 = vrot.lane.b32.xlu0 %v218, 96
      %v5000 = vpop.permute.xlu0 %4999
      %5001 = vrot.lane.b32.xlu0 %v220, 96
      %v5002 = vpop.permute.xlu0 %5001
      %5003 = vrot.lane.b32.xlu0 %v222, 96
      %v5004 = vpop.permute.xlu0 %5003
      %5005 = vrot.lane.b32.xlu0 %v224, 96
      %v5006 = vpop.permute.xlu0 %5005
      %5007 = vrot.lane.b32.xlu0 %v226, 96
      %v5008 = vpop.permute.xlu0 %5007
      %5009 = vrot.lane.b32.xlu0 %v228, 96
      %v5010 = vpop.permute.xlu0 %5009
      %5011 = vrot.lane.b32.xlu0 %v230, 96
      %v5012 = vpop.permute.xlu0 %5011
      %5013 = vrot.lane.b32.xlu0 %v232, 96
      %v5014 = vpop.permute.xlu0 %5013
      %v5031 = vsub.f32 %v4841, %v4984
      %v5032 = vsub.f32 %v4844, %v4986
      %v5033 = vsub.f32 %v4849, %v4988
      %v5034 = vsub.f32 %v4852, %v4990
      %v5035 = vsub.f32 %v4857, %v4992
      %v5036 = vsub.f32 %v4860, %v4994
      %v5037 = vsub.f32 %v4865, %v4996
      %v5038 = vsub.f32 %v4868, %v4998
      %v5039 = vsub.f32 %v4873, %v5000
      %v5040 = vsub.f32 %v4876, %v5002
      %v5041 = vsub.f32 %v4881, %v5004
      %v5042 = vsub.f32 %v4884, %v5006
      %v5043 = vsub.f32 %v4889, %v5008
      %v5044 = vsub.f32 %v4892, %v5010
      %v5045 = vsub.f32 %v4897, %v5012
      %v5046 = vsub.f32 %v4900, %v5014
      %v5047 = vmul.f32 %v4967, %v4967
      %v5048 = vmul.f32 %v4968, %v4968
      %v5049 = vmul.f32 %v4969, %v4969
      %v5050 = vmul.f32 %v4970, %v4970
      %v5051 = vmul.f32 %v4971, %v4971
      %v5052 = vmul.f32 %v4972, %v4972
      %v5053 = vmul.f32 %v4973, %v4973
      %v5054 = vmul.f32 %v4974, %v4974
      %v5055 = vmul.f32 %v4975, %v4975
      %v5056 = vmul.f32 %v4976, %v4976
      %v5057 = vmul.f32 %v4977, %v4977
      %v5058 = vmul.f32 %v4978, %v4978
      %v5059 = vmul.f32 %v4979, %v4979
      %v5060 = vmul.f32 %v4980, %v4980
      %v5061 = vmul.f32 %v4981, %v4981
      %v5062 = vmul.f32 %v4982, %v4982
      %v5063 = vmul.f32 %v5031, %v5031
      %v5064 = vmul.f32 %v5032, %v5032
      %v5065 = vmul.f32 %v5033, %v5033
      %v5066 = vmul.f32 %v5034, %v5034
      %v5067 = vmul.f32 %v5035, %v5035
      %v5068 = vmul.f32 %v5036, %v5036
      %v5069 = vmul.f32 %v5037, %v5037
      %v5070 = vmul.f32 %v5038, %v5038
      %v5071 = vmul.f32 %v5039, %v5039
      %v5072 = vmul.f32 %v5040, %v5040
      %v5073 = vmul.f32 %v5041, %v5041
      %v5074 = vmul.f32 %v5042, %v5042
      %v5075 = vmul.f32 %v5043, %v5043
      %v5076 = vmul.f32 %v5044, %v5044
      %v5077 = vmul.f32 %v5045, %v5045
      %v5078 = vmul.f32 %v5046, %v5046
      %5095 = vrot.lane.b32.xlu0 %v5063, 64
      %v5096 = vpop.permute.xlu0 %5095
      %5097 = vrot.lane.b32.xlu0 %v5064, 64
      %v5098 = vpop.permute.xlu0 %5097
      %5099 = vrot.lane.b32.xlu0 %v5065, 64
      %v5100 = vpop.permute.xlu0 %5099
      %5101 = vrot.lane.b32.xlu0 %v5066, 64
      %v5102 = vpop.permute.xlu0 %5101
      %5103 = vrot.lane.b32.xlu0 %v5067, 64
      %v5104 = vpop.permute.xlu0 %5103
      %5105 = vrot.lane.b32.xlu0 %v5068, 64
      %v5106 = vpop.permute.xlu0 %5105
      %5107 = vrot.lane.b32.xlu0 %v5069, 64
      %v5108 = vpop.permute.xlu0 %5107
      %5109 = vrot.lane.b32.xlu0 %v5070, 64
      %v5110 = vpop.permute.xlu0 %5109
      %5111 = vrot.lane.b32.xlu0 %v5071, 64
      %v5112 = vpop.permute.xlu0 %5111
      %5113 = vrot.lane.b32.xlu0 %v5072, 64
      %v5114 = vpop.permute.xlu0 %5113
      %5115 = vrot.lane.b32.xlu0 %v5073, 64
      %v5116 = vpop.permute.xlu0 %5115
      %5117 = vrot.lane.b32.xlu0 %v5074, 64
      %v5118 = vpop.permute.xlu0 %5117
      %5119 = vrot.lane.b32.xlu0 %v5075, 64
      %v5120 = vpop.permute.xlu0 %5119
      %5121 = vrot.lane.b32.xlu0 %v5076, 64
      %v5122 = vpop.permute.xlu0 %5121
      %5123 = vrot.lane.b32.xlu0 %v5077, 64
      %v5124 = vpop.permute.xlu0 %5123
      %5125 = vrot.lane.b32.xlu0 %v5078, 64
      %v5126 = vpop.permute.xlu0 %5125
      %v5143 = vadd.f32 %v5047, %v5096
      %v5144 = vadd.f32 %v5048, %v5098
      %v5145 = vadd.f32 %v5049, %v5100
      %v5146 = vadd.f32 %v5050, %v5102
      %v5147 = vadd.f32 %v5051, %v5104
      %v5148 = vadd.f32 %v5052, %v5106
      %v5149 = vadd.f32 %v5053, %v5108
      %v5150 = vadd.f32 %v5054, %v5110
      %v5151 = vadd.f32 %v5055, %v5112
      %v5152 = vadd.f32 %v5056, %v5114
      %v5153 = vadd.f32 %v5057, %v5116
      %v5154 = vadd.f32 %v5058, %v5118
      %v5155 = vadd.f32 %v5059, %v5120
      %v5156 = vadd.f32 %v5060, %v5122
      %v5157 = vadd.f32 %v5061, %v5124
      %v5158 = vadd.f32 %v5062, %v5126
      %vm5159 = vcmask 261120
      %v5160 = vsel %vm5159, %v5143, 0.0
      %v5161 = vsel %vm5159, %v5144, 0.0
      %v5162 = vadd.f32 %v5160, %v5161
      %v5163 = vsel %vm5159, %v5145, 0.0
      %v5164 = vadd.f32 %v5162, %v5163
      %v5165 = vsel %vm5159, %v5146, 0.0
      %v5166 = vadd.f32 %v5164, %v5165
      %v5167 = vsel %vm5159, %v5147, 0.0
      %v5168 = vadd.f32 %v5166, %v5167
      %v5169 = vsel %vm5159, %v5148, 0.0
      %v5170 = vadd.f32 %v5168, %v5169
      %v5171 = vsel %vm5159, %v5149, 0.0
      %v5172 = vadd.f32 %v5170, %v5171
      %v5173 = vsel %vm5159, %v5150, 0.0
      %v5174 = vadd.f32 %v5172, %v5173
      %v5175 = vsel %vm5159, %v5151, 0.0
      %v5176 = vadd.f32 %v5174, %v5175
      %v5177 = vsel %vm5159, %v5152, 0.0
      %v5178 = vadd.f32 %v5176, %v5177
      %v5179 = vsel %vm5159, %v5153, 0.0
      %v5180 = vadd.f32 %v5178, %v5179
      %v5181 = vsel %vm5159, %v5154, 0.0
      %v5182 = vadd.f32 %v5180, %v5181
      %v5183 = vsel %vm5159, %v5155, 0.0
      %v5184 = vadd.f32 %v5182, %v5183
      %v5185 = vsel %vm5159, %v5156, 0.0
      %v5186 = vadd.f32 %v5184, %v5185
      %v5187 = vsel %vm5159, %v5157, 0.0
      %v5188 = vadd.f32 %v5186, %v5187
      %v5189 = vsel %vm5159, %v5158, 0.0
      %v5190 = vadd.f32 %v5188, %v5189
      %5191 = vadd.xlane.f32.xlu0 %v5190
      %v5192 = vpop.xlane.xlu0 %5191
      %v5193 = vrot.slane %v5192, 4
      %v5194 = vadd.f32 %v5192, %v5193
      %v5195 = vrot.slane %v5194, 2
      %v5196 = vadd.f32 %v5194, %v5195
      %v5197 = vrot.slane %v5196, 1
      %v5198 = vadd.f32 %v5196, %v5197
      %s5199 = vtos %v5198
      %v5200 = vmul.f32 %v4841, %v4841
      %v5201 = vmul.f32 %v4844, %v4844
      %v5202 = vmul.f32 %v4849, %v4849
      %v5203 = vmul.f32 %v4852, %v4852
      %v5204 = vmul.f32 %v4857, %v4857
      %v5205 = vmul.f32 %v4860, %v4860
      %v5206 = vmul.f32 %v4865, %v4865
      %v5207 = vmul.f32 %v4868, %v4868
      %v5208 = vmul.f32 %v4873, %v4873
      %v5209 = vmul.f32 %v4876, %v4876
      %v5210 = vmul.f32 %v4881, %v4881
      %v5211 = vmul.f32 %v4884, %v4884
      %v5212 = vmul.f32 %v4889, %v4889
      %v5213 = vmul.f32 %v4892, %v4892
      %v5214 = vmul.f32 %v4897, %v4897
      %v5215 = vmul.f32 %v4900, %v4900
      %5232 = vrot.lane.b32.xlu0 %v5200, 64
      %v5233 = vpop.permute.xlu0 %5232
      %5234 = vrot.lane.b32.xlu0 %v5201, 64
      %v5235 = vpop.permute.xlu0 %5234
      %5236 = vrot.lane.b32.xlu0 %v5202, 64
      %v5237 = vpop.permute.xlu0 %5236
      %5238 = vrot.lane.b32.xlu0 %v5203, 64
      %v5239 = vpop.permute.xlu0 %5238
      %5240 = vrot.lane.b32.xlu0 %v5204, 64
      %v5241 = vpop.permute.xlu0 %5240
      %5242 = vrot.lane.b32.xlu0 %v5205, 64
      %v5243 = vpop.permute.xlu0 %5242
      %5244 = vrot.lane.b32.xlu0 %v5206, 64
      %v5245 = vpop.permute.xlu0 %5244
      %5246 = vrot.lane.b32.xlu0 %v5207, 64
      %v5247 = vpop.permute.xlu0 %5246
      %5248 = vrot.lane.b32.xlu0 %v5208, 64
      %v5249 = vpop.permute.xlu0 %5248
      %5250 = vrot.lane.b32.xlu0 %v5209, 64
      %v5251 = vpop.permute.xlu0 %5250
      %5252 = vrot.lane.b32.xlu0 %v5210, 64
      %v5253 = vpop.permute.xlu0 %5252
      %5254 = vrot.lane.b32.xlu0 %v5211, 64
      %v5255 = vpop.permute.xlu0 %5254
      %5256 = vrot.lane.b32.xlu0 %v5212, 64
      %v5257 = vpop.permute.xlu0 %5256
      %5258 = vrot.lane.b32.xlu0 %v5213, 64
      %v5259 = vpop.permute.xlu0 %5258
      %5260 = vrot.lane.b32.xlu0 %v5214, 64
      %v5261 = vpop.permute.xlu0 %5260
      %5262 = vrot.lane.b32.xlu0 %v5215, 64
      %v5263 = vpop.permute.xlu0 %5262
      %v5280 = vadd.f32 %v5200, %v5233
      %v5281 = vadd.f32 %v5201, %v5235
      %v5282 = vadd.f32 %v5202, %v5237
      %v5283 = vadd.f32 %v5203, %v5239
      %v5284 = vadd.f32 %v5204, %v5241
      %v5285 = vadd.f32 %v5205, %v5243
      %v5286 = vadd.f32 %v5206, %v5245
      %v5287 = vadd.f32 %v5207, %v5247
      %v5288 = vadd.f32 %v5208, %v5249
      %v5289 = vadd.f32 %v5209, %v5251
      %v5290 = vadd.f32 %v5210, %v5253
      %v5291 = vadd.f32 %v5211, %v5255
      %v5292 = vadd.f32 %v5212, %v5257
      %v5293 = vadd.f32 %v5213, %v5259
      %v5294 = vadd.f32 %v5214, %v5261
      %v5295 = vadd.f32 %v5215, %v5263
      %v5296 = vrsqrt.pop %v5280
      %v5297 = vmul.f32 %v5280, %v5296
      %vm5298 = vcmp.eq.f32.partialorder %v5280, inf
      %v5299 = vsel %vm5298, %v5280, %v5297
      %vm5300 = vcmp.eq.f32.partialorder %v5280, 0.0
      %v5301 = vand.u32 %v5280, 2147483648
      %v5302 = vsel %vm5300, %v5301, %v5299
      %v5303 = vrsqrt.pop %v5281
      %v5304 = vmul.f32 %v5281, %v5303
      %vm5305 = vcmp.eq.f32.partialorder %v5281, inf
      %v5306 = vsel %vm5305, %v5281, %v5304
      %vm5307 = vcmp.eq.f32.partialorder %v5281, 0.0
      %v5308 = vand.u32 %v5281, 2147483648
      %v5309 = vsel %vm5307, %v5308, %v5306
      %v5310 = vrsqrt.pop %v5282
      %v5311 = vmul.f32 %v5282, %v5310
      %vm5312 = vcmp.eq.f32.partialorder %v5282, inf
      %v5313 = vsel %vm5312, %v5282, %v5311
      %vm5314 = vcmp.eq.f32.partialorder %v5282, 0.0
      %v5315 = vand.u32 %v5282, 2147483648
      %v5316 = vsel %vm5314, %v5315, %v5313
      %v5317 = vrsqrt.pop %v5283
      %v5318 = vmul.f32 %v5283, %v5317
      %vm5319 = vcmp.eq.f32.partialorder %v5283, inf
      %v5320 = vsel %vm5319, %v5283, %v5318
      %vm5321 = vcmp.eq.f32.partialorder %v5283, 0.0
      %v5322 = vand.u32 %v5283, 2147483648
      %v5323 = vsel %vm5321, %v5322, %v5320
      %v5324 = vrsqrt.pop %v5284
      %v5325 = vmul.f32 %v5284, %v5324
      %vm5326 = vcmp.eq.f32.partialorder %v5284, inf
      %v5327 = vsel %vm5326, %v5284, %v5325
      %vm5328 = vcmp.eq.f32.partialorder %v5284, 0.0
      %v5329 = vand.u32 %v5284, 2147483648
      %v5330 = vsel %vm5328, %v5329, %v5327
      %v5331 = vrsqrt.pop %v5285
      %v5332 = vmul.f32 %v5285, %v5331
      %vm5333 = vcmp.eq.f32.partialorder %v5285, inf
      %v5334 = vsel %vm5333, %v5285, %v5332
      %vm5335 = vcmp.eq.f32.partialorder %v5285, 0.0
      %v5336 = vand.u32 %v5285, 2147483648
      %v5337 = vsel %vm5335, %v5336, %v5334
      %v5338 = vrsqrt.pop %v5286
      %v5339 = vmul.f32 %v5286, %v5338
      %vm5340 = vcmp.eq.f32.partialorder %v5286, inf
      %v5341 = vsel %vm5340, %v5286, %v5339
      %vm5342 = vcmp.eq.f32.partialorder %v5286, 0.0
      %v5343 = vand.u32 %v5286, 2147483648
      %v5344 = vsel %vm5342, %v5343, %v5341
      %v5345 = vrsqrt.pop %v5287
      %v5346 = vmul.f32 %v5287, %v5345
      %vm5347 = vcmp.eq.f32.partialorder %v5287, inf
      %v5348 = vsel %vm5347, %v5287, %v5346
      %vm5349 = vcmp.eq.f32.partialorder %v5287, 0.0
      %v5350 = vand.u32 %v5287, 2147483648
      %v5351 = vsel %vm5349, %v5350, %v5348
      %v5352 = vrsqrt.pop %v5288
      %v5353 = vmul.f32 %v5288, %v5352
      %vm5354 = vcmp.eq.f32.partialorder %v5288, inf
      %v5355 = vsel %vm5354, %v5288, %v5353
      %vm5356 = vcmp.eq.f32.partialorder %v5288, 0.0
      %v5357 = vand.u32 %v5288, 2147483648
      %v5358 = vsel %vm5356, %v5357, %v5355
      %v5359 = vrsqrt.pop %v5289
      %v5360 = vmul.f32 %v5289, %v5359
      %vm5361 = vcmp.eq.f32.partialorder %v5289, inf
      %v5362 = vsel %vm5361, %v5289, %v5360
      %vm5363 = vcmp.eq.f32.partialorder %v5289, 0.0
      %v5364 = vand.u32 %v5289, 2147483648
      %v5365 = vsel %vm5363, %v5364, %v5362
      %v5366 = vrsqrt.pop %v5290
      %v5367 = vmul.f32 %v5290, %v5366
      %vm5368 = vcmp.eq.f32.partialorder %v5290, inf
      %v5369 = vsel %vm5368, %v5290, %v5367
      %vm5370 = vcmp.eq.f32.partialorder %v5290, 0.0
      %v5371 = vand.u32 %v5290, 2147483648
      %v5372 = vsel %vm5370, %v5371, %v5369
      %v5373 = vrsqrt.pop %v5291
      %v5374 = vmul.f32 %v5291, %v5373
      %vm5375 = vcmp.eq.f32.partialorder %v5291, inf
      %v5376 = vsel %vm5375, %v5291, %v5374
      %vm5377 = vcmp.eq.f32.partialorder %v5291, 0.0
      %v5378 = vand.u32 %v5291, 2147483648
      %v5379 = vsel %vm5377, %v5378, %v5376
      %v5380 = vrsqrt.pop %v5292
      %v5381 = vmul.f32 %v5292, %v5380
      %vm5382 = vcmp.eq.f32.partialorder %v5292, inf
      %v5383 = vsel %vm5382, %v5292, %v5381
      %vm5384 = vcmp.eq.f32.partialorder %v5292, 0.0
      %v5385 = vand.u32 %v5292, 2147483648
      %v5386 = vsel %vm5384, %v5385, %v5383
      %v5387 = vrsqrt.pop %v5293
      %v5388 = vmul.f32 %v5293, %v5387
      %vm5389 = vcmp.eq.f32.partialorder %v5293, inf
      %v5390 = vsel %vm5389, %v5293, %v5388
      %vm5391 = vcmp.eq.f32.partialorder %v5293, 0.0
      %v5392 = vand.u32 %v5293, 2147483648
      %v5393 = vsel %vm5391, %v5392, %v5390
      %v5394 = vrsqrt.pop %v5294
      %v5395 = vmul.f32 %v5294, %v5394
      %vm5396 = vcmp.eq.f32.partialorder %v5294, inf
      %v5397 = vsel %vm5396, %v5294, %v5395
      %vm5398 = vcmp.eq.f32.partialorder %v5294, 0.0
      %v5399 = vand.u32 %v5294, 2147483648
      %v5400 = vsel %vm5398, %v5399, %v5397
      %v5401 = vrsqrt.pop %v5295
      %v5402 = vmul.f32 %v5295, %v5401
      %vm5403 = vcmp.eq.f32.partialorder %v5295, inf
      %v5404 = vsel %vm5403, %v5295, %v5402
      %vm5405 = vcmp.eq.f32.partialorder %v5295, 0.0
      %v5406 = vand.u32 %v5295, 2147483648
      %v5407 = vsel %vm5405, %v5406, %v5404
      %5424 = vrot.lane.b32.xlu0 %v203, 32
      %v5425 = vpop.permute.xlu0 %5424
      %5426 = vrot.lane.b32.xlu0 %v205, 32
      %v5427 = vpop.permute.xlu0 %5426
      %5428 = vrot.lane.b32.xlu0 %v207, 32
      %v5429 = vpop.permute.xlu0 %5428
      %5430 = vrot.lane.b32.xlu0 %v209, 32
      %v5431 = vpop.permute.xlu0 %5430
      %5432 = vrot.lane.b32.xlu0 %v211, 32
      %v5433 = vpop.permute.xlu0 %5432
      %5434 = vrot.lane.b32.xlu0 %v213, 32
      %v5435 = vpop.permute.xlu0 %5434
      %5436 = vrot.lane.b32.xlu0 %v215, 32
      %v5437 = vpop.permute.xlu0 %5436
      %5438 = vrot.lane.b32.xlu0 %v217, 32
      %v5439 = vpop.permute.xlu0 %5438
      %5440 = vrot.lane.b32.xlu0 %v219, 32
      %v5441 = vpop.permute.xlu0 %5440
      %5442 = vrot.lane.b32.xlu0 %v221, 32
      %v5443 = vpop.permute.xlu0 %5442
      %5444 = vrot.lane.b32.xlu0 %v223, 32
      %v5445 = vpop.permute.xlu0 %5444
      %5446 = vrot.lane.b32.xlu0 %v225, 32
      %v5447 = vpop.permute.xlu0 %5446
      %5448 = vrot.lane.b32.xlu0 %v227, 32
      %v5449 = vpop.permute.xlu0 %5448
      %5450 = vrot.lane.b32.xlu0 %v229, 32
      %v5451 = vpop.permute.xlu0 %5450
      %5452 = vrot.lane.b32.xlu0 %v231, 32
      %v5453 = vpop.permute.xlu0 %5452
      %5454 = vrot.lane.b32.xlu0 %v233, 32
      %v5455 = vpop.permute.xlu0 %5454
      %v5472 = vsub.f32 %v5302, %v5425
      %v5473 = vsub.f32 %v5309, %v5427
      %v5474 = vsub.f32 %v5316, %v5429
      %v5475 = vsub.f32 %v5323, %v5431
      %v5476 = vsub.f32 %v5330, %v5433
      %v5477 = vsub.f32 %v5337, %v5435
      %v5478 = vsub.f32 %v5344, %v5437
      %v5479 = vsub.f32 %v5351, %v5439
      %v5480 = vsub.f32 %v5358, %v5441
      %v5481 = vsub.f32 %v5365, %v5443
      %v5482 = vsub.f32 %v5372, %v5445
      %v5483 = vsub.f32 %v5379, %v5447
      %v5484 = vsub.f32 %v5386, %v5449
      %v5485 = vsub.f32 %v5393, %v5451
      %v5486 = vsub.f32 %v5400, %v5453
      %v5487 = vsub.f32 %v5407, %v5455
      %v5488 = vmul.f32 %v5472, %v5472
      %v5489 = vmul.f32 %v5473, %v5473
      %v5490 = vmul.f32 %v5474, %v5474
      %v5491 = vmul.f32 %v5475, %v5475
      %v5492 = vmul.f32 %v5476, %v5476
      %v5493 = vmul.f32 %v5477, %v5477
      %v5494 = vmul.f32 %v5478, %v5478
      %v5495 = vmul.f32 %v5479, %v5479
      %v5496 = vmul.f32 %v5480, %v5480
      %v5497 = vmul.f32 %v5481, %v5481
      %v5498 = vmul.f32 %v5482, %v5482
      %v5499 = vmul.f32 %v5483, %v5483
      %v5500 = vmul.f32 %v5484, %v5484
      %v5501 = vmul.f32 %v5485, %v5485
      %v5502 = vmul.f32 %v5486, %v5486
      %v5503 = vmul.f32 %v5487, %v5487
      %5520 = vrot.lane.b32.xlu0 %v5488, 96
      %v5521 = vpop.permute.xlu0 %5520
      %5522 = vrot.lane.b32.xlu0 %v5489, 96
      %v5523 = vpop.permute.xlu0 %5522
      %5524 = vrot.lane.b32.xlu0 %v5490, 96
      %v5525 = vpop.permute.xlu0 %5524
      %5526 = vrot.lane.b32.xlu0 %v5491, 96
      %v5527 = vpop.permute.xlu0 %5526
      %5528 = vrot.lane.b32.xlu0 %v5492, 96
      %v5529 = vpop.permute.xlu0 %5528
      %5530 = vrot.lane.b32.xlu0 %v5493, 96
      %v5531 = vpop.permute.xlu0 %5530
      %5532 = vrot.lane.b32.xlu0 %v5494, 96
      %v5533 = vpop.permute.xlu0 %5532
      %5534 = vrot.lane.b32.xlu0 %v5495, 96
      %v5535 = vpop.permute.xlu0 %5534
      %5536 = vrot.lane.b32.xlu0 %v5496, 96
      %v5537 = vpop.permute.xlu0 %5536
      %5538 = vrot.lane.b32.xlu0 %v5497, 96
      %v5539 = vpop.permute.xlu0 %5538
      %5540 = vrot.lane.b32.xlu0 %v5498, 96
      %v5541 = vpop.permute.xlu0 %5540
      %5542 = vrot.lane.b32.xlu0 %v5499, 96
      %v5543 = vpop.permute.xlu0 %5542
      %5544 = vrot.lane.b32.xlu0 %v5500, 96
      %v5545 = vpop.permute.xlu0 %5544
      %5546 = vrot.lane.b32.xlu0 %v5501, 96
      %v5547 = vpop.permute.xlu0 %5546
      %5548 = vrot.lane.b32.xlu0 %v5502, 96
      %v5549 = vpop.permute.xlu0 %5548
      %5550 = vrot.lane.b32.xlu0 %v5503, 96
      %v5551 = vpop.permute.xlu0 %5550
      %vm5568 = vcmask 130048
      %v5569 = vsel %vm5568, %v5521, 0.0
      %v5570 = vsel %vm5568, %v5523, 0.0
      %v5571 = vadd.f32 %v5569, %v5570
      %v5572 = vsel %vm5568, %v5525, 0.0
      %v5573 = vadd.f32 %v5571, %v5572
      %v5574 = vsel %vm5568, %v5527, 0.0
      %v5575 = vadd.f32 %v5573, %v5574
      %v5576 = vsel %vm5568, %v5529, 0.0
      %v5577 = vadd.f32 %v5575, %v5576
      %v5578 = vsel %vm5568, %v5531, 0.0
      %v5579 = vadd.f32 %v5577, %v5578
      %v5580 = vsel %vm5568, %v5533, 0.0
      %v5581 = vadd.f32 %v5579, %v5580
      %v5582 = vsel %vm5568, %v5535, 0.0
      %v5583 = vadd.f32 %v5581, %v5582
      %v5584 = vsel %vm5568, %v5537, 0.0
      %v5585 = vadd.f32 %v5583, %v5584
      %v5586 = vsel %vm5568, %v5539, 0.0
      %v5587 = vadd.f32 %v5585, %v5586
      %v5588 = vsel %vm5568, %v5541, 0.0
      %v5589 = vadd.f32 %v5587, %v5588
      %v5590 = vsel %vm5568, %v5543, 0.0
      %v5591 = vadd.f32 %v5589, %v5590
      %v5592 = vsel %vm5568, %v5545, 0.0
      %v5593 = vadd.f32 %v5591, %v5592
      %v5594 = vsel %vm5568, %v5547, 0.0
      %v5595 = vadd.f32 %v5593, %v5594
      %v5596 = vsel %vm5568, %v5549, 0.0
      %v5597 = vadd.f32 %v5595, %v5596
      %v5598 = vsel %vm5568, %v5551, 0.0
      %v5599 = vadd.f32 %v5597, %v5598
      %5600 = vadd.xlane.f32.xlu0 %v5599
      %v5601 = vpop.xlane.xlu0 %5600
      %v5602 = vrot.slane %v5601, 4
      %v5603 = vadd.f32 %v5601, %v5602
      %v5604 = vrot.slane %v5603, 2
      %v5605 = vadd.f32 %v5603, %v5604
      %v5606 = vrot.slane %v5605, 1
      %v5607 = vadd.f32 %v5605, %v5606
      %s5608 = vtos %v5607
      %v5609 = vlaneseq
      %v5610 = vand.u32 %v5609, 127
      %vm5611 = vcmp.eq.s32.totalorder %v5610, 0
      %vm5612 = vcmp.eq.s32.totalorder %v5610, 1
      %v5613 = vstv %s5608
      %v5614 = vsel %vm5612, %v5613, 0.0
      %v5615 = vstv %s5199
      %v5616 = vsel %vm5611, %v5615, %v5614
      %5617 = vst [vmem:[%s200] sm:$0xff] %v5616
      %p5618 = scmp.lt.s32.totalorder %s15, 1
      %s5619 = scalar_select %p5618, %s15, 1
      %s5620 = smul.addr %s5619, 8
      %s5621 = scalar_lea.vmem %s4, %s5620
      // Predicated region
      $region37: #{icm_forward.1} parent=35 // pred_check
        %p5622 = pneg %p122
      $region38: #{icm_forward.1} parent=35 // pred_check_branch
        %5624 = sbr.rel (%p5622) target = $region40
      $region39: #{icm_forward.1} parent=35 // pred_region
        _
      $region40: #{icm_forward.1} parent=35 // pred_fallthru
        _
    $region36: #{icm_forward.1} parent=5 // pred_fallthru
      _
    %p5625 = scmp.le.s32.totalorder 2, %s10
    // Predicated region
    $region41: #{icm_forward.1} parent=5 // pred_check
      %p5626 = pneg %p5625
    $region42: #{icm_forward.1} parent=5 // pred_check_branch
      %5628 = sbr.rel (%p5626) target = $region44
    $region43: #{icm_forward.1} parent=5 // pred_region
      %s5629 = ssub.s32 %s10, 2
      // Predicated region
      $region45: #{icm_forward.1} parent=43 // pred_check
        %p5630 = pneg %p128
      $region46: #{icm_forward.1} parent=43 // pred_check_branch
        %5632 = sbr.rel (%p5630) target = $region48
      $region47: #{icm_forward.1} parent=43 // pred_region
        %p5633 = scmp.lt.s32.totalorder %s16, 1
        %s5634 = scalar_select %p5633, %s16, 1
        %s5635 = smul.addr %s5634, 8
        %s5636 = scalar_lea.vmem %s4, %s5635
      $region48: #{icm_forward.1} parent=43 // pred_fallthru
        _
    $region44: #{icm_forward.1} parent=5 // pred_fallthru
      _
  $region6: #{icm_forward.1} parent=0 // loop_footer
    %s14 = sadd.s32 1, %s10
  $region7: #{icm_forward.1} parent=0 // loop_footer_branch
    %9 = sbr.rel target = $region3
  $region8: #{icm_forward.1} parent=0 // loop_exit
    _

</llo_original>
